<compile_context>
chip_gen: v5e
topology: v5e:2x2
jax: 0.10.0
libtpu: 0.0.40
codegen_flags: <defaults>
</compile_context>

<pallas_src>
import jax
import jax.numpy as jnp
from jax.experimental import pallas as pl
from jax.experimental.pallas import tpu as pltpu


def _leaky_relu(v, slope=0.01):
    return jnp.where(v >= 0, v, slope * v)


def _make_kernel(num_fc2):
    """Kernel over one batch tile: chained 2D MXU matmuls + leaky_relu.

    Refs: x (BM, D0*S), B0 (D0*S, S*D0), B1..BL (S*dims[l], S*dims[l+1]),
    out (BM, S*d_out).  Batch rides the sublane axis; the feature axis of every
    operand is a multiple of 128 except the final (full-extent) output width.
    """
    num_w = num_fc2 + 1  # adjacency lift + one per fc2 layer

    def kernel(x_ref, *rest):
        w_refs = rest[:num_w]
        o_ref = rest[num_w]

        # x @ W_adj with the permute(0,2,1) folded in via B0's column ordering.
        y = jnp.dot(x_ref[...], w_refs[0][...],
                    preferred_element_type=jnp.float32)
        # fc2 MLP: leaky_relu -> Linear (no bias), repeated; final leaky_relu.
        for w_ref in w_refs[1:]:
            y = _leaky_relu(y)
            y = jnp.dot(y, w_ref[...], preferred_element_type=jnp.float32)
        o_ref[...] = _leaky_relu(y).astype(o_ref.dtype)

    return kernel


def _num_tensorcores():
    """Conservative TC count: 2 only on v7x-class chips, else 1."""
    try:
        kind = str(jax.devices()[0].device_kind).lower()
    except Exception:
        return 1
    return 2 if "v7" in kind else 1


def causal_layer_forward(x, fc1_weight, mask, th, fc2_weights, *, block_m=None):
    """x: (N, dims[0], S) -> (N, S, dims[-1]), matching CausalLayer.forward."""
    n, d0, s = x.shape
    d_out = fc2_weights[-1].shape[0]

    # ---- fc1_to_adj(): tiny (S,S) parameter-only computation, hoisted to XLA.
    # NOTE: with the module defaults (edges_to_check=[], edge_matrix=0,
    # family_of_concepts=None) the sigmoid / mask_tmp terms are exactly zero in
    # the forward value, so only the thresholded |fc1.weight * mask| survives.
    # As in torch, an all-zero masked weight gives NaN in w/max(w) -> all-False
    # mask -> adj = 0.
    w = jnp.abs(fc1_weight * mask)
    keep = (w / jnp.max(w)) > th[0]
    adj = jnp.where(keep, w, 0.0)

    # ---- Trace-time lifted weights (batch-on-sublanes layout).
    # Activation row layouts:  input  x_flat[n, d*S + s]   (d-major, s-minor)
    #                          hidden y_flat[n, e*dims[l] + j]  (s-major)
    # B0[d*S+s, e*D0+d'] = adj[s,e] * I[d,d']  -> matmul + permute in one dot.
    eye_d0 = jnp.eye(d0, dtype=jnp.float32)
    eye_s = jnp.eye(s, dtype=jnp.float32)
    b0 = jnp.einsum('se,dD->dseD', adj.astype(jnp.float32),
                    eye_d0).reshape(d0 * s, s * d0)
    big_weights = [b0]
    for wl in fc2_weights:  # Bl = kron(I_S, Wl^T): per-symbol Linear, no bias.
        big_weights.append(jnp.kron(eye_s, wl.T.astype(jnp.float32)))

    # ---- Free, contiguous reshape (no transpose, no extra HBM pass).
    x2 = x.reshape(n, d0 * s)

    # ---- Batch tile: 1 grid step on 1-TC chips, 2 on v7x (parallel sharding).
    if block_m is None:
        steps = _num_tensorcores()
        if steps > 1 and n % steps == 0 and (n // steps) % 8 == 0:
            block_m = n // steps
        else:
            block_m = n
    if block_m > n:
        block_m = n
    assert n % block_m == 0, "batch must divide the batch tile"
    assert block_m == n or block_m % 8 == 0, "batch tile must be sublane-aligned"

    in_specs = [pl.BlockSpec((block_m, d0 * s), lambda b: (b, 0))]   # x (tiled)
    for bw in big_weights:                                           # weights
        in_specs.append(
            pl.BlockSpec(bw.shape, lambda b: (0, 0),
                         pipeline_mode=pl.Buffered(1)))              # resident

    grid_spec = pltpu.PrefetchScalarGridSpec(
        num_scalar_prefetch=0,
        grid=(n // block_m,),
        in_specs=in_specs,
        out_specs=pl.BlockSpec((block_m, s * d_out), lambda b: (b, 0)),
    )

    out2 = pl.pallas_call(
        _make_kernel(len(fc2_weights)),
        out_shape=jax.ShapeDtypeStruct((n, s * d_out), x.dtype),
        grid_spec=grid_spec,
        compiler_params=pltpu.CompilerParams(
            # No cross-step state -> batch grid shards across TensorCores.
            dimension_semantics=("parallel",)),
    )(x2, *big_weights)

    # Free reshape back to the module's (N, S, d_out) output (s-major rows).
    return out2.reshape(n, s, d_out)


def reference_forward(x, fc1_weight, mask, th, fc2_weights):
    w = jnp.abs(fc1_weight * mask)
    keep = (w / jnp.max(w)) > th[0]
    adj = jnp.where(keep, w, 0.0)
    y = jnp.einsum("nad,de->nae", x, adj)
    y = jnp.transpose(y, (0, 2, 1))
    for wl in fc2_weights:
        y = jnp.where(y >= 0, y, 0.01 * y)
        y = y @ wl.T
    return jnp.where(y >= 0, y, 0.01 * y)


if __name__ == "__main__":
    # Small, module-consistent shapes (S = n_concepts + n_classes, D0 = dims[0]).
    n_concepts, n_classes = 12, 4
    S = n_concepts + n_classes            # n_symbols = 16
    dims = [8, 16, 4]                     # len(dims) >= 2
    N = 1024                              # batch (sublane-tiled)

    key = jax.random.PRNGKey(0)
    k_x, k_fc1, *k_fc2 = jax.random.split(key, 2 + len(dims) - 1)

    x = jax.random.normal(k_x, (N, dims[0], S), dtype=jnp.float32)

    # Deterministic nn.Linear-style init: uniform(-1/sqrt(in), 1/sqrt(in)).
    def lin_init(k, out_f, in_f):
        bound = 1.0 / float(in_f) ** 0.5
        return jax.random.uniform(k, (out_f, in_f), jnp.float32, -bound, bound)

    fc1_weight = lin_init(k_fc1, S, S)                         # fc1.weight
    fc2_weights = [lin_init(k_fc2[i], dims[i + 1], dims[i])    # fc2[l].weight
                   for i in range(len(dims) - 1)]

    # DagmaCE buffers: mask = 1 - I with class rows zeroed; th = 0.1.
    mask = jnp.ones((S, S), jnp.float32) - jnp.eye(S, dtype=jnp.float32)
    mask = mask.at[n_concepts:].set(0.0)
    th = jnp.array([0.1], dtype=jnp.float32)

    out = causal_layer_forward(x, fc1_weight, mask, th, fc2_weights)
    out = jax.block_until_ready(out)

    ref = reference_forward(x, fc1_weight, mask, th, fc2_weights)
    assert out.shape == (N, S, dims[-1])
    assert jnp.allclose(out, ref, atol=1e-4, rtol=1e-4)
    print("KERNEL_OK")
</pallas_src>

<mosaic_0001>
module attributes {stable_mosaic.version = 11 : i64} {
  func.func @kernel(%arg0: i32, %arg1: memref<1024x128xf32, #tpu.memory_space<vmem>>, %arg2: memref<128x128xf32, #tpu.memory_space<vmem>>, %arg3: memref<128x256xf32, #tpu.memory_space<vmem>>, %arg4: memref<256x64xf32, #tpu.memory_space<vmem>>, %arg5: memref<1024x64xf32, #tpu.memory_space<vmem>>) attributes {dimension_semantics = [#tpu.dimension_semantics<parallel>], iteration_bounds = array<i64: 1>, scalar_prefetch = 0 : i64, scratch_operands = 0 : i64, tpu.core_type = #tpu.core_type<tc>, window_params = [{transform_indices = @transform_0, window_bounds = array<i64: 1024, 128>}, {pipeline_mode = #tpu.pipeline_mode<synchronous>, transform_indices = @transform_1, window_bounds = array<i64: 128, 128>}, {pipeline_mode = #tpu.pipeline_mode<synchronous>, transform_indices = @transform_2, window_bounds = array<i64: 128, 256>}, {pipeline_mode = #tpu.pipeline_mode<synchronous>, transform_indices = @transform_3, window_bounds = array<i64: 256, 64>}, {transform_indices = @transform_4, window_bounds = array<i64: 1024, 64>}]} {
    %c0 = arith.constant 0 : index
    %c0_0 = arith.constant 0 : index
    %0 = vector.load %arg1[%c0, %c0_0] : memref<1024x128xf32, #tpu.memory_space<vmem>>, vector<1024x128xf32>
    %c0_1 = arith.constant 0 : index
    %c0_2 = arith.constant 0 : index
    %1 = vector.load %arg2[%c0_1, %c0_2] : memref<128x128xf32, #tpu.memory_space<vmem>>, vector<128x128xf32>
    %cst = arith.constant dense<0.000000e+00> : vector<1024x128xf32>
    %2 = tpu.matmul %0, %1, %cst {dimension_numbers = #tpu.dot_dimension_numbers<[1], [0], [0], [1], [0, 0, 1, 1], [], []>} : vector<1024x128xf32>, vector<128x128xf32>, vector<1024x128xf32> -> vector<1024x128xf32>
    %cst_3 = arith.constant 0.000000e+00 : f32
    %3 = vector.broadcast %cst_3 : f32 to vector<1024x128xf32>
    %4 = arith.cmpf oge, %2, %3 : vector<1024x128xf32>
    %cst_4 = arith.constant 0.00999999977 : f32
    %5 = vector.broadcast %cst_4 : f32 to vector<1024x128xf32>
    %6 = arith.mulf %5, %2 : vector<1024x128xf32>
    %7 = arith.select %4, %2, %6 : vector<1024x128xi1>, vector<1024x128xf32>
    %c0_5 = arith.constant 0 : index
    %c0_6 = arith.constant 0 : index
    %8 = vector.load %arg3[%c0_5, %c0_6] : memref<128x256xf32, #tpu.memory_space<vmem>>, vector<128x256xf32>
    %cst_7 = arith.constant dense<0.000000e+00> : vector<1024x256xf32>
    %9 = tpu.matmul %7, %8, %cst_7 {dimension_numbers = #tpu.dot_dimension_numbers<[1], [0], [0], [1], [0, 0, 1, 1], [], []>} : vector<1024x128xf32>, vector<128x256xf32>, vector<1024x256xf32> -> vector<1024x256xf32>
    %cst_8 = arith.constant 0.000000e+00 : f32
    %10 = vector.broadcast %cst_8 : f32 to vector<1024x256xf32>
    %11 = arith.cmpf oge, %9, %10 : vector<1024x256xf32>
    %cst_9 = arith.constant 0.00999999977 : f32
    %12 = vector.broadcast %cst_9 : f32 to vector<1024x256xf32>
    %13 = arith.mulf %12, %9 : vector<1024x256xf32>
    %14 = arith.select %11, %9, %13 : vector<1024x256xi1>, vector<1024x256xf32>
    %c0_10 = arith.constant 0 : index
    %c0_11 = arith.constant 0 : index
    %15 = vector.load %arg4[%c0_10, %c0_11] : memref<256x64xf32, #tpu.memory_space<vmem>>, vector<256x64xf32>
    %cst_12 = arith.constant dense<0.000000e+00> : vector<1024x64xf32>
    %16 = tpu.matmul %14, %15, %cst_12 {dimension_numbers = #tpu.dot_dimension_numbers<[1], [0], [0], [1], [0, 0, 1, 1], [], []>} : vector<1024x256xf32>, vector<256x64xf32>, vector<1024x64xf32> -> vector<1024x64xf32>
    %cst_13 = arith.constant 0.000000e+00 : f32
    %17 = vector.broadcast %cst_13 : f32 to vector<1024x64xf32>
    %18 = arith.cmpf oge, %16, %17 : vector<1024x64xf32>
    %cst_14 = arith.constant 0.00999999977 : f32
    %19 = vector.broadcast %cst_14 : f32 to vector<1024x64xf32>
    %20 = arith.mulf %19, %16 : vector<1024x64xf32>
    %21 = arith.select %18, %16, %20 : vector<1024x64xi1>, vector<1024x64xf32>
    %c0_15 = arith.constant 0 : index
    %c0_16 = arith.constant 0 : index
    %22 = vector.load %arg5[%c0_15, %c0_16] : memref<1024x64xf32, #tpu.memory_space<vmem>>, vector<1024x64xf32>
    tpu.vector_store %arg5[%c0_15, %c0_16], %21 {strides = array<i32>} : memref<1024x64xf32, #tpu.memory_space<vmem>>, vector<1024x64xf32>,
    return
  }
  func.func @transform_0(%arg0: i32) -> (i32, i32) {
    %c0_i32 = arith.constant 0 : i32
    %c0_i32_0 = arith.constant 0 : i32
    return %arg0, %c0_i32 : i32, i32
  }
  func.func @transform_1(%arg0: i32) -> (i32, i32) {
    %c0_i32 = arith.constant 0 : i32
    %c0_i32_0 = arith.constant 0 : i32
    %c0_i32_1 = arith.constant 0 : i32
    return %c0_i32, %c0_i32_0 : i32, i32
  }
  func.func @transform_2(%arg0: i32) -> (i32, i32) {
    %c0_i32 = arith.constant 0 : i32
    %c0_i32_0 = arith.constant 0 : i32
    %c0_i32_1 = arith.constant 0 : i32
    return %c0_i32, %c0_i32_0 : i32, i32
  }
  func.func @transform_3(%arg0: i32) -> (i32, i32) {
    %c0_i32 = arith.constant 0 : i32
    %c0_i32_0 = arith.constant 0 : i32
    %c0_i32_1 = arith.constant 0 : i32
    return %c0_i32, %c0_i32_0 : i32, i32
  }
  func.func @transform_4(%arg0: i32) -> (i32, i32) {
    %c0_i32 = arith.constant 0 : i32
    %c0_i32_0 = arith.constant 0 : i32
    return %arg0, %c0_i32 : i32, i32
  }
}

</mosaic_0001>

<llo_original>
// kernel: tpu_custom_call.1
$region0: #{tpu_custom_call.1}
  #allocation0 [shape = 'u32[]', space=smem, size = 0x4, offset = 0x4, fixed_abs, tag = 'smem constant byte address 0x4 - core index']
  #allocation1 [shape = 'u32[72,128]{1,0:T(1,128)}', space=vmem, size = 0x9000, scoped, tag = 'internal scratch']
  %s0 = inlined_call_operand.hbm [shape: f32[1024,128], index: 0, kind: input, shape index: {}]
  %s1 = inlined_call_operand.vmem [shape: f32[128,128], index: 1, kind: input, shape index: {}]
  %s2 = inlined_call_operand.vmem [shape: f32[128,256], index: 2, kind: input, shape index: {}]
  %s3 = inlined_call_operand.vmem [shape: f32[256,64], index: 3, kind: input, shape index: {}]
  %s4 = inlined_call_operand.vmem [shape: f32[1024,64], index: 4, kind: output, shape index: {}]
  %s5 = sld [smem:[#allocation0]]
  $region30: #{tpu_custom_call.1} parent=0
    _
  %s7 = ssub.s32 1, %s5
  %s8 = scalar_select 0, %s7, %s5
  $region1: #{tpu_custom_call.1} parent=0
    #allocation2 [shape = 'u8[524288]{0}', space=vmem, size = 0x80000, scoped, tag = 'input window, operand 0, single buffered']
    #allocation3 [shape = 's32[1]{0}', space=sflag, size = 0x4, scoped, tag = 'scoped memory for tpu_custom_call.1']
    %9 = vsyncpa [#allocation3], 0
    // Predicated region
    $region2: #{tpu_custom_call.1} parent=1 // pred_check
      _
    $region3: #{tpu_custom_call.1} parent=1 // pred_check_branch
      %11 = sbr.rel (0) target = $region5
    $region4: #{tpu_custom_call.1} parent=1 // pred_region
      %13 = vsyncadd [#allocation3], 0
      %s14 = sshll.u32 %s0, 4
      %s15 = int_to_ptr.hbm [resolvable:$true] %s14
      %s16 = sshll.u32 [#allocation2], 4
      %s17 = int_to_ptr.vmem [resolvable:$true] %s16
      %22 = dma.hbm_to_vmem [thread:$0]  %s15, 16384, %s17, [#allocation3], 128, 128, 8
    $region5: #{tpu_custom_call.1} parent=1 // pred_fallthru
      _
    // Predicated region
    $region6: #{tpu_custom_call.1} parent=1 // pred_check
      _
    $region7: #{tpu_custom_call.1} parent=1 // pred_check_branch
      %24 = sbr.rel (0) target = $region9
    $region8: #{tpu_custom_call.1} parent=1 // pred_region
      _
    $region9: #{tpu_custom_call.1} parent=1 // pred_fallthru
      _
    // Predicated region
    $region10: #{tpu_custom_call.1} parent=1 // pred_check
      _
    $region11: #{tpu_custom_call.1} parent=1 // pred_check_branch
      %26 = sbr.rel (0) target = $region13
    $region12: #{tpu_custom_call.1} parent=1 // pred_region
      _
    $region13: #{tpu_custom_call.1} parent=1 // pred_fallthru
      _
    // Predicated region
    $region14: #{tpu_custom_call.1} parent=1 // pred_check
      _
    $region15: #{tpu_custom_call.1} parent=1 // pred_check_branch
      %28 = sbr.rel (0) target = $region17
    $region16: #{tpu_custom_call.1} parent=1 // pred_region
      _
    $region17: #{tpu_custom_call.1} parent=1 // pred_fallthru
      _
    // Predicated region
    $region18: #{tpu_custom_call.1} parent=1 // pred_check
      _
    $region19: #{tpu_custom_call.1} parent=1 // pred_check_branch
      %30 = sbr.rel (0) target = $region21
    $region20: #{tpu_custom_call.1} parent=1 // pred_region
      %32 = dma.done [#allocation3], 16384
    $region21: #{tpu_custom_call.1} parent=1 // pred_fallthru
      _
    %v33 = vld [vmem:[#allocation2] sm:$0xff]
    %v34 = vld [vmem:[#allocation2 + $0x8] sm:$0xff]
    %v35 = vld [vmem:[#allocation2 + $0x10] sm:$0xff]
    %v36 = vld [vmem:[#allocation2 + $0x18] sm:$0xff]
    %v37 = vld [vmem:[#allocation2 + $0x20] sm:$0xff]
    %v38 = vld [vmem:[#allocation2 + $0x28] sm:$0xff]
    %v39 = vld [vmem:[#allocation2 + $0x30] sm:$0xff]
    %v40 = vld [vmem:[#allocation2 + $0x38] sm:$0xff]
    %v41 = vld [vmem:[#allocation2 + $0x40] sm:$0xff]
    %v42 = vld [vmem:[#allocation2 + $0x48] sm:$0xff]
    %v43 = vld [vmem:[#allocation2 + $0x50] sm:$0xff]
    %v44 = vld [vmem:[#allocation2 + $0x58] sm:$0xff]
    %v45 = vld [vmem:[#allocation2 + $0x60] sm:$0xff]
    %v46 = vld [vmem:[#allocation2 + $0x68] sm:$0xff]
    %v47 = vld [vmem:[#allocation2 + $0x70] sm:$0xff]
    %v48 = vld [vmem:[#allocation2 + $0x78] sm:$0xff]
    %v49 = vld [vmem:[#allocation2 + $0x80] sm:$0xff]
    %v50 = vld [vmem:[#allocation2 + $0x88] sm:$0xff]
    %v51 = vld [vmem:[#allocation2 + $0x90] sm:$0xff]
    %v52 = vld [vmem:[#allocation2 + $0x98] sm:$0xff]
    %v53 = vld [vmem:[#allocation2 + $0xa0] sm:$0xff]
    %v54 = vld [vmem:[#allocation2 + $0xa8] sm:$0xff]
    %v55 = vld [vmem:[#allocation2 + $0xb0] sm:$0xff]
    %v56 = vld [vmem:[#allocation2 + $0xb8] sm:$0xff]
    %v57 = vld [vmem:[#allocation2 + $0xc0] sm:$0xff]
    %v58 = vld [vmem:[#allocation2 + $0xc8] sm:$0xff]
    %v59 = vld [vmem:[#allocation2 + $0xd0] sm:$0xff]
    %v60 = vld [vmem:[#allocation2 + $0xd8] sm:$0xff]
    %v61 = vld [vmem:[#allocation2 + $0xe0] sm:$0xff]
    %v62 = vld [vmem:[#allocation2 + $0xe8] sm:$0xff]
    %v63 = vld [vmem:[#allocation2 + $0xf0] sm:$0xff]
    %v64 = vld [vmem:[#allocation2 + $0xf8] sm:$0xff]
    %v65 = vld [vmem:[#allocation2 + $0x100] sm:$0xff]
    %v66 = vld [vmem:[#allocation2 + $0x108] sm:$0xff]
    %v67 = vld [vmem:[#allocation2 + $0x110] sm:$0xff]
    %v68 = vld [vmem:[#allocation2 + $0x118] sm:$0xff]
    %v69 = vld [vmem:[#allocation2 + $0x120] sm:$0xff]
    %v70 = vld [vmem:[#allocation2 + $0x128] sm:$0xff]
    %v71 = vld [vmem:[#allocation2 + $0x130] sm:$0xff]
    %v72 = vld [vmem:[#allocation2 + $0x138] sm:$0xff]
    %v73 = vld [vmem:[#allocation2 + $0x140] sm:$0xff]
    %v74 = vld [vmem:[#allocation2 + $0x148] sm:$0xff]
    %v75 = vld [vmem:[#allocation2 + $0x150] sm:$0xff]
    %v76 = vld [vmem:[#allocation2 + $0x158] sm:$0xff]
    %v77 = vld [vmem:[#allocation2 + $0x160] sm:$0xff]
    %v78 = vld [vmem:[#allocation2 + $0x168] sm:$0xff]
    %v79 = vld [vmem:[#allocation2 + $0x170] sm:$0xff]
    %v80 = vld [vmem:[#allocation2 + $0x178] sm:$0xff]
    %v81 = vld [vmem:[#allocation2 + $0x180] sm:$0xff]
    %v82 = vld [vmem:[#allocation2 + $0x188] sm:$0xff]
    %v83 = vld [vmem:[#allocation2 + $0x190] sm:$0xff]
    %v84 = vld [vmem:[#allocation2 + $0x198] sm:$0xff]
    %v85 = vld [vmem:[#allocation2 + $0x1a0] sm:$0xff]
    %v86 = vld [vmem:[#allocation2 + $0x1a8] sm:$0xff]
    %v87 = vld [vmem:[#allocation2 + $0x1b0] sm:$0xff]
    %v88 = vld [vmem:[#allocation2 + $0x1b8] sm:$0xff]
    %v89 = vld [vmem:[#allocation2 + $0x1c0] sm:$0xff]
    %v90 = vld [vmem:[#allocation2 + $0x1c8] sm:$0xff]
    %v91 = vld [vmem:[#allocation2 + $0x1d0] sm:$0xff]
    %v92 = vld [vmem:[#allocation2 + $0x1d8] sm:$0xff]
    %v93 = vld [vmem:[#allocation2 + $0x1e0] sm:$0xff]
    %v94 = vld [vmem:[#allocation2 + $0x1e8] sm:$0xff]
    %v95 = vld [vmem:[#allocation2 + $0x1f0] sm:$0xff]
    %v96 = vld [vmem:[#allocation2 + $0x1f8] sm:$0xff]
    %v97 = vld [vmem:[#allocation2 + $0x200] sm:$0xff]
    %v98 = vld [vmem:[#allocation2 + $0x208] sm:$0xff]
    %v99 = vld [vmem:[#allocation2 + $0x210] sm:$0xff]
    %v100 = vld [vmem:[#allocation2 + $0x218] sm:$0xff]
    %v101 = vld [vmem:[#allocation2 + $0x220] sm:$0xff]
    %v102 = vld [vmem:[#allocation2 + $0x228] sm:$0xff]
    %v103 = vld [vmem:[#allocation2 + $0x230] sm:$0xff]
    %v104 = vld [vmem:[#allocation2 + $0x238] sm:$0xff]
    %v105 = vld [vmem:[#allocation2 + $0x240] sm:$0xff]
    %v106 = vld [vmem:[#allocation2 + $0x248] sm:$0xff]
    %v107 = vld [vmem:[#allocation2 + $0x250] sm:$0xff]
    %v108 = vld [vmem:[#allocation2 + $0x258] sm:$0xff]
    %v109 = vld [vmem:[#allocation2 + $0x260] sm:$0xff]
    %v110 = vld [vmem:[#allocation2 + $0x268] sm:$0xff]
    %v111 = vld [vmem:[#allocation2 + $0x270] sm:$0xff]
    %v112 = vld [vmem:[#allocation2 + $0x278] sm:$0xff]
    %v113 = vld [vmem:[#allocation2 + $0x280] sm:$0xff]
    %v114 = vld [vmem:[#allocation2 + $0x288] sm:$0xff]
    %v115 = vld [vmem:[#allocation2 + $0x290] sm:$0xff]
    %v116 = vld [vmem:[#allocation2 + $0x298] sm:$0xff]
    %v117 = vld [vmem:[#allocation2 + $0x2a0] sm:$0xff]
    %v118 = vld [vmem:[#allocation2 + $0x2a8] sm:$0xff]
    %v119 = vld [vmem:[#allocation2 + $0x2b0] sm:$0xff]
    %v120 = vld [vmem:[#allocation2 + $0x2b8] sm:$0xff]
    %v121 = vld [vmem:[#allocation2 + $0x2c0] sm:$0xff]
    %v122 = vld [vmem:[#allocation2 + $0x2c8] sm:$0xff]
    %v123 = vld [vmem:[#allocation2 + $0x2d0] sm:$0xff]
    %v124 = vld [vmem:[#allocation2 + $0x2d8] sm:$0xff]
    %v125 = vld [vmem:[#allocation2 + $0x2e0] sm:$0xff]
    %v126 = vld [vmem:[#allocation2 + $0x2e8] sm:$0xff]
    %v127 = vld [vmem:[#allocation2 + $0x2f0] sm:$0xff]
    %v128 = vld [vmem:[#allocation2 + $0x2f8] sm:$0xff]
    %v129 = vld [vmem:[#allocation2 + $0x300] sm:$0xff]
    %v130 = vld [vmem:[#allocation2 + $0x308] sm:$0xff]
    %v131 = vld [vmem:[#allocation2 + $0x310] sm:$0xff]
    %v132 = vld [vmem:[#allocation2 + $0x318] sm:$0xff]
    %v133 = vld [vmem:[#allocation2 + $0x320] sm:$0xff]
    %v134 = vld [vmem:[#allocation2 + $0x328] sm:$0xff]
    %v135 = vld [vmem:[#allocation2 + $0x330] sm:$0xff]
    %v136 = vld [vmem:[#allocation2 + $0x338] sm:$0xff]
    %v137 = vld [vmem:[#allocation2 + $0x340] sm:$0xff]
    %v138 = vld [vmem:[#allocation2 + $0x348] sm:$0xff]
    %v139 = vld [vmem:[#allocation2 + $0x350] sm:$0xff]
    %v140 = vld [vmem:[#allocation2 + $0x358] sm:$0xff]
    %v141 = vld [vmem:[#allocation2 + $0x360] sm:$0xff]
    %v142 = vld [vmem:[#allocation2 + $0x368] sm:$0xff]
    %v143 = vld [vmem:[#allocation2 + $0x370] sm:$0xff]
    %v144 = vld [vmem:[#allocation2 + $0x378] sm:$0xff]
    %v145 = vld [vmem:[#allocation2 + $0x380] sm:$0xff]
    %v146 = vld [vmem:[#allocation2 + $0x388] sm:$0xff]
    %v147 = vld [vmem:[#allocation2 + $0x390] sm:$0xff]
    %v148 = vld [vmem:[#allocation2 + $0x398] sm:$0xff]
    %v149 = vld [vmem:[#allocation2 + $0x3a0] sm:$0xff]
    %v150 = vld [vmem:[#allocation2 + $0x3a8] sm:$0xff]
    %v151 = vld [vmem:[#allocation2 + $0x3b0] sm:$0xff]
    %v152 = vld [vmem:[#allocation2 + $0x3b8] sm:$0xff]
    %v153 = vld [vmem:[#allocation2 + $0x3c0] sm:$0xff]
    %v154 = vld [vmem:[#allocation2 + $0x3c8] sm:$0xff]
    %v155 = vld [vmem:[#allocation2 + $0x3d0] sm:$0xff]
    %v156 = vld [vmem:[#allocation2 + $0x3d8] sm:$0xff]
    %v157 = vld [vmem:[#allocation2 + $0x3e0] sm:$0xff]
    %v158 = vld [vmem:[#allocation2 + $0x3e8] sm:$0xff]
    %v159 = vld [vmem:[#allocation2 + $0x3f0] sm:$0xff]
    %v160 = vld [vmem:[#allocation2 + $0x3f8] sm:$0xff]
    %v161 = vld [vmem:[%s1] sm:$0xff]
    %v162 = vld [vmem:[%s1 + $0x8] sm:$0xff]
    %v163 = vld [vmem:[%s1 + $0x10] sm:$0xff]
    %v164 = vld [vmem:[%s1 + $0x18] sm:$0xff]
    %v165 = vld [vmem:[%s1 + $0x20] sm:$0xff]
    %v166 = vld [vmem:[%s1 + $0x28] sm:$0xff]
    %v167 = vld [vmem:[%s1 + $0x30] sm:$0xff]
    %v168 = vld [vmem:[%s1 + $0x38] sm:$0xff]
    %v169 = vld [vmem:[%s1 + $0x40] sm:$0xff]
    %v170 = vld [vmem:[%s1 + $0x48] sm:$0xff]
    %v171 = vld [vmem:[%s1 + $0x50] sm:$0xff]
    %v172 = vld [vmem:[%s1 + $0x58] sm:$0xff]
    %v173 = vld [vmem:[%s1 + $0x60] sm:$0xff]
    %v174 = vld [vmem:[%s1 + $0x68] sm:$0xff]
    %v175 = vld [vmem:[%s1 + $0x70] sm:$0xff]
    %v176 = vld [vmem:[%s1 + $0x78] sm:$0xff]
    %177 = vmatpush.msra.mxu0 %v176
    %178 = vmatpush.msra.mxu0 %v175
    %179 = vmatpush.msra.mxu0 %v174
    %180 = vmatpush.msra.mxu0 %v173
    %181 = vmatpush.msra.mxu0 %v172
    %182 = vmatpush.msra.mxu0 %v171
    %183 = vmatpush.msra.mxu0 %v170
    %184 = vmatpush.msra.mxu0 %v169
    %185 = vmatpush.msra.mxu0 %v168
    %186 = vmatpush.msra.mxu0 %v167
    %187 = vmatpush.msra.mxu0 %v166
    %188 = vmatpush.msra.mxu0 %v165
    %189 = vmatpush.msra.mxu0 %v164
    %190 = vmatpush.msra.mxu0 %v163
    %191 = vmatpush.msra.mxu0 %v162
    %192 = vmatpush.msra.mxu0 %v161
    %193 = vmatmul.f32.gmra.mxu0 %v33
    %v194 = vpop.f32.mrf.mxu0
    %v195 = vadd.f32 0.0, %v194
    %196 = vmatmul.f32.gmra.mxu0 %v34
    %v197 = vpop.f32.mrf.mxu0
    %v198 = vadd.f32 0.0, %v197
    %199 = vmatmul.f32.gmra.mxu0 %v35
    %v200 = vpop.f32.mrf.mxu0
    %v201 = vadd.f32 0.0, %v200
    %202 = vmatmul.f32.gmra.mxu0 %v36
    %v203 = vpop.f32.mrf.mxu0
    %v204 = vadd.f32 0.0, %v203
    %205 = vmatmul.f32.gmra.mxu0 %v37
    %v206 = vpop.f32.mrf.mxu0
    %v207 = vadd.f32 0.0, %v206
    %208 = vmatmul.f32.gmra.mxu0 %v38
    %v209 = vpop.f32.mrf.mxu0
    %v210 = vadd.f32 0.0, %v209
    %211 = vmatmul.f32.gmra.mxu0 %v39
    %v212 = vpop.f32.mrf.mxu0
    %v213 = vadd.f32 0.0, %v212
    %214 = vmatmul.f32.gmra.mxu0 %v40
    %v215 = vpop.f32.mrf.mxu0
    %v216 = vadd.f32 0.0, %v215
    %217 = vmatmul.f32.gmra.mxu0 %v41
    %v218 = vpop.f32.mrf.mxu0
    %v219 = vadd.f32 0.0, %v218
    %220 = vmatmul.f32.gmra.mxu0 %v42
    %v221 = vpop.f32.mrf.mxu0
    %v222 = vadd.f32 0.0, %v221
    %223 = vmatmul.f32.gmra.mxu0 %v43
    %v224 = vpop.f32.mrf.mxu0
    %v225 = vadd.f32 0.0, %v224
    %226 = vmatmul.f32.gmra.mxu0 %v44
    %v227 = vpop.f32.mrf.mxu0
    %v228 = vadd.f32 0.0, %v227
    %229 = vmatmul.f32.gmra.mxu0 %v45
    %v230 = vpop.f32.mrf.mxu0
    %v231 = vadd.f32 0.0, %v230
    %232 = vmatmul.f32.gmra.mxu0 %v46
    %v233 = vpop.f32.mrf.mxu0
    %v234 = vadd.f32 0.0, %v233
    %235 = vmatmul.f32.gmra.mxu0 %v47
    %v236 = vpop.f32.mrf.mxu0
    %v237 = vadd.f32 0.0, %v236
    %238 = vmatmul.f32.gmra.mxu0 %v48
    %v239 = vpop.f32.mrf.mxu0
    %v240 = vadd.f32 0.0, %v239
    %241 = vmatmul.f32.gmra.mxu0 %v49
    %v242 = vpop.f32.mrf.mxu0
    %v243 = vadd.f32 0.0, %v242
    %244 = vmatmul.f32.gmra.mxu0 %v50
    %v245 = vpop.f32.mrf.mxu0
    %v246 = vadd.f32 0.0, %v245
    %247 = vmatmul.f32.gmra.mxu0 %v51
    %v248 = vpop.f32.mrf.mxu0
    %v249 = vadd.f32 0.0, %v248
    %250 = vmatmul.f32.gmra.mxu0 %v52
    %v251 = vpop.f32.mrf.mxu0
    %v252 = vadd.f32 0.0, %v251
    %253 = vmatmul.f32.gmra.mxu0 %v53
    %v254 = vpop.f32.mrf.mxu0
    %v255 = vadd.f32 0.0, %v254
    %256 = vmatmul.f32.gmra.mxu0 %v54
    %v257 = vpop.f32.mrf.mxu0
    %v258 = vadd.f32 0.0, %v257
    %259 = vmatmul.f32.gmra.mxu0 %v55
    %v260 = vpop.f32.mrf.mxu0
    %v261 = vadd.f32 0.0, %v260
    %262 = vmatmul.f32.gmra.mxu0 %v56
    %v263 = vpop.f32.mrf.mxu0
    %v264 = vadd.f32 0.0, %v263
    %265 = vmatmul.f32.gmra.mxu0 %v57
    %v266 = vpop.f32.mrf.mxu0
    %v267 = vadd.f32 0.0, %v266
    %268 = vmatmul.f32.gmra.mxu0 %v58
    %v269 = vpop.f32.mrf.mxu0
    %v270 = vadd.f32 0.0, %v269
    %271 = vmatmul.f32.gmra.mxu0 %v59
    %v272 = vpop.f32.mrf.mxu0
    %v273 = vadd.f32 0.0, %v272
    %274 = vmatmul.f32.gmra.mxu0 %v60
    %v275 = vpop.f32.mrf.mxu0
    %v276 = vadd.f32 0.0, %v275
    %277 = vmatmul.f32.gmra.mxu0 %v61
    %v278 = vpop.f32.mrf.mxu0
    %v279 = vadd.f32 0.0, %v278
    %280 = vmatmul.f32.gmra.mxu0 %v62
    %v281 = vpop.f32.mrf.mxu0
    %v282 = vadd.f32 0.0, %v281
    %283 = vmatmul.f32.gmra.mxu0 %v63
    %v284 = vpop.f32.mrf.mxu0
    %v285 = vadd.f32 0.0, %v284
    %286 = vmatmul.f32.gmra.mxu0 %v64
    %v287 = vpop.f32.mrf.mxu0
    %v288 = vadd.f32 0.0, %v287
    %289 = vmatmul.f32.gmra.mxu0 %v65
    %v290 = vpop.f32.mrf.mxu0
    %v291 = vadd.f32 0.0, %v290
    %292 = vmatmul.f32.gmra.mxu0 %v66
    %v293 = vpop.f32.mrf.mxu0
    %v294 = vadd.f32 0.0, %v293
    %295 = vmatmul.f32.gmra.mxu0 %v67
    %v296 = vpop.f32.mrf.mxu0
    %v297 = vadd.f32 0.0, %v296
    %298 = vmatmul.f32.gmra.mxu0 %v68
    %v299 = vpop.f32.mrf.mxu0
    %v300 = vadd.f32 0.0, %v299
    %301 = vmatmul.f32.gmra.mxu0 %v69
    %v302 = vpop.f32.mrf.mxu0
    %v303 = vadd.f32 0.0, %v302
    %304 = vmatmul.f32.gmra.mxu0 %v70
    %v305 = vpop.f32.mrf.mxu0
    %v306 = vadd.f32 0.0, %v305
    %307 = vmatmul.f32.gmra.mxu0 %v71
    %v308 = vpop.f32.mrf.mxu0
    %v309 = vadd.f32 0.0, %v308
    %310 = vmatmul.f32.gmra.mxu0 %v72
    %v311 = vpop.f32.mrf.mxu0
    %v312 = vadd.f32 0.0, %v311
    %313 = vmatmul.f32.gmra.mxu0 %v73
    %v314 = vpop.f32.mrf.mxu0
    %v315 = vadd.f32 0.0, %v314
    %316 = vmatmul.f32.gmra.mxu0 %v74
    %v317 = vpop.f32.mrf.mxu0
    %v318 = vadd.f32 0.0, %v317
    %319 = vmatmul.f32.gmra.mxu0 %v75
    %v320 = vpop.f32.mrf.mxu0
    %v321 = vadd.f32 0.0, %v320
    %322 = vmatmul.f32.gmra.mxu0 %v76
    %v323 = vpop.f32.mrf.mxu0
    %v324 = vadd.f32 0.0, %v323
    %325 = vmatmul.f32.gmra.mxu0 %v77
    %v326 = vpop.f32.mrf.mxu0
    %v327 = vadd.f32 0.0, %v326
    %328 = vmatmul.f32.gmra.mxu0 %v78
    %v329 = vpop.f32.mrf.mxu0
    %v330 = vadd.f32 0.0, %v329
    %331 = vmatmul.f32.gmra.mxu0 %v79
    %v332 = vpop.f32.mrf.mxu0
    %v333 = vadd.f32 0.0, %v332
    %334 = vmatmul.f32.gmra.mxu0 %v80
    %v335 = vpop.f32.mrf.mxu0
    %v336 = vadd.f32 0.0, %v335
    %337 = vmatmul.f32.gmra.mxu0 %v81
    %v338 = vpop.f32.mrf.mxu0
    %v339 = vadd.f32 0.0, %v338
    %340 = vmatmul.f32.gmra.mxu0 %v82
    %v341 = vpop.f32.mrf.mxu0
    %v342 = vadd.f32 0.0, %v341
    %343 = vmatmul.f32.gmra.mxu0 %v83
    %v344 = vpop.f32.mrf.mxu0
    %v345 = vadd.f32 0.0, %v344
    %346 = vmatmul.f32.gmra.mxu0 %v84
    %v347 = vpop.f32.mrf.mxu0
    %v348 = vadd.f32 0.0, %v347
    %349 = vmatmul.f32.gmra.mxu0 %v85
    %v350 = vpop.f32.mrf.mxu0
    %v351 = vadd.f32 0.0, %v350
    %352 = vmatmul.f32.gmra.mxu0 %v86
    %v353 = vpop.f32.mrf.mxu0
    %v354 = vadd.f32 0.0, %v353
    %355 = vmatmul.f32.gmra.mxu0 %v87
    %v356 = vpop.f32.mrf.mxu0
    %v357 = vadd.f32 0.0, %v356
    %358 = vmatmul.f32.gmra.mxu0 %v88
    %v359 = vpop.f32.mrf.mxu0
    %v360 = vadd.f32 0.0, %v359
    %361 = vmatmul.f32.gmra.mxu0 %v89
    %v362 = vpop.f32.mrf.mxu0
    %v363 = vadd.f32 0.0, %v362
    %364 = vmatmul.f32.gmra.mxu0 %v90
    %v365 = vpop.f32.mrf.mxu0
    %v366 = vadd.f32 0.0, %v365
    %367 = vmatmul.f32.gmra.mxu0 %v91
    %v368 = vpop.f32.mrf.mxu0
    %v369 = vadd.f32 0.0, %v368
    %370 = vmatmul.f32.gmra.mxu0 %v92
    %v371 = vpop.f32.mrf.mxu0
    %v372 = vadd.f32 0.0, %v371
    %373 = vmatmul.f32.gmra.mxu0 %v93
    %v374 = vpop.f32.mrf.mxu0
    %v375 = vadd.f32 0.0, %v374
    %376 = vmatmul.f32.gmra.mxu0 %v94
    %v377 = vpop.f32.mrf.mxu0
    %v378 = vadd.f32 0.0, %v377
    %379 = vmatmul.f32.gmra.mxu0 %v95
    %v380 = vpop.f32.mrf.mxu0
    %v381 = vadd.f32 0.0, %v380
    %382 = vmatmul.f32.gmra.mxu0 %v96
    %v383 = vpop.f32.mrf.mxu0
    %v384 = vadd.f32 0.0, %v383
    %385 = vmatmul.f32.gmra.mxu0 %v97
    %v386 = vpop.f32.mrf.mxu0
    %v387 = vadd.f32 0.0, %v386
    %388 = vmatmul.f32.gmra.mxu0 %v98
    %v389 = vpop.f32.mrf.mxu0
    %v390 = vadd.f32 0.0, %v389
    %391 = vmatmul.f32.gmra.mxu0 %v99
    %v392 = vpop.f32.mrf.mxu0
    %v393 = vadd.f32 0.0, %v392
    %394 = vmatmul.f32.gmra.mxu0 %v100
    %v395 = vpop.f32.mrf.mxu0
    %v396 = vadd.f32 0.0, %v395
    %397 = vmatmul.f32.gmra.mxu0 %v101
    %v398 = vpop.f32.mrf.mxu0
    %v399 = vadd.f32 0.0, %v398
    %400 = vmatmul.f32.gmra.mxu0 %v102
    %v401 = vpop.f32.mrf.mxu0
    %v402 = vadd.f32 0.0, %v401
    %403 = vmatmul.f32.gmra.mxu0 %v103
    %v404 = vpop.f32.mrf.mxu0
    %v405 = vadd.f32 0.0, %v404
    %406 = vmatmul.f32.gmra.mxu0 %v104
    %v407 = vpop.f32.mrf.mxu0
    %v408 = vadd.f32 0.0, %v407
    %409 = vmatmul.f32.gmra.mxu0 %v105
    %v410 = vpop.f32.mrf.mxu0
    %v411 = vadd.f32 0.0, %v410
    %412 = vmatmul.f32.gmra.mxu0 %v106
    %v413 = vpop.f32.mrf.mxu0
    %v414 = vadd.f32 0.0, %v413
    %415 = vmatmul.f32.gmra.mxu0 %v107
    %v416 = vpop.f32.mrf.mxu0
    %v417 = vadd.f32 0.0, %v416
    %418 = vmatmul.f32.gmra.mxu0 %v108
    %v419 = vpop.f32.mrf.mxu0
    %v420 = vadd.f32 0.0, %v419
    %421 = vmatmul.f32.gmra.mxu0 %v109
    %v422 = vpop.f32.mrf.mxu0
    %v423 = vadd.f32 0.0, %v422
    %424 = vmatmul.f32.gmra.mxu0 %v110
    %v425 = vpop.f32.mrf.mxu0
    %v426 = vadd.f32 0.0, %v425
    %427 = vmatmul.f32.gmra.mxu0 %v111
    %v428 = vpop.f32.mrf.mxu0
    %v429 = vadd.f32 0.0, %v428
    %430 = vmatmul.f32.gmra.mxu0 %v112
    %v431 = vpop.f32.mrf.mxu0
    %v432 = vadd.f32 0.0, %v431
    %433 = vmatmul.f32.gmra.mxu0 %v113
    %v434 = vpop.f32.mrf.mxu0
    %v435 = vadd.f32 0.0, %v434
    %436 = vmatmul.f32.gmra.mxu0 %v114
    %v437 = vpop.f32.mrf.mxu0
    %v438 = vadd.f32 0.0, %v437
    %439 = vmatmul.f32.gmra.mxu0 %v115
    %v440 = vpop.f32.mrf.mxu0
    %v441 = vadd.f32 0.0, %v440
    %442 = vmatmul.f32.gmra.mxu0 %v116
    %v443 = vpop.f32.mrf.mxu0
    %v444 = vadd.f32 0.0, %v443
    %445 = vmatmul.f32.gmra.mxu0 %v117
    %v446 = vpop.f32.mrf.mxu0
    %v447 = vadd.f32 0.0, %v446
    %448 = vmatmul.f32.gmra.mxu0 %v118
    %v449 = vpop.f32.mrf.mxu0
    %v450 = vadd.f32 0.0, %v449
    %451 = vmatmul.f32.gmra.mxu0 %v119
    %v452 = vpop.f32.mrf.mxu0
    %v453 = vadd.f32 0.0, %v452
    %454 = vmatmul.f32.gmra.mxu0 %v120
    %v455 = vpop.f32.mrf.mxu0
    %v456 = vadd.f32 0.0, %v455
    %457 = vmatmul.f32.gmra.mxu0 %v121
    %v458 = vpop.f32.mrf.mxu0
    %v459 = vadd.f32 0.0, %v458
    %460 = vmatmul.f32.gmra.mxu0 %v122
    %v461 = vpop.f32.mrf.mxu0
    %v462 = vadd.f32 0.0, %v461
    %463 = vmatmul.f32.gmra.mxu0 %v123
    %v464 = vpop.f32.mrf.mxu0
    %v465 = vadd.f32 0.0, %v464
    %466 = vmatmul.f32.gmra.mxu0 %v124
    %v467 = vpop.f32.mrf.mxu0
    %v468 = vadd.f32 0.0, %v467
    %469 = vmatmul.f32.gmra.mxu0 %v125
    %v470 = vpop.f32.mrf.mxu0
    %v471 = vadd.f32 0.0, %v470
    %472 = vmatmul.f32.gmra.mxu0 %v126
    %v473 = vpop.f32.mrf.mxu0
    %v474 = vadd.f32 0.0, %v473
    %475 = vmatmul.f32.gmra.mxu0 %v127
    %v476 = vpop.f32.mrf.mxu0
    %v477 = vadd.f32 0.0, %v476
    %478 = vmatmul.f32.gmra.mxu0 %v128
    %v479 = vpop.f32.mrf.mxu0
    %v480 = vadd.f32 0.0, %v479
    %481 = vmatmul.f32.gmra.mxu0 %v129
    %v482 = vpop.f32.mrf.mxu0
    %v483 = vadd.f32 0.0, %v482
    %484 = vmatmul.f32.gmra.mxu0 %v130
    %v485 = vpop.f32.mrf.mxu0
    %v486 = vadd.f32 0.0, %v485
    %487 = vmatmul.f32.gmra.mxu0 %v131
    %v488 = vpop.f32.mrf.mxu0
    %v489 = vadd.f32 0.0, %v488
    %490 = vmatmul.f32.gmra.mxu0 %v132
    %v491 = vpop.f32.mrf.mxu0
    %v492 = vadd.f32 0.0, %v491
    %493 = vmatmul.f32.gmra.mxu0 %v133
    %v494 = vpop.f32.mrf.mxu0
    %v495 = vadd.f32 0.0, %v494
    %496 = vmatmul.f32.gmra.mxu0 %v134
    %v497 = vpop.f32.mrf.mxu0
    %v498 = vadd.f32 0.0, %v497
    %499 = vmatmul.f32.gmra.mxu0 %v135
    %v500 = vpop.f32.mrf.mxu0
    %v501 = vadd.f32 0.0, %v500
    %502 = vmatmul.f32.gmra.mxu0 %v136
    %v503 = vpop.f32.mrf.mxu0
    %v504 = vadd.f32 0.0, %v503
    %505 = vmatmul.f32.gmra.mxu0 %v137
    %v506 = vpop.f32.mrf.mxu0
    %v507 = vadd.f32 0.0, %v506
    %508 = vmatmul.f32.gmra.mxu0 %v138
    %v509 = vpop.f32.mrf.mxu0
    %v510 = vadd.f32 0.0, %v509
    %511 = vmatmul.f32.gmra.mxu0 %v139
    %v512 = vpop.f32.mrf.mxu0
    %v513 = vadd.f32 0.0, %v512
    %514 = vmatmul.f32.gmra.mxu0 %v140
    %v515 = vpop.f32.mrf.mxu0
    %v516 = vadd.f32 0.0, %v515
    %517 = vmatmul.f32.gmra.mxu0 %v141
    %v518 = vpop.f32.mrf.mxu0
    %v519 = vadd.f32 0.0, %v518
    %520 = vmatmul.f32.gmra.mxu0 %v142
    %v521 = vpop.f32.mrf.mxu0
    %v522 = vadd.f32 0.0, %v521
    %523 = vmatmul.f32.gmra.mxu0 %v143
    %v524 = vpop.f32.mrf.mxu0
    %v525 = vadd.f32 0.0, %v524
    %526 = vmatmul.f32.gmra.mxu0 %v144
    %v527 = vpop.f32.mrf.mxu0
    %v528 = vadd.f32 0.0, %v527
    %529 = vmatmul.f32.gmra.mxu0 %v145
    %v530 = vpop.f32.mrf.mxu0
    %v531 = vadd.f32 0.0, %v530
    %532 = vmatmul.f32.gmra.mxu0 %v146
    %v533 = vpop.f32.mrf.mxu0
    %v534 = vadd.f32 0.0, %v533
    %535 = vmatmul.f32.gmra.mxu0 %v147
    %v536 = vpop.f32.mrf.mxu0
    %v537 = vadd.f32 0.0, %v536
    %538 = vmatmul.f32.gmra.mxu0 %v148
    %v539 = vpop.f32.mrf.mxu0
    %v540 = vadd.f32 0.0, %v539
    %541 = vmatmul.f32.gmra.mxu0 %v149
    %v542 = vpop.f32.mrf.mxu0
    %v543 = vadd.f32 0.0, %v542
    %544 = vmatmul.f32.gmra.mxu0 %v150
    %v545 = vpop.f32.mrf.mxu0
    %v546 = vadd.f32 0.0, %v545
    %547 = vmatmul.f32.gmra.mxu0 %v151
    %v548 = vpop.f32.mrf.mxu0
    %v549 = vadd.f32 0.0, %v548
    %550 = vmatmul.f32.gmra.mxu0 %v152
    %v551 = vpop.f32.mrf.mxu0
    %v552 = vadd.f32 0.0, %v551
    %553 = vmatmul.f32.gmra.mxu0 %v153
    %v554 = vpop.f32.mrf.mxu0
    %v555 = vadd.f32 0.0, %v554
    %556 = vmatmul.f32.gmra.mxu0 %v154
    %v557 = vpop.f32.mrf.mxu0
    %v558 = vadd.f32 0.0, %v557
    %559 = vmatmul.f32.gmra.mxu0 %v155
    %v560 = vpop.f32.mrf.mxu0
    %v561 = vadd.f32 0.0, %v560
    %562 = vmatmul.f32.gmra.mxu0 %v156
    %v563 = vpop.f32.mrf.mxu0
    %v564 = vadd.f32 0.0, %v563
    %565 = vmatmul.f32.gmra.mxu0 %v157
    %v566 = vpop.f32.mrf.mxu0
    %v567 = vadd.f32 0.0, %v566
    %568 = vmatmul.f32.gmra.mxu0 %v158
    %v569 = vpop.f32.mrf.mxu0
    %v570 = vadd.f32 0.0, %v569
    %571 = vmatmul.f32.gmra.mxu0 %v159
    %v572 = vpop.f32.mrf.mxu0
    %v573 = vadd.f32 0.0, %v572
    %574 = vmatmul.f32.gmra.mxu0 %v160
    %v575 = vpop.f32.mrf.mxu0
    %v576 = vadd.f32 0.0, %v575
    %577 = vdwg.mxu0
    %vm578 = vcmp.ge.f32.partialorder %v195, 0.0
    %vm579 = vcmp.ge.f32.partialorder %v198, 0.0
    %vm580 = vcmp.ge.f32.partialorder %v201, 0.0
    %vm581 = vcmp.ge.f32.partialorder %v204, 0.0
    %vm582 = vcmp.ge.f32.partialorder %v207, 0.0
    %vm583 = vcmp.ge.f32.partialorder %v210, 0.0
    %vm584 = vcmp.ge.f32.partialorder %v213, 0.0
    %vm585 = vcmp.ge.f32.partialorder %v216, 0.0
    %vm586 = vcmp.ge.f32.partialorder %v219, 0.0
    %vm587 = vcmp.ge.f32.partialorder %v222, 0.0
    %vm588 = vcmp.ge.f32.partialorder %v225, 0.0
    %vm589 = vcmp.ge.f32.partialorder %v228, 0.0
    %vm590 = vcmp.ge.f32.partialorder %v231, 0.0
    %vm591 = vcmp.ge.f32.partialorder %v234, 0.0
    %vm592 = vcmp.ge.f32.partialorder %v237, 0.0
    %vm593 = vcmp.ge.f32.partialorder %v240, 0.0
    %vm594 = vcmp.ge.f32.partialorder %v243, 0.0
    %vm595 = vcmp.ge.f32.partialorder %v246, 0.0
    %vm596 = vcmp.ge.f32.partialorder %v249, 0.0
    %vm597 = vcmp.ge.f32.partialorder %v252, 0.0
    %vm598 = vcmp.ge.f32.partialorder %v255, 0.0
    %vm599 = vcmp.ge.f32.partialorder %v258, 0.0
    %vm600 = vcmp.ge.f32.partialorder %v261, 0.0
    %vm601 = vcmp.ge.f32.partialorder %v264, 0.0
    %vm602 = vcmp.ge.f32.partialorder %v267, 0.0
    %vm603 = vcmp.ge.f32.partialorder %v270, 0.0
    %vm604 = vcmp.ge.f32.partialorder %v273, 0.0
    %vm605 = vcmp.ge.f32.partialorder %v276, 0.0
    %vm606 = vcmp.ge.f32.partialorder %v279, 0.0
    %vm607 = vcmp.ge.f32.partialorder %v282, 0.0
    %vm608 = vcmp.ge.f32.partialorder %v285, 0.0
    %vm609 = vcmp.ge.f32.partialorder %v288, 0.0
    %vm610 = vcmp.ge.f32.partialorder %v291, 0.0
    %vm611 = vcmp.ge.f32.partialorder %v294, 0.0
    %vm612 = vcmp.ge.f32.partialorder %v297, 0.0
    %vm613 = vcmp.ge.f32.partialorder %v300, 0.0
    %vm614 = vcmp.ge.f32.partialorder %v303, 0.0
    %vm615 = vcmp.ge.f32.partialorder %v306, 0.0
    %vm616 = vcmp.ge.f32.partialorder %v309, 0.0
    %vm617 = vcmp.ge.f32.partialorder %v312, 0.0
    %vm618 = vcmp.ge.f32.partialorder %v315, 0.0
    %vm619 = vcmp.ge.f32.partialorder %v318, 0.0
    %vm620 = vcmp.ge.f32.partialorder %v321, 0.0
    %vm621 = vcmp.ge.f32.partialorder %v324, 0.0
    %vm622 = vcmp.ge.f32.partialorder %v327, 0.0
    %vm623 = vcmp.ge.f32.partialorder %v330, 0.0
    %vm624 = vcmp.ge.f32.partialorder %v333, 0.0
    %vm625 = vcmp.ge.f32.partialorder %v336, 0.0
    %vm626 = vcmp.ge.f32.partialorder %v339, 0.0
    %vm627 = vcmp.ge.f32.partialorder %v342, 0.0
    %vm628 = vcmp.ge.f32.partialorder %v345, 0.0
    %vm629 = vcmp.ge.f32.partialorder %v348, 0.0
    %vm630 = vcmp.ge.f32.partialorder %v351, 0.0
    %vm631 = vcmp.ge.f32.partialorder %v354, 0.0
    %vm632 = vcmp.ge.f32.partialorder %v357, 0.0
    %vm633 = vcmp.ge.f32.partialorder %v360, 0.0
    %vm634 = vcmp.ge.f32.partialorder %v363, 0.0
    %vm635 = vcmp.ge.f32.partialorder %v366, 0.0
    %vm636 = vcmp.ge.f32.partialorder %v369, 0.0
    %vm637 = vcmp.ge.f32.partialorder %v372, 0.0
    %vm638 = vcmp.ge.f32.partialorder %v375, 0.0
    %vm639 = vcmp.ge.f32.partialorder %v378, 0.0
    %vm640 = vcmp.ge.f32.partialorder %v381, 0.0
    %vm641 = vcmp.ge.f32.partialorder %v384, 0.0
    %vm642 = vcmp.ge.f32.partialorder %v387, 0.0
    %vm643 = vcmp.ge.f32.partialorder %v390, 0.0
    %vm644 = vcmp.ge.f32.partialorder %v393, 0.0
    %vm645 = vcmp.ge.f32.partialorder %v396, 0.0
    %vm646 = vcmp.ge.f32.partialorder %v399, 0.0
    %vm647 = vcmp.ge.f32.partialorder %v402, 0.0
    %vm648 = vcmp.ge.f32.partialorder %v405, 0.0
    %vm649 = vcmp.ge.f32.partialorder %v408, 0.0
    %vm650 = vcmp.ge.f32.partialorder %v411, 0.0
    %vm651 = vcmp.ge.f32.partialorder %v414, 0.0
    %vm652 = vcmp.ge.f32.partialorder %v417, 0.0
    %vm653 = vcmp.ge.f32.partialorder %v420, 0.0
    %vm654 = vcmp.ge.f32.partialorder %v423, 0.0
    %vm655 = vcmp.ge.f32.partialorder %v426, 0.0
    %vm656 = vcmp.ge.f32.partialorder %v429, 0.0
    %vm657 = vcmp.ge.f32.partialorder %v432, 0.0
    %vm658 = vcmp.ge.f32.partialorder %v435, 0.0
    %vm659 = vcmp.ge.f32.partialorder %v438, 0.0
    %vm660 = vcmp.ge.f32.partialorder %v441, 0.0
    %vm661 = vcmp.ge.f32.partialorder %v444, 0.0
    %vm662 = vcmp.ge.f32.partialorder %v447, 0.0
    %vm663 = vcmp.ge.f32.partialorder %v450, 0.0
    %vm664 = vcmp.ge.f32.partialorder %v453, 0.0
    %vm665 = vcmp.ge.f32.partialorder %v456, 0.0
    %vm666 = vcmp.ge.f32.partialorder %v459, 0.0
    %vm667 = vcmp.ge.f32.partialorder %v462, 0.0
    %vm668 = vcmp.ge.f32.partialorder %v465, 0.0
    %vm669 = vcmp.ge.f32.partialorder %v468, 0.0
    %vm670 = vcmp.ge.f32.partialorder %v471, 0.0
    %vm671 = vcmp.ge.f32.partialorder %v474, 0.0
    %vm672 = vcmp.ge.f32.partialorder %v477, 0.0
    %vm673 = vcmp.ge.f32.partialorder %v480, 0.0
    %vm674 = vcmp.ge.f32.partialorder %v483, 0.0
    %vm675 = vcmp.ge.f32.partialorder %v486, 0.0
    %vm676 = vcmp.ge.f32.partialorder %v489, 0.0
    %vm677 = vcmp.ge.f32.partialorder %v492, 0.0
    %vm678 = vcmp.ge.f32.partialorder %v495, 0.0
    %vm679 = vcmp.ge.f32.partialorder %v498, 0.0
    %vm680 = vcmp.ge.f32.partialorder %v501, 0.0
    %vm681 = vcmp.ge.f32.partialorder %v504, 0.0
    %vm682 = vcmp.ge.f32.partialorder %v507, 0.0
    %vm683 = vcmp.ge.f32.partialorder %v510, 0.0
    %vm684 = vcmp.ge.f32.partialorder %v513, 0.0
    %vm685 = vcmp.ge.f32.partialorder %v516, 0.0
    %vm686 = vcmp.ge.f32.partialorder %v519, 0.0
    %vm687 = vcmp.ge.f32.partialorder %v522, 0.0
    %vm688 = vcmp.ge.f32.partialorder %v525, 0.0
    %vm689 = vcmp.ge.f32.partialorder %v528, 0.0
    %vm690 = vcmp.ge.f32.partialorder %v531, 0.0
    %vm691 = vcmp.ge.f32.partialorder %v534, 0.0
    %vm692 = vcmp.ge.f32.partialorder %v537, 0.0
    %vm693 = vcmp.ge.f32.partialorder %v540, 0.0
    %vm694 = vcmp.ge.f32.partialorder %v543, 0.0
    %vm695 = vcmp.ge.f32.partialorder %v546, 0.0
    %vm696 = vcmp.ge.f32.partialorder %v549, 0.0
    %vm697 = vcmp.ge.f32.partialorder %v552, 0.0
    %vm698 = vcmp.ge.f32.partialorder %v555, 0.0
    %vm699 = vcmp.ge.f32.partialorder %v558, 0.0
    %vm700 = vcmp.ge.f32.partialorder %v561, 0.0
    %vm701 = vcmp.ge.f32.partialorder %v564, 0.0
    %vm702 = vcmp.ge.f32.partialorder %v567, 0.0
    %vm703 = vcmp.ge.f32.partialorder %v570, 0.0
    %vm704 = vcmp.ge.f32.partialorder %v573, 0.0
    %vm705 = vcmp.ge.f32.partialorder %v576, 0.0
    %v706 = vmul.f32 %v195, 0.01
    %v707 = vmul.f32 %v198, 0.01
    %v708 = vmul.f32 %v201, 0.01
    %v709 = vmul.f32 %v204, 0.01
    %v710 = vmul.f32 %v207, 0.01
    %v711 = vmul.f32 %v210, 0.01
    %v712 = vmul.f32 %v213, 0.01
    %v713 = vmul.f32 %v216, 0.01
    %v714 = vmul.f32 %v219, 0.01
    %v715 = vmul.f32 %v222, 0.01
    %v716 = vmul.f32 %v225, 0.01
    %v717 = vmul.f32 %v228, 0.01
    %v718 = vmul.f32 %v231, 0.01
    %v719 = vmul.f32 %v234, 0.01
    %v720 = vmul.f32 %v237, 0.01
    %v721 = vmul.f32 %v240, 0.01
    %v722 = vmul.f32 %v243, 0.01
    %v723 = vmul.f32 %v246, 0.01
    %v724 = vmul.f32 %v249, 0.01
    %v725 = vmul.f32 %v252, 0.01
    %v726 = vmul.f32 %v255, 0.01
    %v727 = vmul.f32 %v258, 0.01
    %v728 = vmul.f32 %v261, 0.01
    %v729 = vmul.f32 %v264, 0.01
    %v730 = vmul.f32 %v267, 0.01
    %v731 = vmul.f32 %v270, 0.01
    %v732 = vmul.f32 %v273, 0.01
    %v733 = vmul.f32 %v276, 0.01
    %v734 = vmul.f32 %v279, 0.01
    %v735 = vmul.f32 %v282, 0.01
    %v736 = vmul.f32 %v285, 0.01
    %v737 = vmul.f32 %v288, 0.01
    %v738 = vmul.f32 %v291, 0.01
    %v739 = vmul.f32 %v294, 0.01
    %v740 = vmul.f32 %v297, 0.01
    %v741 = vmul.f32 %v300, 0.01
    %v742 = vmul.f32 %v303, 0.01
    %v743 = vmul.f32 %v306, 0.01
    %v744 = vmul.f32 %v309, 0.01
    %v745 = vmul.f32 %v312, 0.01
    %v746 = vmul.f32 %v315, 0.01
    %v747 = vmul.f32 %v318, 0.01
    %v748 = vmul.f32 %v321, 0.01
    %v749 = vmul.f32 %v324, 0.01
    %v750 = vmul.f32 %v327, 0.01
    %v751 = vmul.f32 %v330, 0.01
    %v752 = vmul.f32 %v333, 0.01
    %v753 = vmul.f32 %v336, 0.01
    %v754 = vmul.f32 %v339, 0.01
    %v755 = vmul.f32 %v342, 0.01
    %v756 = vmul.f32 %v345, 0.01
    %v757 = vmul.f32 %v348, 0.01
    %v758 = vmul.f32 %v351, 0.01
    %v759 = vmul.f32 %v354, 0.01
    %v760 = vmul.f32 %v357, 0.01
    %v761 = vmul.f32 %v360, 0.01
    %v762 = vmul.f32 %v363, 0.01
    %v763 = vmul.f32 %v366, 0.01
    %v764 = vmul.f32 %v369, 0.01
    %v765 = vmul.f32 %v372, 0.01
    %v766 = vmul.f32 %v375, 0.01
    %v767 = vmul.f32 %v378, 0.01
    %v768 = vmul.f32 %v381, 0.01
    %v769 = vmul.f32 %v384, 0.01
    %v770 = vmul.f32 %v387, 0.01
    %v771 = vmul.f32 %v390, 0.01
    %v772 = vmul.f32 %v393, 0.01
    %v773 = vmul.f32 %v396, 0.01
    %v774 = vmul.f32 %v399, 0.01
    %v775 = vmul.f32 %v402, 0.01
    %v776 = vmul.f32 %v405, 0.01
    %v777 = vmul.f32 %v408, 0.01
    %v778 = vmul.f32 %v411, 0.01
    %v779 = vmul.f32 %v414, 0.01
    %v780 = vmul.f32 %v417, 0.01
    %v781 = vmul.f32 %v420, 0.01
    %v782 = vmul.f32 %v423, 0.01
    %v783 = vmul.f32 %v426, 0.01
    %v784 = vmul.f32 %v429, 0.01
    %v785 = vmul.f32 %v432, 0.01
    %v786 = vmul.f32 %v435, 0.01
    %v787 = vmul.f32 %v438, 0.01
    %v788 = vmul.f32 %v441, 0.01
    %v789 = vmul.f32 %v444, 0.01
    %v790 = vmul.f32 %v447, 0.01
    %v791 = vmul.f32 %v450, 0.01
    %v792 = vmul.f32 %v453, 0.01
    %v793 = vmul.f32 %v456, 0.01
    %v794 = vmul.f32 %v459, 0.01
    %v795 = vmul.f32 %v462, 0.01
    %v796 = vmul.f32 %v465, 0.01
    %v797 = vmul.f32 %v468, 0.01
    %v798 = vmul.f32 %v471, 0.01
    %v799 = vmul.f32 %v474, 0.01
    %v800 = vmul.f32 %v477, 0.01
    %v801 = vmul.f32 %v480, 0.01
    %v802 = vmul.f32 %v483, 0.01
    %v803 = vmul.f32 %v486, 0.01
    %v804 = vmul.f32 %v489, 0.01
    %v805 = vmul.f32 %v492, 0.01
    %v806 = vmul.f32 %v495, 0.01
    %v807 = vmul.f32 %v498, 0.01
    %v808 = vmul.f32 %v501, 0.01
    %v809 = vmul.f32 %v504, 0.01
    %v810 = vmul.f32 %v507, 0.01
    %v811 = vmul.f32 %v510, 0.01
    %v812 = vmul.f32 %v513, 0.01
    %v813 = vmul.f32 %v516, 0.01
    %v814 = vmul.f32 %v519, 0.01
    %v815 = vmul.f32 %v522, 0.01
    %v816 = vmul.f32 %v525, 0.01
    %v817 = vmul.f32 %v528, 0.01
    %v818 = vmul.f32 %v531, 0.01
    %v819 = vmul.f32 %v534, 0.01
    %v820 = vmul.f32 %v537, 0.01
    %v821 = vmul.f32 %v540, 0.01
    %v822 = vmul.f32 %v543, 0.01
    %v823 = vmul.f32 %v546, 0.01
    %v824 = vmul.f32 %v549, 0.01
    %v825 = vmul.f32 %v552, 0.01
    %v826 = vmul.f32 %v555, 0.01
    %v827 = vmul.f32 %v558, 0.01
    %v828 = vmul.f32 %v561, 0.01
    %v829 = vmul.f32 %v564, 0.01
    %v830 = vmul.f32 %v567, 0.01
    %v831 = vmul.f32 %v570, 0.01
    %v832 = vmul.f32 %v573, 0.01
    %v833 = vmul.f32 %v576, 0.01
    %v834 = vsel %vm578, %v195, %v706
    %v835 = vsel %vm579, %v198, %v707
    %v836 = vsel %vm580, %v201, %v708
    %v837 = vsel %vm581, %v204, %v709
    %v838 = vsel %vm582, %v207, %v710
    %v839 = vsel %vm583, %v210, %v711
    %v840 = vsel %vm584, %v213, %v712
    %v841 = vsel %vm585, %v216, %v713
    %v842 = vsel %vm586, %v219, %v714
    %v843 = vsel %vm587, %v222, %v715
    %v844 = vsel %vm588, %v225, %v716
    %v845 = vsel %vm589, %v228, %v717
    %v846 = vsel %vm590, %v231, %v718
    %v847 = vsel %vm591, %v234, %v719
    %v848 = vsel %vm592, %v237, %v720
    %v849 = vsel %vm593, %v240, %v721
    %v850 = vsel %vm594, %v243, %v722
    %v851 = vsel %vm595, %v246, %v723
    %v852 = vsel %vm596, %v249, %v724
    %v853 = vsel %vm597, %v252, %v725
    %v854 = vsel %vm598, %v255, %v726
    %v855 = vsel %vm599, %v258, %v727
    %v856 = vsel %vm600, %v261, %v728
    %v857 = vsel %vm601, %v264, %v729
    %v858 = vsel %vm602, %v267, %v730
    %v859 = vsel %vm603, %v270, %v731
    %v860 = vsel %vm604, %v273, %v732
    %v861 = vsel %vm605, %v276, %v733
    %v862 = vsel %vm606, %v279, %v734
    %v863 = vsel %vm607, %v282, %v735
    %v864 = vsel %vm608, %v285, %v736
    %v865 = vsel %vm609, %v288, %v737
    %v866 = vsel %vm610, %v291, %v738
    %v867 = vsel %vm611, %v294, %v739
    %v868 = vsel %vm612, %v297, %v740
    %v869 = vsel %vm613, %v300, %v741
    %v870 = vsel %vm614, %v303, %v742
    %v871 = vsel %vm615, %v306, %v743
    %v872 = vsel %vm616, %v309, %v744
    %v873 = vsel %vm617, %v312, %v745
    %v874 = vsel %vm618, %v315, %v746
    %v875 = vsel %vm619, %v318, %v747
    %v876 = vsel %vm620, %v321, %v748
    %v877 = vsel %vm621, %v324, %v749
    %v878 = vsel %vm622, %v327, %v750
    %v879 = vsel %vm623, %v330, %v751
    %v880 = vsel %vm624, %v333, %v752
    %v881 = vsel %vm625, %v336, %v753
    %v882 = vsel %vm626, %v339, %v754
    %v883 = vsel %vm627, %v342, %v755
    %v884 = vsel %vm628, %v345, %v756
    %v885 = vsel %vm629, %v348, %v757
    %v886 = vsel %vm630, %v351, %v758
    %v887 = vsel %vm631, %v354, %v759
    %v888 = vsel %vm632, %v357, %v760
    %v889 = vsel %vm633, %v360, %v761
    %v890 = vsel %vm634, %v363, %v762
    %v891 = vsel %vm635, %v366, %v763
    %v892 = vsel %vm636, %v369, %v764
    %v893 = vsel %vm637, %v372, %v765
    %v894 = vsel %vm638, %v375, %v766
    %v895 = vsel %vm639, %v378, %v767
    %v896 = vsel %vm640, %v381, %v768
    %v897 = vsel %vm641, %v384, %v769
    %v898 = vsel %vm642, %v387, %v770
    %v899 = vsel %vm643, %v390, %v771
    %v900 = vsel %vm644, %v393, %v772
    %v901 = vsel %vm645, %v396, %v773
    %v902 = vsel %vm646, %v399, %v774
    %v903 = vsel %vm647, %v402, %v775
    %v904 = vsel %vm648, %v405, %v776
    %v905 = vsel %vm649, %v408, %v777
    %v906 = vsel %vm650, %v411, %v778
    %v907 = vsel %vm651, %v414, %v779
    %v908 = vsel %vm652, %v417, %v780
    %v909 = vsel %vm653, %v420, %v781
    %v910 = vsel %vm654, %v423, %v782
    %v911 = vsel %vm655, %v426, %v783
    %v912 = vsel %vm656, %v429, %v784
    %v913 = vsel %vm657, %v432, %v785
    %v914 = vsel %vm658, %v435, %v786
    %v915 = vsel %vm659, %v438, %v787
    %v916 = vsel %vm660, %v441, %v788
    %v917 = vsel %vm661, %v444, %v789
    %v918 = vsel %vm662, %v447, %v790
    %v919 = vsel %vm663, %v450, %v791
    %v920 = vsel %vm664, %v453, %v792
    %v921 = vsel %vm665, %v456, %v793
    %v922 = vsel %vm666, %v459, %v794
    %v923 = vsel %vm667, %v462, %v795
    %v924 = vsel %vm668, %v465, %v796
    %v925 = vsel %vm669, %v468, %v797
    %v926 = vsel %vm670, %v471, %v798
    %v927 = vsel %vm671, %v474, %v799
    %v928 = vsel %vm672, %v477, %v800
    %v929 = vsel %vm673, %v480, %v801
    %v930 = vsel %vm674, %v483, %v802
    %v931 = vsel %vm675, %v486, %v803
    %v932 = vsel %vm676, %v489, %v804
    %v933 = vsel %vm677, %v492, %v805
    %v934 = vsel %vm678, %v495, %v806
    %v935 = vsel %vm679, %v498, %v807
    %v936 = vsel %vm680, %v501, %v808
    %v937 = vsel %vm681, %v504, %v809
    %v938 = vsel %vm682, %v507, %v810
    %v939 = vsel %vm683, %v510, %v811
    %v940 = vsel %vm684, %v513, %v812
    %v941 = vsel %vm685, %v516, %v813
    %v942 = vsel %vm686, %v519, %v814
    %v943 = vsel %vm687, %v522, %v815
    %v944 = vsel %vm688, %v525, %v816
    %v945 = vsel %vm689, %v528, %v817
    %v946 = vsel %vm690, %v531, %v818
    %v947 = vsel %vm691, %v534, %v819
    %v948 = vsel %vm692, %v537, %v820
    %v949 = vsel %vm693, %v540, %v821
    %v950 = vsel %vm694, %v543, %v822
    %v951 = vsel %vm695, %v546, %v823
    %v952 = vsel %vm696, %v549, %v824
    %v953 = vsel %vm697, %v552, %v825
    %v954 = vsel %vm698, %v555, %v826
    %v955 = vsel %vm699, %v558, %v827
    %v956 = vsel %vm700, %v561, %v828
    %v957 = vsel %vm701, %v564, %v829
    %v958 = vsel %vm702, %v567, %v830
    %v959 = vsel %vm703, %v570, %v831
    %v960 = vsel %vm704, %v573, %v832
    %v961 = vsel %vm705, %v576, %v833
    %v962 = vld [vmem:[%s2] sm:$0xff]
    %v963 = vld [vmem:[%s2 + $0x8] sm:$0xff]
    %v964 = vld [vmem:[%s2 + $0x10] sm:$0xff]
    %v965 = vld [vmem:[%s2 + $0x18] sm:$0xff]
    %v966 = vld [vmem:[%s2 + $0x20] sm:$0xff]
    %v967 = vld [vmem:[%s2 + $0x28] sm:$0xff]
    %v968 = vld [vmem:[%s2 + $0x30] sm:$0xff]
    %v969 = vld [vmem:[%s2 + $0x38] sm:$0xff]
    %v970 = vld [vmem:[%s2 + $0x40] sm:$0xff]
    %v971 = vld [vmem:[%s2 + $0x48] sm:$0xff]
    %v972 = vld [vmem:[%s2 + $0x50] sm:$0xff]
    %v973 = vld [vmem:[%s2 + $0x58] sm:$0xff]
    %v974 = vld [vmem:[%s2 + $0x60] sm:$0xff]
    %v975 = vld [vmem:[%s2 + $0x68] sm:$0xff]
    %v976 = vld [vmem:[%s2 + $0x70] sm:$0xff]
    %v977 = vld [vmem:[%s2 + $0x78] sm:$0xff]
    %v978 = vld [vmem:[%s2 + $0x80] sm:$0xff]
    %v979 = vld [vmem:[%s2 + $0x88] sm:$0xff]
    %v980 = vld [vmem:[%s2 + $0x90] sm:$0xff]
    %v981 = vld [vmem:[%s2 + $0x98] sm:$0xff]
    %v982 = vld [vmem:[%s2 + $0xa0] sm:$0xff]
    %v983 = vld [vmem:[%s2 + $0xa8] sm:$0xff]
    %v984 = vld [vmem:[%s2 + $0xb0] sm:$0xff]
    %v985 = vld [vmem:[%s2 + $0xb8] sm:$0xff]
    %v986 = vld [vmem:[%s2 + $0xc0] sm:$0xff]
    %v987 = vld [vmem:[%s2 + $0xc8] sm:$0xff]
    %v988 = vld [vmem:[%s2 + $0xd0] sm:$0xff]
    %v989 = vld [vmem:[%s2 + $0xd8] sm:$0xff]
    %v990 = vld [vmem:[%s2 + $0xe0] sm:$0xff]
    %v991 = vld [vmem:[%s2 + $0xe8] sm:$0xff]
    %v992 = vld [vmem:[%s2 + $0xf0] sm:$0xff]
    %v993 = vld [vmem:[%s2 + $0xf8] sm:$0xff]
    %994 = vmatpush.msra.mxu0 %v992
    %995 = vmatpush.msra.mxu0 %v990
    %996 = vmatpush.msra.mxu0 %v988
    %997 = vmatpush.msra.mxu0 %v986
    %998 = vmatpush.msra.mxu0 %v984
    %999 = vmatpush.msra.mxu0 %v982
    %1000 = vmatpush.msra.mxu0 %v980
    %1001 = vmatpush.msra.mxu0 %v978
    %1002 = vmatpush.msra.mxu0 %v976
    %1003 = vmatpush.msra.mxu0 %v974
    %1004 = vmatpush.msra.mxu0 %v972
    %1005 = vmatpush.msra.mxu0 %v970
    %1006 = vmatpush.msra.mxu0 %v968
    %1007 = vmatpush.msra.mxu0 %v966
    %1008 = vmatpush.msra.mxu0 %v964
    %1009 = vmatpush.msra.mxu0 %v962
    %1010 = vmatmul.f32.gmra.mxu0 %v834
    %v1011 = vpop.f32.mrf.mxu0
    %v1012 = vadd.f32 0.0, %v1011
    %1013 = vmatmul.f32.gmra.mxu0 %v835
    %v1014 = vpop.f32.mrf.mxu0
    %v1015 = vadd.f32 0.0, %v1014
    %1016 = vmatmul.f32.gmra.mxu0 %v836
    %v1017 = vpop.f32.mrf.mxu0
    %v1018 = vadd.f32 0.0, %v1017
    %1019 = vmatmul.f32.gmra.mxu0 %v837
    %v1020 = vpop.f32.mrf.mxu0
    %v1021 = vadd.f32 0.0, %v1020
    %1022 = vmatmul.f32.gmra.mxu0 %v838
    %v1023 = vpop.f32.mrf.mxu0
    %v1024 = vadd.f32 0.0, %v1023
    %1025 = vmatmul.f32.gmra.mxu0 %v839
    %v1026 = vpop.f32.mrf.mxu0
    %v1027 = vadd.f32 0.0, %v1026
    %1028 = vmatmul.f32.gmra.mxu0 %v840
    %v1029 = vpop.f32.mrf.mxu0
    %v1030 = vadd.f32 0.0, %v1029
    %1031 = vmatmul.f32.gmra.mxu0 %v841
    %v1032 = vpop.f32.mrf.mxu0
    %v1033 = vadd.f32 0.0, %v1032
    %1034 = vmatmul.f32.gmra.mxu0 %v842
    %v1035 = vpop.f32.mrf.mxu0
    %v1036 = vadd.f32 0.0, %v1035
    %1037 = vmatmul.f32.gmra.mxu0 %v843
    %v1038 = vpop.f32.mrf.mxu0
    %v1039 = vadd.f32 0.0, %v1038
    %1040 = vmatmul.f32.gmra.mxu0 %v844
    %v1041 = vpop.f32.mrf.mxu0
    %v1042 = vadd.f32 0.0, %v1041
    %1043 = vmatmul.f32.gmra.mxu0 %v845
    %v1044 = vpop.f32.mrf.mxu0
    %v1045 = vadd.f32 0.0, %v1044
    %1046 = vmatmul.f32.gmra.mxu0 %v846
    %v1047 = vpop.f32.mrf.mxu0
    %v1048 = vadd.f32 0.0, %v1047
    %1049 = vmatmul.f32.gmra.mxu0 %v847
    %v1050 = vpop.f32.mrf.mxu0
    %v1051 = vadd.f32 0.0, %v1050
    %1052 = vmatmul.f32.gmra.mxu0 %v848
    %v1053 = vpop.f32.mrf.mxu0
    %v1054 = vadd.f32 0.0, %v1053
    %1055 = vmatmul.f32.gmra.mxu0 %v849
    %v1056 = vpop.f32.mrf.mxu0
    %v1057 = vadd.f32 0.0, %v1056
    %1058 = vmatmul.f32.gmra.mxu0 %v850
    %v1059 = vpop.f32.mrf.mxu0
    %v1060 = vadd.f32 0.0, %v1059
    %1061 = vmatmul.f32.gmra.mxu0 %v851
    %v1062 = vpop.f32.mrf.mxu0
    %v1063 = vadd.f32 0.0, %v1062
    %1064 = vmatmul.f32.gmra.mxu0 %v852
    %v1065 = vpop.f32.mrf.mxu0
    %v1066 = vadd.f32 0.0, %v1065
    %1067 = vmatmul.f32.gmra.mxu0 %v853
    %v1068 = vpop.f32.mrf.mxu0
    %v1069 = vadd.f32 0.0, %v1068
    %1070 = vmatmul.f32.gmra.mxu0 %v854
    %v1071 = vpop.f32.mrf.mxu0
    %v1072 = vadd.f32 0.0, %v1071
    %1073 = vmatmul.f32.gmra.mxu0 %v855
    %v1074 = vpop.f32.mrf.mxu0
    %v1075 = vadd.f32 0.0, %v1074
    %1076 = vmatmul.f32.gmra.mxu0 %v856
    %v1077 = vpop.f32.mrf.mxu0
    %v1078 = vadd.f32 0.0, %v1077
    %1079 = vmatmul.f32.gmra.mxu0 %v857
    %v1080 = vpop.f32.mrf.mxu0
    %v1081 = vadd.f32 0.0, %v1080
    %1082 = vmatmul.f32.gmra.mxu0 %v858
    %v1083 = vpop.f32.mrf.mxu0
    %v1084 = vadd.f32 0.0, %v1083
    %1085 = vmatmul.f32.gmra.mxu0 %v859
    %v1086 = vpop.f32.mrf.mxu0
    %v1087 = vadd.f32 0.0, %v1086
    %1088 = vmatmul.f32.gmra.mxu0 %v860
    %v1089 = vpop.f32.mrf.mxu0
    %v1090 = vadd.f32 0.0, %v1089
    %1091 = vmatmul.f32.gmra.mxu0 %v861
    %v1092 = vpop.f32.mrf.mxu0
    %v1093 = vadd.f32 0.0, %v1092
    %1094 = vmatmul.f32.gmra.mxu0 %v862
    %v1095 = vpop.f32.mrf.mxu0
    %v1096 = vadd.f32 0.0, %v1095
    %1097 = vmatmul.f32.gmra.mxu0 %v863
    %v1098 = vpop.f32.mrf.mxu0
    %v1099 = vadd.f32 0.0, %v1098
    %1100 = vmatmul.f32.gmra.mxu0 %v864
    %v1101 = vpop.f32.mrf.mxu0
    %v1102 = vadd.f32 0.0, %v1101
    %1103 = vmatmul.f32.gmra.mxu0 %v865
    %v1104 = vpop.f32.mrf.mxu0
    %v1105 = vadd.f32 0.0, %v1104
    %1106 = vmatmul.f32.gmra.mxu0 %v866
    %v1107 = vpop.f32.mrf.mxu0
    %v1108 = vadd.f32 0.0, %v1107
    %1109 = vmatmul.f32.gmra.mxu0 %v867
    %v1110 = vpop.f32.mrf.mxu0
    %v1111 = vadd.f32 0.0, %v1110
    %1112 = vmatmul.f32.gmra.mxu0 %v868
    %v1113 = vpop.f32.mrf.mxu0
    %v1114 = vadd.f32 0.0, %v1113
    %1115 = vmatmul.f32.gmra.mxu0 %v869
    %v1116 = vpop.f32.mrf.mxu0
    %v1117 = vadd.f32 0.0, %v1116
    %1118 = vmatmul.f32.gmra.mxu0 %v870
    %v1119 = vpop.f32.mrf.mxu0
    %v1120 = vadd.f32 0.0, %v1119
    %1121 = vmatmul.f32.gmra.mxu0 %v871
    %v1122 = vpop.f32.mrf.mxu0
    %v1123 = vadd.f32 0.0, %v1122
    %1124 = vmatmul.f32.gmra.mxu0 %v872
    %v1125 = vpop.f32.mrf.mxu0
    %v1126 = vadd.f32 0.0, %v1125
    %1127 = vmatmul.f32.gmra.mxu0 %v873
    %v1128 = vpop.f32.mrf.mxu0
    %v1129 = vadd.f32 0.0, %v1128
    %1130 = vmatmul.f32.gmra.mxu0 %v874
    %v1131 = vpop.f32.mrf.mxu0
    %v1132 = vadd.f32 0.0, %v1131
    %1133 = vmatmul.f32.gmra.mxu0 %v875
    %v1134 = vpop.f32.mrf.mxu0
    %v1135 = vadd.f32 0.0, %v1134
    %1136 = vmatmul.f32.gmra.mxu0 %v876
    %v1137 = vpop.f32.mrf.mxu0
    %v1138 = vadd.f32 0.0, %v1137
    %1139 = vmatmul.f32.gmra.mxu0 %v877
    %v1140 = vpop.f32.mrf.mxu0
    %v1141 = vadd.f32 0.0, %v1140
    %1142 = vmatmul.f32.gmra.mxu0 %v878
    %v1143 = vpop.f32.mrf.mxu0
    %v1144 = vadd.f32 0.0, %v1143
    %1145 = vmatmul.f32.gmra.mxu0 %v879
    %v1146 = vpop.f32.mrf.mxu0
    %v1147 = vadd.f32 0.0, %v1146
    %1148 = vmatmul.f32.gmra.mxu0 %v880
    %v1149 = vpop.f32.mrf.mxu0
    %v1150 = vadd.f32 0.0, %v1149
    %1151 = vmatmul.f32.gmra.mxu0 %v881
    %v1152 = vpop.f32.mrf.mxu0
    %v1153 = vadd.f32 0.0, %v1152
    %1154 = vmatmul.f32.gmra.mxu0 %v882
    %v1155 = vpop.f32.mrf.mxu0
    %v1156 = vadd.f32 0.0, %v1155
    %1157 = vmatmul.f32.gmra.mxu0 %v883
    %v1158 = vpop.f32.mrf.mxu0
    %v1159 = vadd.f32 0.0, %v1158
    %1160 = vmatmul.f32.gmra.mxu0 %v884
    %v1161 = vpop.f32.mrf.mxu0
    %v1162 = vadd.f32 0.0, %v1161
    %1163 = vmatmul.f32.gmra.mxu0 %v885
    %v1164 = vpop.f32.mrf.mxu0
    %v1165 = vadd.f32 0.0, %v1164
    %1166 = vmatmul.f32.gmra.mxu0 %v886
    %v1167 = vpop.f32.mrf.mxu0
    %v1168 = vadd.f32 0.0, %v1167
    %1169 = vmatmul.f32.gmra.mxu0 %v887
    %v1170 = vpop.f32.mrf.mxu0
    %v1171 = vadd.f32 0.0, %v1170
    %1172 = vmatmul.f32.gmra.mxu0 %v888
    %v1173 = vpop.f32.mrf.mxu0
    %v1174 = vadd.f32 0.0, %v1173
    %1175 = vmatmul.f32.gmra.mxu0 %v889
    %v1176 = vpop.f32.mrf.mxu0
    %v1177 = vadd.f32 0.0, %v1176
    %1178 = vmatmul.f32.gmra.mxu0 %v890
    %v1179 = vpop.f32.mrf.mxu0
    %v1180 = vadd.f32 0.0, %v1179
    %1181 = vmatmul.f32.gmra.mxu0 %v891
    %v1182 = vpop.f32.mrf.mxu0
    %v1183 = vadd.f32 0.0, %v1182
    %1184 = vmatmul.f32.gmra.mxu0 %v892
    %v1185 = vpop.f32.mrf.mxu0
    %v1186 = vadd.f32 0.0, %v1185
    %1187 = vmatmul.f32.gmra.mxu0 %v893
    %v1188 = vpop.f32.mrf.mxu0
    %v1189 = vadd.f32 0.0, %v1188
    %1190 = vmatmul.f32.gmra.mxu0 %v894
    %v1191 = vpop.f32.mrf.mxu0
    %v1192 = vadd.f32 0.0, %v1191
    %1193 = vmatmul.f32.gmra.mxu0 %v895
    %v1194 = vpop.f32.mrf.mxu0
    %v1195 = vadd.f32 0.0, %v1194
    %1196 = vmatmul.f32.gmra.mxu0 %v896
    %v1197 = vpop.f32.mrf.mxu0
    %v1198 = vadd.f32 0.0, %v1197
    %1199 = vmatmul.f32.gmra.mxu0 %v897
    %v1200 = vpop.f32.mrf.mxu0
    %v1201 = vadd.f32 0.0, %v1200
    %1202 = vmatmul.f32.gmra.mxu0 %v898
    %v1203 = vpop.f32.mrf.mxu0
    %v1204 = vadd.f32 0.0, %v1203
    %1205 = vmatmul.f32.gmra.mxu0 %v899
    %v1206 = vpop.f32.mrf.mxu0
    %v1207 = vadd.f32 0.0, %v1206
    %1208 = vmatmul.f32.gmra.mxu0 %v900
    %v1209 = vpop.f32.mrf.mxu0
    %v1210 = vadd.f32 0.0, %v1209
    %1211 = vmatmul.f32.gmra.mxu0 %v901
    %v1212 = vpop.f32.mrf.mxu0
    %v1213 = vadd.f32 0.0, %v1212
    %1214 = vmatmul.f32.gmra.mxu0 %v902
    %v1215 = vpop.f32.mrf.mxu0
    %v1216 = vadd.f32 0.0, %v1215
    %1217 = vmatmul.f32.gmra.mxu0 %v903
    %v1218 = vpop.f32.mrf.mxu0
    %v1219 = vadd.f32 0.0, %v1218
    %1220 = vmatmul.f32.gmra.mxu0 %v904
    %v1221 = vpop.f32.mrf.mxu0
    %v1222 = vadd.f32 0.0, %v1221
    %1223 = vmatmul.f32.gmra.mxu0 %v905
    %v1224 = vpop.f32.mrf.mxu0
    %v1225 = vadd.f32 0.0, %v1224
    %1226 = vmatmul.f32.gmra.mxu0 %v906
    %v1227 = vpop.f32.mrf.mxu0
    %v1228 = vadd.f32 0.0, %v1227
    %1229 = vmatmul.f32.gmra.mxu0 %v907
    %v1230 = vpop.f32.mrf.mxu0
    %v1231 = vadd.f32 0.0, %v1230
    %1232 = vmatmul.f32.gmra.mxu0 %v908
    %v1233 = vpop.f32.mrf.mxu0
    %v1234 = vadd.f32 0.0, %v1233
    %1235 = vmatmul.f32.gmra.mxu0 %v909
    %v1236 = vpop.f32.mrf.mxu0
    %v1237 = vadd.f32 0.0, %v1236
    %1238 = vmatmul.f32.gmra.mxu0 %v910
    %v1239 = vpop.f32.mrf.mxu0
    %v1240 = vadd.f32 0.0, %v1239
    %1241 = vmatmul.f32.gmra.mxu0 %v911
    %v1242 = vpop.f32.mrf.mxu0
    %v1243 = vadd.f32 0.0, %v1242
    %1244 = vmatmul.f32.gmra.mxu0 %v912
    %v1245 = vpop.f32.mrf.mxu0
    %v1246 = vadd.f32 0.0, %v1245
    %1247 = vmatmul.f32.gmra.mxu0 %v913
    %v1248 = vpop.f32.mrf.mxu0
    %v1249 = vadd.f32 0.0, %v1248
    %1250 = vmatmul.f32.gmra.mxu0 %v914
    %v1251 = vpop.f32.mrf.mxu0
    %v1252 = vadd.f32 0.0, %v1251
    %1253 = vmatmul.f32.gmra.mxu0 %v915
    %v1254 = vpop.f32.mrf.mxu0
    %v1255 = vadd.f32 0.0, %v1254
    %1256 = vmatmul.f32.gmra.mxu0 %v916
    %v1257 = vpop.f32.mrf.mxu0
    %v1258 = vadd.f32 0.0, %v1257
    %1259 = vmatmul.f32.gmra.mxu0 %v917
    %v1260 = vpop.f32.mrf.mxu0
    %v1261 = vadd.f32 0.0, %v1260
    %1262 = vmatmul.f32.gmra.mxu0 %v918
    %v1263 = vpop.f32.mrf.mxu0
    %v1264 = vadd.f32 0.0, %v1263
    %1265 = vmatmul.f32.gmra.mxu0 %v919
    %v1266 = vpop.f32.mrf.mxu0
    %v1267 = vadd.f32 0.0, %v1266
    %1268 = vmatmul.f32.gmra.mxu0 %v920
    %v1269 = vpop.f32.mrf.mxu0
    %v1270 = vadd.f32 0.0, %v1269
    %1271 = vmatmul.f32.gmra.mxu0 %v921
    %v1272 = vpop.f32.mrf.mxu0
    %v1273 = vadd.f32 0.0, %v1272
    %1274 = vmatmul.f32.gmra.mxu0 %v922
    %v1275 = vpop.f32.mrf.mxu0
    %v1276 = vadd.f32 0.0, %v1275
    %1277 = vmatmul.f32.gmra.mxu0 %v923
    %v1278 = vpop.f32.mrf.mxu0
    %v1279 = vadd.f32 0.0, %v1278
    %1280 = vmatmul.f32.gmra.mxu0 %v924
    %v1281 = vpop.f32.mrf.mxu0
    %v1282 = vadd.f32 0.0, %v1281
    %1283 = vmatmul.f32.gmra.mxu0 %v925
    %v1284 = vpop.f32.mrf.mxu0
    %v1285 = vadd.f32 0.0, %v1284
    %1286 = vmatmul.f32.gmra.mxu0 %v926
    %v1287 = vpop.f32.mrf.mxu0
    %v1288 = vadd.f32 0.0, %v1287
    %1289 = vmatmul.f32.gmra.mxu0 %v927
    %v1290 = vpop.f32.mrf.mxu0
    %v1291 = vadd.f32 0.0, %v1290
    %1292 = vmatmul.f32.gmra.mxu0 %v928
    %v1293 = vpop.f32.mrf.mxu0
    %v1294 = vadd.f32 0.0, %v1293
    %1295 = vmatmul.f32.gmra.mxu0 %v929
    %v1296 = vpop.f32.mrf.mxu0
    %v1297 = vadd.f32 0.0, %v1296
    %1298 = vmatmul.f32.gmra.mxu0 %v930
    %v1299 = vpop.f32.mrf.mxu0
    %v1300 = vadd.f32 0.0, %v1299
    %1301 = vmatmul.f32.gmra.mxu0 %v931
    %v1302 = vpop.f32.mrf.mxu0
    %v1303 = vadd.f32 0.0, %v1302
    %1304 = vmatmul.f32.gmra.mxu0 %v932
    %v1305 = vpop.f32.mrf.mxu0
    %v1306 = vadd.f32 0.0, %v1305
    %1307 = vmatmul.f32.gmra.mxu0 %v933
    %v1308 = vpop.f32.mrf.mxu0
    %v1309 = vadd.f32 0.0, %v1308
    %1310 = vmatmul.f32.gmra.mxu0 %v934
    %v1311 = vpop.f32.mrf.mxu0
    %v1312 = vadd.f32 0.0, %v1311
    %1313 = vmatmul.f32.gmra.mxu0 %v935
    %v1314 = vpop.f32.mrf.mxu0
    %v1315 = vadd.f32 0.0, %v1314
    %1316 = vmatmul.f32.gmra.mxu0 %v936
    %v1317 = vpop.f32.mrf.mxu0
    %v1318 = vadd.f32 0.0, %v1317
    %1319 = vmatmul.f32.gmra.mxu0 %v937
    %v1320 = vpop.f32.mrf.mxu0
    %v1321 = vadd.f32 0.0, %v1320
    %1322 = vmatmul.f32.gmra.mxu0 %v938
    %v1323 = vpop.f32.mrf.mxu0
    %v1324 = vadd.f32 0.0, %v1323
    %1325 = vmatmul.f32.gmra.mxu0 %v939
    %v1326 = vpop.f32.mrf.mxu0
    %v1327 = vadd.f32 0.0, %v1326
    %1328 = vmatmul.f32.gmra.mxu0 %v940
    %v1329 = vpop.f32.mrf.mxu0
    %v1330 = vadd.f32 0.0, %v1329
    %1331 = vmatmul.f32.gmra.mxu0 %v941
    %v1332 = vpop.f32.mrf.mxu0
    %v1333 = vadd.f32 0.0, %v1332
    %1334 = vmatmul.f32.gmra.mxu0 %v942
    %v1335 = vpop.f32.mrf.mxu0
    %v1336 = vadd.f32 0.0, %v1335
    %1337 = vmatmul.f32.gmra.mxu0 %v943
    %v1338 = vpop.f32.mrf.mxu0
    %v1339 = vadd.f32 0.0, %v1338
    %1340 = vmatmul.f32.gmra.mxu0 %v944
    %v1341 = vpop.f32.mrf.mxu0
    %v1342 = vadd.f32 0.0, %v1341
    %1343 = vmatmul.f32.gmra.mxu0 %v945
    %v1344 = vpop.f32.mrf.mxu0
    %v1345 = vadd.f32 0.0, %v1344
    %1346 = vmatmul.f32.gmra.mxu0 %v946
    %v1347 = vpop.f32.mrf.mxu0
    %v1348 = vadd.f32 0.0, %v1347
    %1349 = vmatmul.f32.gmra.mxu0 %v947
    %v1350 = vpop.f32.mrf.mxu0
    %v1351 = vadd.f32 0.0, %v1350
    %1352 = vmatmul.f32.gmra.mxu0 %v948
    %v1353 = vpop.f32.mrf.mxu0
    %v1354 = vadd.f32 0.0, %v1353
    %1355 = vmatmul.f32.gmra.mxu0 %v949
    %v1356 = vpop.f32.mrf.mxu0
    %v1357 = vadd.f32 0.0, %v1356
    %1358 = vmatmul.f32.gmra.mxu0 %v950
    %v1359 = vpop.f32.mrf.mxu0
    %v1360 = vadd.f32 0.0, %v1359
    %1361 = vmatmul.f32.gmra.mxu0 %v951
    %v1362 = vpop.f32.mrf.mxu0
    %v1363 = vadd.f32 0.0, %v1362
    %1364 = vmatmul.f32.gmra.mxu0 %v952
    %v1365 = vpop.f32.mrf.mxu0
    %v1366 = vadd.f32 0.0, %v1365
    %1367 = vmatmul.f32.gmra.mxu0 %v953
    %v1368 = vpop.f32.mrf.mxu0
    %v1369 = vadd.f32 0.0, %v1368
    %1370 = vmatmul.f32.gmra.mxu0 %v954
    %v1371 = vpop.f32.mrf.mxu0
    %v1372 = vadd.f32 0.0, %v1371
    %1373 = vmatmul.f32.gmra.mxu0 %v955
    %v1374 = vpop.f32.mrf.mxu0
    %v1375 = vadd.f32 0.0, %v1374
    %1376 = vmatmul.f32.gmra.mxu0 %v956
    %v1377 = vpop.f32.mrf.mxu0
    %v1378 = vadd.f32 0.0, %v1377
    %1379 = vmatmul.f32.gmra.mxu0 %v957
    %v1380 = vpop.f32.mrf.mxu0
    %v1381 = vadd.f32 0.0, %v1380
    %1382 = vmatmul.f32.gmra.mxu0 %v958
    %v1383 = vpop.f32.mrf.mxu0
    %v1384 = vadd.f32 0.0, %v1383
    %1385 = vmatmul.f32.gmra.mxu0 %v959
    %v1386 = vpop.f32.mrf.mxu0
    %v1387 = vadd.f32 0.0, %v1386
    %1388 = vmatmul.f32.gmra.mxu0 %v960
    %v1389 = vpop.f32.mrf.mxu0
    %v1390 = vadd.f32 0.0, %v1389
    %1391 = vmatmul.f32.gmra.mxu0 %v961
    %v1392 = vpop.f32.mrf.mxu0
    %v1393 = vadd.f32 0.0, %v1392
    %1394 = vdwg.mxu0
    %1395 = vmatpush.msra.mxu0 %v993
    %1396 = vmatpush.msra.mxu0 %v991
    %1397 = vmatpush.msra.mxu0 %v989
    %1398 = vmatpush.msra.mxu0 %v987
    %1399 = vmatpush.msra.mxu0 %v985
    %1400 = vmatpush.msra.mxu0 %v983
    %1401 = vmatpush.msra.mxu0 %v981
    %1402 = vmatpush.msra.mxu0 %v979
    %1403 = vmatpush.msra.mxu0 %v977
    %1404 = vmatpush.msra.mxu0 %v975
    %1405 = vmatpush.msra.mxu0 %v973
    %1406 = vmatpush.msra.mxu0 %v971
    %1407 = vmatpush.msra.mxu0 %v969
    %1408 = vmatpush.msra.mxu0 %v967
    %1409 = vmatpush.msra.mxu0 %v965
    %1410 = vmatpush.msra.mxu0 %v963
    %1411 = vmatmul.f32.gmra.mxu0 %v834
    %v1412 = vpop.f32.mrf.mxu0
    %v1413 = vadd.f32 0.0, %v1412
    %1414 = vmatmul.f32.gmra.mxu0 %v835
    %v1415 = vpop.f32.mrf.mxu0
    %v1416 = vadd.f32 0.0, %v1415
    %1417 = vmatmul.f32.gmra.mxu0 %v836
    %v1418 = vpop.f32.mrf.mxu0
    %v1419 = vadd.f32 0.0, %v1418
    %1420 = vmatmul.f32.gmra.mxu0 %v837
    %v1421 = vpop.f32.mrf.mxu0
    %v1422 = vadd.f32 0.0, %v1421
    %1423 = vmatmul.f32.gmra.mxu0 %v838
    %v1424 = vpop.f32.mrf.mxu0
    %v1425 = vadd.f32 0.0, %v1424
    %1426 = vmatmul.f32.gmra.mxu0 %v839
    %v1427 = vpop.f32.mrf.mxu0
    %v1428 = vadd.f32 0.0, %v1427
    %1429 = vmatmul.f32.gmra.mxu0 %v840
    %v1430 = vpop.f32.mrf.mxu0
    %v1431 = vadd.f32 0.0, %v1430
    %1432 = vmatmul.f32.gmra.mxu0 %v841
    %v1433 = vpop.f32.mrf.mxu0
    %v1434 = vadd.f32 0.0, %v1433
    %1435 = vmatmul.f32.gmra.mxu0 %v842
    %v1436 = vpop.f32.mrf.mxu0
    %v1437 = vadd.f32 0.0, %v1436
    %1438 = vmatmul.f32.gmra.mxu0 %v843
    %v1439 = vpop.f32.mrf.mxu0
    %v1440 = vadd.f32 0.0, %v1439
    %1441 = vmatmul.f32.gmra.mxu0 %v844
    %v1442 = vpop.f32.mrf.mxu0
    %v1443 = vadd.f32 0.0, %v1442
    %1444 = vmatmul.f32.gmra.mxu0 %v845
    %v1445 = vpop.f32.mrf.mxu0
    %v1446 = vadd.f32 0.0, %v1445
    %1447 = vmatmul.f32.gmra.mxu0 %v846
    %v1448 = vpop.f32.mrf.mxu0
    %v1449 = vadd.f32 0.0, %v1448
    %1450 = vmatmul.f32.gmra.mxu0 %v847
    %v1451 = vpop.f32.mrf.mxu0
    %v1452 = vadd.f32 0.0, %v1451
    %1453 = vmatmul.f32.gmra.mxu0 %v848
    %v1454 = vpop.f32.mrf.mxu0
    %v1455 = vadd.f32 0.0, %v1454
    %1456 = vmatmul.f32.gmra.mxu0 %v849
    %v1457 = vpop.f32.mrf.mxu0
    %v1458 = vadd.f32 0.0, %v1457
    %1459 = vmatmul.f32.gmra.mxu0 %v850
    %v1460 = vpop.f32.mrf.mxu0
    %v1461 = vadd.f32 0.0, %v1460
    %1462 = vmatmul.f32.gmra.mxu0 %v851
    %v1463 = vpop.f32.mrf.mxu0
    %v1464 = vadd.f32 0.0, %v1463
    %1465 = vmatmul.f32.gmra.mxu0 %v852
    %v1466 = vpop.f32.mrf.mxu0
    %v1467 = vadd.f32 0.0, %v1466
    %1468 = vmatmul.f32.gmra.mxu0 %v853
    %v1469 = vpop.f32.mrf.mxu0
    %v1470 = vadd.f32 0.0, %v1469
    %1471 = vmatmul.f32.gmra.mxu0 %v854
    %v1472 = vpop.f32.mrf.mxu0
    %v1473 = vadd.f32 0.0, %v1472
    %1474 = vmatmul.f32.gmra.mxu0 %v855
    %v1475 = vpop.f32.mrf.mxu0
    %v1476 = vadd.f32 0.0, %v1475
    %1477 = vmatmul.f32.gmra.mxu0 %v856
    %v1478 = vpop.f32.mrf.mxu0
    %v1479 = vadd.f32 0.0, %v1478
    %1480 = vmatmul.f32.gmra.mxu0 %v857
    %v1481 = vpop.f32.mrf.mxu0
    %v1482 = vadd.f32 0.0, %v1481
    %1483 = vmatmul.f32.gmra.mxu0 %v858
    %v1484 = vpop.f32.mrf.mxu0
    %v1485 = vadd.f32 0.0, %v1484
    %1486 = vmatmul.f32.gmra.mxu0 %v859
    %v1487 = vpop.f32.mrf.mxu0
    %v1488 = vadd.f32 0.0, %v1487
    %1489 = vmatmul.f32.gmra.mxu0 %v860
    %v1490 = vpop.f32.mrf.mxu0
    %v1491 = vadd.f32 0.0, %v1490
    %1492 = vmatmul.f32.gmra.mxu0 %v861
    %v1493 = vpop.f32.mrf.mxu0
    %v1494 = vadd.f32 0.0, %v1493
    %1495 = vmatmul.f32.gmra.mxu0 %v862
    %v1496 = vpop.f32.mrf.mxu0
    %v1497 = vadd.f32 0.0, %v1496
    %1498 = vmatmul.f32.gmra.mxu0 %v863
    %v1499 = vpop.f32.mrf.mxu0
    %v1500 = vadd.f32 0.0, %v1499
    %1501 = vmatmul.f32.gmra.mxu0 %v864
    %v1502 = vpop.f32.mrf.mxu0
    %v1503 = vadd.f32 0.0, %v1502
    %1504 = vmatmul.f32.gmra.mxu0 %v865
    %v1505 = vpop.f32.mrf.mxu0
    %v1506 = vadd.f32 0.0, %v1505
    %1507 = vmatmul.f32.gmra.mxu0 %v866
    %v1508 = vpop.f32.mrf.mxu0
    %v1509 = vadd.f32 0.0, %v1508
    %1510 = vmatmul.f32.gmra.mxu0 %v867
    %v1511 = vpop.f32.mrf.mxu0
    %v1512 = vadd.f32 0.0, %v1511
    %1513 = vmatmul.f32.gmra.mxu0 %v868
    %v1514 = vpop.f32.mrf.mxu0
    %v1515 = vadd.f32 0.0, %v1514
    %1516 = vmatmul.f32.gmra.mxu0 %v869
    %v1517 = vpop.f32.mrf.mxu0
    %v1518 = vadd.f32 0.0, %v1517
    %1519 = vmatmul.f32.gmra.mxu0 %v870
    %v1520 = vpop.f32.mrf.mxu0
    %v1521 = vadd.f32 0.0, %v1520
    %1522 = vmatmul.f32.gmra.mxu0 %v871
    %v1523 = vpop.f32.mrf.mxu0
    %v1524 = vadd.f32 0.0, %v1523
    %1525 = vmatmul.f32.gmra.mxu0 %v872
    %v1526 = vpop.f32.mrf.mxu0
    %v1527 = vadd.f32 0.0, %v1526
    %1528 = vmatmul.f32.gmra.mxu0 %v873
    %v1529 = vpop.f32.mrf.mxu0
    %v1530 = vadd.f32 0.0, %v1529
    %1531 = vmatmul.f32.gmra.mxu0 %v874
    %v1532 = vpop.f32.mrf.mxu0
    %v1533 = vadd.f32 0.0, %v1532
    %1534 = vmatmul.f32.gmra.mxu0 %v875
    %v1535 = vpop.f32.mrf.mxu0
    %v1536 = vadd.f32 0.0, %v1535
    %1537 = vmatmul.f32.gmra.mxu0 %v876
    %v1538 = vpop.f32.mrf.mxu0
    %v1539 = vadd.f32 0.0, %v1538
    %1540 = vmatmul.f32.gmra.mxu0 %v877
    %v1541 = vpop.f32.mrf.mxu0
    %v1542 = vadd.f32 0.0, %v1541
    %1543 = vmatmul.f32.gmra.mxu0 %v878
    %v1544 = vpop.f32.mrf.mxu0
    %v1545 = vadd.f32 0.0, %v1544
    %1546 = vmatmul.f32.gmra.mxu0 %v879
    %v1547 = vpop.f32.mrf.mxu0
    %v1548 = vadd.f32 0.0, %v1547
    %1549 = vmatmul.f32.gmra.mxu0 %v880
    %v1550 = vpop.f32.mrf.mxu0
    %v1551 = vadd.f32 0.0, %v1550
    %1552 = vmatmul.f32.gmra.mxu0 %v881
    %v1553 = vpop.f32.mrf.mxu0
    %v1554 = vadd.f32 0.0, %v1553
    %1555 = vmatmul.f32.gmra.mxu0 %v882
    %v1556 = vpop.f32.mrf.mxu0
    %v1557 = vadd.f32 0.0, %v1556
    %1558 = vmatmul.f32.gmra.mxu0 %v883
    %v1559 = vpop.f32.mrf.mxu0
    %v1560 = vadd.f32 0.0, %v1559
    %1561 = vmatmul.f32.gmra.mxu0 %v884
    %v1562 = vpop.f32.mrf.mxu0
    %v1563 = vadd.f32 0.0, %v1562
    %1564 = vmatmul.f32.gmra.mxu0 %v885
    %v1565 = vpop.f32.mrf.mxu0
    %v1566 = vadd.f32 0.0, %v1565
    %1567 = vmatmul.f32.gmra.mxu0 %v886
    %v1568 = vpop.f32.mrf.mxu0
    %v1569 = vadd.f32 0.0, %v1568
    %1570 = vmatmul.f32.gmra.mxu0 %v887
    %v1571 = vpop.f32.mrf.mxu0
    %v1572 = vadd.f32 0.0, %v1571
    %1573 = vmatmul.f32.gmra.mxu0 %v888
    %v1574 = vpop.f32.mrf.mxu0
    %v1575 = vadd.f32 0.0, %v1574
    %1576 = vmatmul.f32.gmra.mxu0 %v889
    %v1577 = vpop.f32.mrf.mxu0
    %v1578 = vadd.f32 0.0, %v1577
    %1579 = vmatmul.f32.gmra.mxu0 %v890
    %v1580 = vpop.f32.mrf.mxu0
    %v1581 = vadd.f32 0.0, %v1580
    %1582 = vmatmul.f32.gmra.mxu0 %v891
    %v1583 = vpop.f32.mrf.mxu0
    %v1584 = vadd.f32 0.0, %v1583
    %1585 = vmatmul.f32.gmra.mxu0 %v892
    %v1586 = vpop.f32.mrf.mxu0
    %v1587 = vadd.f32 0.0, %v1586
    %1588 = vmatmul.f32.gmra.mxu0 %v893
    %v1589 = vpop.f32.mrf.mxu0
    %v1590 = vadd.f32 0.0, %v1589
    %1591 = vmatmul.f32.gmra.mxu0 %v894
    %v1592 = vpop.f32.mrf.mxu0
    %v1593 = vadd.f32 0.0, %v1592
    %1594 = vmatmul.f32.gmra.mxu0 %v895
    %v1595 = vpop.f32.mrf.mxu0
    %v1596 = vadd.f32 0.0, %v1595
    %1597 = vmatmul.f32.gmra.mxu0 %v896
    %v1598 = vpop.f32.mrf.mxu0
    %v1599 = vadd.f32 0.0, %v1598
    %1600 = vmatmul.f32.gmra.mxu0 %v897
    %v1601 = vpop.f32.mrf.mxu0
    %v1602 = vadd.f32 0.0, %v1601
    %1603 = vmatmul.f32.gmra.mxu0 %v898
    %v1604 = vpop.f32.mrf.mxu0
    %v1605 = vadd.f32 0.0, %v1604
    %1606 = vmatmul.f32.gmra.mxu0 %v899
    %v1607 = vpop.f32.mrf.mxu0
    %v1608 = vadd.f32 0.0, %v1607
    %1609 = vmatmul.f32.gmra.mxu0 %v900
    %v1610 = vpop.f32.mrf.mxu0
    %v1611 = vadd.f32 0.0, %v1610
    %1612 = vmatmul.f32.gmra.mxu0 %v901
    %v1613 = vpop.f32.mrf.mxu0
    %v1614 = vadd.f32 0.0, %v1613
    %1615 = vmatmul.f32.gmra.mxu0 %v902
    %v1616 = vpop.f32.mrf.mxu0
    %v1617 = vadd.f32 0.0, %v1616
    %1618 = vmatmul.f32.gmra.mxu0 %v903
    %v1619 = vpop.f32.mrf.mxu0
    %v1620 = vadd.f32 0.0, %v1619
    %1621 = vmatmul.f32.gmra.mxu0 %v904
    %v1622 = vpop.f32.mrf.mxu0
    %v1623 = vadd.f32 0.0, %v1622
    %1624 = vmatmul.f32.gmra.mxu0 %v905
    %v1625 = vpop.f32.mrf.mxu0
    %v1626 = vadd.f32 0.0, %v1625
    %1627 = vmatmul.f32.gmra.mxu0 %v906
    %v1628 = vpop.f32.mrf.mxu0
    %v1629 = vadd.f32 0.0, %v1628
    %1630 = vmatmul.f32.gmra.mxu0 %v907
    %v1631 = vpop.f32.mrf.mxu0
    %v1632 = vadd.f32 0.0, %v1631
    %1633 = vmatmul.f32.gmra.mxu0 %v908
    %v1634 = vpop.f32.mrf.mxu0
    %v1635 = vadd.f32 0.0, %v1634
    %1636 = vmatmul.f32.gmra.mxu0 %v909
    %v1637 = vpop.f32.mrf.mxu0
    %v1638 = vadd.f32 0.0, %v1637
    %1639 = vmatmul.f32.gmra.mxu0 %v910
    %v1640 = vpop.f32.mrf.mxu0
    %v1641 = vadd.f32 0.0, %v1640
    %1642 = vmatmul.f32.gmra.mxu0 %v911
    %v1643 = vpop.f32.mrf.mxu0
    %v1644 = vadd.f32 0.0, %v1643
    %1645 = vmatmul.f32.gmra.mxu0 %v912
    %v1646 = vpop.f32.mrf.mxu0
    %v1647 = vadd.f32 0.0, %v1646
    %1648 = vmatmul.f32.gmra.mxu0 %v913
    %v1649 = vpop.f32.mrf.mxu0
    %v1650 = vadd.f32 0.0, %v1649
    %1651 = vmatmul.f32.gmra.mxu0 %v914
    %v1652 = vpop.f32.mrf.mxu0
    %v1653 = vadd.f32 0.0, %v1652
    %1654 = vmatmul.f32.gmra.mxu0 %v915
    %v1655 = vpop.f32.mrf.mxu0
    %v1656 = vadd.f32 0.0, %v1655
    %1657 = vmatmul.f32.gmra.mxu0 %v916
    %v1658 = vpop.f32.mrf.mxu0
    %v1659 = vadd.f32 0.0, %v1658
    %1660 = vmatmul.f32.gmra.mxu0 %v917
    %v1661 = vpop.f32.mrf.mxu0
    %v1662 = vadd.f32 0.0, %v1661
    %1663 = vmatmul.f32.gmra.mxu0 %v918
    %v1664 = vpop.f32.mrf.mxu0
    %v1665 = vadd.f32 0.0, %v1664
    %1666 = vmatmul.f32.gmra.mxu0 %v919
    %v1667 = vpop.f32.mrf.mxu0
    %v1668 = vadd.f32 0.0, %v1667
    %1669 = vmatmul.f32.gmra.mxu0 %v920
    %v1670 = vpop.f32.mrf.mxu0
    %v1671 = vadd.f32 0.0, %v1670
    %1672 = vmatmul.f32.gmra.mxu0 %v921
    %v1673 = vpop.f32.mrf.mxu0
    %v1674 = vadd.f32 0.0, %v1673
    %1675 = vmatmul.f32.gmra.mxu0 %v922
    %v1676 = vpop.f32.mrf.mxu0
    %v1677 = vadd.f32 0.0, %v1676
    %1678 = vmatmul.f32.gmra.mxu0 %v923
    %v1679 = vpop.f32.mrf.mxu0
    %v1680 = vadd.f32 0.0, %v1679
    %1681 = vmatmul.f32.gmra.mxu0 %v924
    %v1682 = vpop.f32.mrf.mxu0
    %v1683 = vadd.f32 0.0, %v1682
    %1684 = vmatmul.f32.gmra.mxu0 %v925
    %v1685 = vpop.f32.mrf.mxu0
    %v1686 = vadd.f32 0.0, %v1685
    %1687 = vmatmul.f32.gmra.mxu0 %v926
    %v1688 = vpop.f32.mrf.mxu0
    %v1689 = vadd.f32 0.0, %v1688
    %1690 = vmatmul.f32.gmra.mxu0 %v927
    %v1691 = vpop.f32.mrf.mxu0
    %v1692 = vadd.f32 0.0, %v1691
    %1693 = vmatmul.f32.gmra.mxu0 %v928
    %v1694 = vpop.f32.mrf.mxu0
    %v1695 = vadd.f32 0.0, %v1694
    %1696 = vmatmul.f32.gmra.mxu0 %v929
    %v1697 = vpop.f32.mrf.mxu0
    %v1698 = vadd.f32 0.0, %v1697
    %1699 = vmatmul.f32.gmra.mxu0 %v930
    %v1700 = vpop.f32.mrf.mxu0
    %v1701 = vadd.f32 0.0, %v1700
    %1702 = vmatmul.f32.gmra.mxu0 %v931
    %v1703 = vpop.f32.mrf.mxu0
    %v1704 = vadd.f32 0.0, %v1703
    %1705 = vmatmul.f32.gmra.mxu0 %v932
    %v1706 = vpop.f32.mrf.mxu0
    %v1707 = vadd.f32 0.0, %v1706
    %1708 = vmatmul.f32.gmra.mxu0 %v933
    %v1709 = vpop.f32.mrf.mxu0
    %v1710 = vadd.f32 0.0, %v1709
    %1711 = vmatmul.f32.gmra.mxu0 %v934
    %v1712 = vpop.f32.mrf.mxu0
    %v1713 = vadd.f32 0.0, %v1712
    %1714 = vmatmul.f32.gmra.mxu0 %v935
    %v1715 = vpop.f32.mrf.mxu0
    %v1716 = vadd.f32 0.0, %v1715
    %1717 = vmatmul.f32.gmra.mxu0 %v936
    %v1718 = vpop.f32.mrf.mxu0
    %v1719 = vadd.f32 0.0, %v1718
    %1720 = vmatmul.f32.gmra.mxu0 %v937
    %v1721 = vpop.f32.mrf.mxu0
    %v1722 = vadd.f32 0.0, %v1721
    %1723 = vmatmul.f32.gmra.mxu0 %v938
    %v1724 = vpop.f32.mrf.mxu0
    %v1725 = vadd.f32 0.0, %v1724
    %1726 = vmatmul.f32.gmra.mxu0 %v939
    %v1727 = vpop.f32.mrf.mxu0
    %v1728 = vadd.f32 0.0, %v1727
    %1729 = vmatmul.f32.gmra.mxu0 %v940
    %v1730 = vpop.f32.mrf.mxu0
    %v1731 = vadd.f32 0.0, %v1730
    %1732 = vmatmul.f32.gmra.mxu0 %v941
    %v1733 = vpop.f32.mrf.mxu0
    %v1734 = vadd.f32 0.0, %v1733
    %1735 = vmatmul.f32.gmra.mxu0 %v942
    %v1736 = vpop.f32.mrf.mxu0
    %v1737 = vadd.f32 0.0, %v1736
    %1738 = vmatmul.f32.gmra.mxu0 %v943
    %v1739 = vpop.f32.mrf.mxu0
    %v1740 = vadd.f32 0.0, %v1739
    %1741 = vmatmul.f32.gmra.mxu0 %v944
    %v1742 = vpop.f32.mrf.mxu0
    %v1743 = vadd.f32 0.0, %v1742
    %1744 = vmatmul.f32.gmra.mxu0 %v945
    %v1745 = vpop.f32.mrf.mxu0
    %v1746 = vadd.f32 0.0, %v1745
    %1747 = vmatmul.f32.gmra.mxu0 %v946
    %v1748 = vpop.f32.mrf.mxu0
    %v1749 = vadd.f32 0.0, %v1748
    %1750 = vmatmul.f32.gmra.mxu0 %v947
    %v1751 = vpop.f32.mrf.mxu0
    %v1752 = vadd.f32 0.0, %v1751
    %1753 = vmatmul.f32.gmra.mxu0 %v948
    %v1754 = vpop.f32.mrf.mxu0
    %v1755 = vadd.f32 0.0, %v1754
    %1756 = vmatmul.f32.gmra.mxu0 %v949
    %v1757 = vpop.f32.mrf.mxu0
    %v1758 = vadd.f32 0.0, %v1757
    %1759 = vmatmul.f32.gmra.mxu0 %v950
    %v1760 = vpop.f32.mrf.mxu0
    %v1761 = vadd.f32 0.0, %v1760
    %1762 = vmatmul.f32.gmra.mxu0 %v951
    %v1763 = vpop.f32.mrf.mxu0
    %v1764 = vadd.f32 0.0, %v1763
    %1765 = vmatmul.f32.gmra.mxu0 %v952
    %v1766 = vpop.f32.mrf.mxu0
    %v1767 = vadd.f32 0.0, %v1766
    %1768 = vmatmul.f32.gmra.mxu0 %v953
    %v1769 = vpop.f32.mrf.mxu0
    %v1770 = vadd.f32 0.0, %v1769
    %1771 = vmatmul.f32.gmra.mxu0 %v954
    %v1772 = vpop.f32.mrf.mxu0
    %v1773 = vadd.f32 0.0, %v1772
    %1774 = vmatmul.f32.gmra.mxu0 %v955
    %v1775 = vpop.f32.mrf.mxu0
    %v1776 = vadd.f32 0.0, %v1775
    %1777 = vmatmul.f32.gmra.mxu0 %v956
    %v1778 = vpop.f32.mrf.mxu0
    %v1779 = vadd.f32 0.0, %v1778
    %1780 = vmatmul.f32.gmra.mxu0 %v957
    %v1781 = vpop.f32.mrf.mxu0
    %v1782 = vadd.f32 0.0, %v1781
    %1783 = vmatmul.f32.gmra.mxu0 %v958
    %v1784 = vpop.f32.mrf.mxu0
    %v1785 = vadd.f32 0.0, %v1784
    %1786 = vmatmul.f32.gmra.mxu0 %v959
    %v1787 = vpop.f32.mrf.mxu0
    %v1788 = vadd.f32 0.0, %v1787
    %1789 = vmatmul.f32.gmra.mxu0 %v960
    %v1790 = vpop.f32.mrf.mxu0
    %v1791 = vadd.f32 0.0, %v1790
    %1792 = vmatmul.f32.gmra.mxu0 %v961
    %v1793 = vpop.f32.mrf.mxu0
    %v1794 = vadd.f32 0.0, %v1793
    %1795 = vdwg.mxu0
    %vm1796 = vcmp.ge.f32.partialorder %v1012, 0.0
    %vm1797 = vcmp.ge.f32.partialorder %v1413, 0.0
    %vm1798 = vcmp.ge.f32.partialorder %v1015, 0.0
    %vm1799 = vcmp.ge.f32.partialorder %v1416, 0.0
    %vm1800 = vcmp.ge.f32.partialorder %v1018, 0.0
    %vm1801 = vcmp.ge.f32.partialorder %v1419, 0.0
    %vm1802 = vcmp.ge.f32.partialorder %v1021, 0.0
    %vm1803 = vcmp.ge.f32.partialorder %v1422, 0.0
    %vm1804 = vcmp.ge.f32.partialorder %v1024, 0.0
    %vm1805 = vcmp.ge.f32.partialorder %v1425, 0.0
    %vm1806 = vcmp.ge.f32.partialorder %v1027, 0.0
    %vm1807 = vcmp.ge.f32.partialorder %v1428, 0.0
    %vm1808 = vcmp.ge.f32.partialorder %v1030, 0.0
    %vm1809 = vcmp.ge.f32.partialorder %v1431, 0.0
    %vm1810 = vcmp.ge.f32.partialorder %v1033, 0.0
    %vm1811 = vcmp.ge.f32.partialorder %v1434, 0.0
    %vm1812 = vcmp.ge.f32.partialorder %v1036, 0.0
    %vm1813 = vcmp.ge.f32.partialorder %v1437, 0.0
    %vm1814 = vcmp.ge.f32.partialorder %v1039, 0.0
    %vm1815 = vcmp.ge.f32.partialorder %v1440, 0.0
    %vm1816 = vcmp.ge.f32.partialorder %v1042, 0.0
    %vm1817 = vcmp.ge.f32.partialorder %v1443, 0.0
    %vm1818 = vcmp.ge.f32.partialorder %v1045, 0.0
    %vm1819 = vcmp.ge.f32.partialorder %v1446, 0.0
    %vm1820 = vcmp.ge.f32.partialorder %v1048, 0.0
    %vm1821 = vcmp.ge.f32.partialorder %v1449, 0.0
    %vm1822 = vcmp.ge.f32.partialorder %v1051, 0.0
    %vm1823 = vcmp.ge.f32.partialorder %v1452, 0.0
    %vm1824 = vcmp.ge.f32.partialorder %v1054, 0.0
    %vm1825 = vcmp.ge.f32.partialorder %v1455, 0.0
    %vm1826 = vcmp.ge.f32.partialorder %v1057, 0.0
    %vm1827 = vcmp.ge.f32.partialorder %v1458, 0.0
    %vm1828 = vcmp.ge.f32.partialorder %v1060, 0.0
    %vm1829 = vcmp.ge.f32.partialorder %v1461, 0.0
    %vm1830 = vcmp.ge.f32.partialorder %v1063, 0.0
    %vm1831 = vcmp.ge.f32.partialorder %v1464, 0.0
    %vm1832 = vcmp.ge.f32.partialorder %v1066, 0.0
    %vm1833 = vcmp.ge.f32.partialorder %v1467, 0.0
    %vm1834 = vcmp.ge.f32.partialorder %v1069, 0.0
    %vm1835 = vcmp.ge.f32.partialorder %v1470, 0.0
    %vm1836 = vcmp.ge.f32.partialorder %v1072, 0.0
    %vm1837 = vcmp.ge.f32.partialorder %v1473, 0.0
    %vm1838 = vcmp.ge.f32.partialorder %v1075, 0.0
    %vm1839 = vcmp.ge.f32.partialorder %v1476, 0.0
    %vm1840 = vcmp.ge.f32.partialorder %v1078, 0.0
    %vm1841 = vcmp.ge.f32.partialorder %v1479, 0.0
    %vm1842 = vcmp.ge.f32.partialorder %v1081, 0.0
    %vm1843 = vcmp.ge.f32.partialorder %v1482, 0.0
    %vm1844 = vcmp.ge.f32.partialorder %v1084, 0.0
    %vm1845 = vcmp.ge.f32.partialorder %v1485, 0.0
    %vm1846 = vcmp.ge.f32.partialorder %v1087, 0.0
    %vm1847 = vcmp.ge.f32.partialorder %v1488, 0.0
    %vm1848 = vcmp.ge.f32.partialorder %v1090, 0.0
    %vm1849 = vcmp.ge.f32.partialorder %v1491, 0.0
    %vm1850 = vcmp.ge.f32.partialorder %v1093, 0.0
    %vm1851 = vcmp.ge.f32.partialorder %v1494, 0.0
    %vm1852 = vcmp.ge.f32.partialorder %v1096, 0.0
    %vm1853 = vcmp.ge.f32.partialorder %v1497, 0.0
    %vm1854 = vcmp.ge.f32.partialorder %v1099, 0.0
    %vm1855 = vcmp.ge.f32.partialorder %v1500, 0.0
    %vm1856 = vcmp.ge.f32.partialorder %v1102, 0.0
    %vm1857 = vcmp.ge.f32.partialorder %v1503, 0.0
    %vm1858 = vcmp.ge.f32.partialorder %v1105, 0.0
    %vm1859 = vcmp.ge.f32.partialorder %v1506, 0.0
    %vm1860 = vcmp.ge.f32.partialorder %v1108, 0.0
    %vm1861 = vcmp.ge.f32.partialorder %v1509, 0.0
    %vm1862 = vcmp.ge.f32.partialorder %v1111, 0.0
    %vm1863 = vcmp.ge.f32.partialorder %v1512, 0.0
    %vm1864 = vcmp.ge.f32.partialorder %v1114, 0.0
    %vm1865 = vcmp.ge.f32.partialorder %v1515, 0.0
    %vm1866 = vcmp.ge.f32.partialorder %v1117, 0.0
    %vm1867 = vcmp.ge.f32.partialorder %v1518, 0.0
    %vm1868 = vcmp.ge.f32.partialorder %v1120, 0.0
    %vm1869 = vcmp.ge.f32.partialorder %v1521, 0.0
    %vm1870 = vcmp.ge.f32.partialorder %v1123, 0.0
    %vm1871 = vcmp.ge.f32.partialorder %v1524, 0.0
    %vm1872 = vcmp.ge.f32.partialorder %v1126, 0.0
    %vm1873 = vcmp.ge.f32.partialorder %v1527, 0.0
    %vm1874 = vcmp.ge.f32.partialorder %v1129, 0.0
    %vm1875 = vcmp.ge.f32.partialorder %v1530, 0.0
    %vm1876 = vcmp.ge.f32.partialorder %v1132, 0.0
    %vm1877 = vcmp.ge.f32.partialorder %v1533, 0.0
    %vm1878 = vcmp.ge.f32.partialorder %v1135, 0.0
    %vm1879 = vcmp.ge.f32.partialorder %v1536, 0.0
    %vm1880 = vcmp.ge.f32.partialorder %v1138, 0.0
    %vm1881 = vcmp.ge.f32.partialorder %v1539, 0.0
    %vm1882 = vcmp.ge.f32.partialorder %v1141, 0.0
    %vm1883 = vcmp.ge.f32.partialorder %v1542, 0.0
    %vm1884 = vcmp.ge.f32.partialorder %v1144, 0.0
    %vm1885 = vcmp.ge.f32.partialorder %v1545, 0.0
    %vm1886 = vcmp.ge.f32.partialorder %v1147, 0.0
    %vm1887 = vcmp.ge.f32.partialorder %v1548, 0.0
    %vm1888 = vcmp.ge.f32.partialorder %v1150, 0.0
    %vm1889 = vcmp.ge.f32.partialorder %v1551, 0.0
    %vm1890 = vcmp.ge.f32.partialorder %v1153, 0.0
    %vm1891 = vcmp.ge.f32.partialorder %v1554, 0.0
    %vm1892 = vcmp.ge.f32.partialorder %v1156, 0.0
    %vm1893 = vcmp.ge.f32.partialorder %v1557, 0.0
    %vm1894 = vcmp.ge.f32.partialorder %v1159, 0.0
    %vm1895 = vcmp.ge.f32.partialorder %v1560, 0.0
    %vm1896 = vcmp.ge.f32.partialorder %v1162, 0.0
    %vm1897 = vcmp.ge.f32.partialorder %v1563, 0.0
    %vm1898 = vcmp.ge.f32.partialorder %v1165, 0.0
    %vm1899 = vcmp.ge.f32.partialorder %v1566, 0.0
    %vm1900 = vcmp.ge.f32.partialorder %v1168, 0.0
    %vm1901 = vcmp.ge.f32.partialorder %v1569, 0.0
    %vm1902 = vcmp.ge.f32.partialorder %v1171, 0.0
    %vm1903 = vcmp.ge.f32.partialorder %v1572, 0.0
    %vm1904 = vcmp.ge.f32.partialorder %v1174, 0.0
    %vm1905 = vcmp.ge.f32.partialorder %v1575, 0.0
    %vm1906 = vcmp.ge.f32.partialorder %v1177, 0.0
    %vm1907 = vcmp.ge.f32.partialorder %v1578, 0.0
    %vm1908 = vcmp.ge.f32.partialorder %v1180, 0.0
    %vm1909 = vcmp.ge.f32.partialorder %v1581, 0.0
    %vm1910 = vcmp.ge.f32.partialorder %v1183, 0.0
    %vm1911 = vcmp.ge.f32.partialorder %v1584, 0.0
    %vm1912 = vcmp.ge.f32.partialorder %v1186, 0.0
    %vm1913 = vcmp.ge.f32.partialorder %v1587, 0.0
    %vm1914 = vcmp.ge.f32.partialorder %v1189, 0.0
    %vm1915 = vcmp.ge.f32.partialorder %v1590, 0.0
    %vm1916 = vcmp.ge.f32.partialorder %v1192, 0.0
    %vm1917 = vcmp.ge.f32.partialorder %v1593, 0.0
    %vm1918 = vcmp.ge.f32.partialorder %v1195, 0.0
    %vm1919 = vcmp.ge.f32.partialorder %v1596, 0.0
    %vm1920 = vcmp.ge.f32.partialorder %v1198, 0.0
    %vm1921 = vcmp.ge.f32.partialorder %v1599, 0.0
    %vm1922 = vcmp.ge.f32.partialorder %v1201, 0.0
    %vm1923 = vcmp.ge.f32.partialorder %v1602, 0.0
    %vm1924 = vcmp.ge.f32.partialorder %v1204, 0.0
    %vm1925 = vcmp.ge.f32.partialorder %v1605, 0.0
    %vm1926 = vcmp.ge.f32.partialorder %v1207, 0.0
    %vm1927 = vcmp.ge.f32.partialorder %v1608, 0.0
    %vm1928 = vcmp.ge.f32.partialorder %v1210, 0.0
    %vm1929 = vcmp.ge.f32.partialorder %v1611, 0.0
    %vm1930 = vcmp.ge.f32.partialorder %v1213, 0.0
    %vm1931 = vcmp.ge.f32.partialorder %v1614, 0.0
    %vm1932 = vcmp.ge.f32.partialorder %v1216, 0.0
    %vm1933 = vcmp.ge.f32.partialorder %v1617, 0.0
    %vm1934 = vcmp.ge.f32.partialorder %v1219, 0.0
    %vm1935 = vcmp.ge.f32.partialorder %v1620, 0.0
    %vm1936 = vcmp.ge.f32.partialorder %v1222, 0.0
    %vm1937 = vcmp.ge.f32.partialorder %v1623, 0.0
    %vm1938 = vcmp.ge.f32.partialorder %v1225, 0.0
    %vm1939 = vcmp.ge.f32.partialorder %v1626, 0.0
    %vm1940 = vcmp.ge.f32.partialorder %v1228, 0.0
    %vm1941 = vcmp.ge.f32.partialorder %v1629, 0.0
    %vm1942 = vcmp.ge.f32.partialorder %v1231, 0.0
    %vm1943 = vcmp.ge.f32.partialorder %v1632, 0.0
    %vm1944 = vcmp.ge.f32.partialorder %v1234, 0.0
    %vm1945 = vcmp.ge.f32.partialorder %v1635, 0.0
    %vm1946 = vcmp.ge.f32.partialorder %v1237, 0.0
    %vm1947 = vcmp.ge.f32.partialorder %v1638, 0.0
    %vm1948 = vcmp.ge.f32.partialorder %v1240, 0.0
    %vm1949 = vcmp.ge.f32.partialorder %v1641, 0.0
    %vm1950 = vcmp.ge.f32.partialorder %v1243, 0.0
    %vm1951 = vcmp.ge.f32.partialorder %v1644, 0.0
    %vm1952 = vcmp.ge.f32.partialorder %v1246, 0.0
    %vm1953 = vcmp.ge.f32.partialorder %v1647, 0.0
    %vm1954 = vcmp.ge.f32.partialorder %v1249, 0.0
    %vm1955 = vcmp.ge.f32.partialorder %v1650, 0.0
    %vm1956 = vcmp.ge.f32.partialorder %v1252, 0.0
    %vm1957 = vcmp.ge.f32.partialorder %v1653, 0.0
    %vm1958 = vcmp.ge.f32.partialorder %v1255, 0.0
    %vm1959 = vcmp.ge.f32.partialorder %v1656, 0.0
    %vm1960 = vcmp.ge.f32.partialorder %v1258, 0.0
    %vm1961 = vcmp.ge.f32.partialorder %v1659, 0.0
    %vm1962 = vcmp.ge.f32.partialorder %v1261, 0.0
    %vm1963 = vcmp.ge.f32.partialorder %v1662, 0.0
    %vm1964 = vcmp.ge.f32.partialorder %v1264, 0.0
    %vm1965 = vcmp.ge.f32.partialorder %v1665, 0.0
    %vm1966 = vcmp.ge.f32.partialorder %v1267, 0.0
    %vm1967 = vcmp.ge.f32.partialorder %v1668, 0.0
    %vm1968 = vcmp.ge.f32.partialorder %v1270, 0.0
    %vm1969 = vcmp.ge.f32.partialorder %v1671, 0.0
    %vm1970 = vcmp.ge.f32.partialorder %v1273, 0.0
    %vm1971 = vcmp.ge.f32.partialorder %v1674, 0.0
    %vm1972 = vcmp.ge.f32.partialorder %v1276, 0.0
    %vm1973 = vcmp.ge.f32.partialorder %v1677, 0.0
    %vm1974 = vcmp.ge.f32.partialorder %v1279, 0.0
    %vm1975 = vcmp.ge.f32.partialorder %v1680, 0.0
    %vm1976 = vcmp.ge.f32.partialorder %v1282, 0.0
    %vm1977 = vcmp.ge.f32.partialorder %v1683, 0.0
    %vm1978 = vcmp.ge.f32.partialorder %v1285, 0.0
    %vm1979 = vcmp.ge.f32.partialorder %v1686, 0.0
    %vm1980 = vcmp.ge.f32.partialorder %v1288, 0.0
    %vm1981 = vcmp.ge.f32.partialorder %v1689, 0.0
    %vm1982 = vcmp.ge.f32.partialorder %v1291, 0.0
    %vm1983 = vcmp.ge.f32.partialorder %v1692, 0.0
    %vm1984 = vcmp.ge.f32.partialorder %v1294, 0.0
    %vm1985 = vcmp.ge.f32.partialorder %v1695, 0.0
    %vm1986 = vcmp.ge.f32.partialorder %v1297, 0.0
    %vm1987 = vcmp.ge.f32.partialorder %v1698, 0.0
    %vm1988 = vcmp.ge.f32.partialorder %v1300, 0.0
    %vm1989 = vcmp.ge.f32.partialorder %v1701, 0.0
    %vm1990 = vcmp.ge.f32.partialorder %v1303, 0.0
    %vm1991 = vcmp.ge.f32.partialorder %v1704, 0.0
    %vm1992 = vcmp.ge.f32.partialorder %v1306, 0.0
    %vm1993 = vcmp.ge.f32.partialorder %v1707, 0.0
    %vm1994 = vcmp.ge.f32.partialorder %v1309, 0.0
    %vm1995 = vcmp.ge.f32.partialorder %v1710, 0.0
    %vm1996 = vcmp.ge.f32.partialorder %v1312, 0.0
    %vm1997 = vcmp.ge.f32.partialorder %v1713, 0.0
    %vm1998 = vcmp.ge.f32.partialorder %v1315, 0.0
    %vm1999 = vcmp.ge.f32.partialorder %v1716, 0.0
    %vm2000 = vcmp.ge.f32.partialorder %v1318, 0.0
    %vm2001 = vcmp.ge.f32.partialorder %v1719, 0.0
    %vm2002 = vcmp.ge.f32.partialorder %v1321, 0.0
    %vm2003 = vcmp.ge.f32.partialorder %v1722, 0.0
    %vm2004 = vcmp.ge.f32.partialorder %v1324, 0.0
    %vm2005 = vcmp.ge.f32.partialorder %v1725, 0.0
    %vm2006 = vcmp.ge.f32.partialorder %v1327, 0.0
    %vm2007 = vcmp.ge.f32.partialorder %v1728, 0.0
    %vm2008 = vcmp.ge.f32.partialorder %v1330, 0.0
    %vm2009 = vcmp.ge.f32.partialorder %v1731, 0.0
    %vm2010 = vcmp.ge.f32.partialorder %v1333, 0.0
    %vm2011 = vcmp.ge.f32.partialorder %v1734, 0.0
    %vm2012 = vcmp.ge.f32.partialorder %v1336, 0.0
    %vm2013 = vcmp.ge.f32.partialorder %v1737, 0.0
    %vm2014 = vcmp.ge.f32.partialorder %v1339, 0.0
    %vm2015 = vcmp.ge.f32.partialorder %v1740, 0.0
    %vm2016 = vcmp.ge.f32.partialorder %v1342, 0.0
    %vm2017 = vcmp.ge.f32.partialorder %v1743, 0.0
    %vm2018 = vcmp.ge.f32.partialorder %v1345, 0.0
    %vm2019 = vcmp.ge.f32.partialorder %v1746, 0.0
    %vm2020 = vcmp.ge.f32.partialorder %v1348, 0.0
    %vm2021 = vcmp.ge.f32.partialorder %v1749, 0.0
    %vm2022 = vcmp.ge.f32.partialorder %v1351, 0.0
    %vm2023 = vcmp.ge.f32.partialorder %v1752, 0.0
    %vm2024 = vcmp.ge.f32.partialorder %v1354, 0.0
    %vm2025 = vcmp.ge.f32.partialorder %v1755, 0.0
    %vm2026 = vcmp.ge.f32.partialorder %v1357, 0.0
    %vm2027 = vcmp.ge.f32.partialorder %v1758, 0.0
    %vm2028 = vcmp.ge.f32.partialorder %v1360, 0.0
    %vm2029 = vcmp.ge.f32.partialorder %v1761, 0.0
    %vm2030 = vcmp.ge.f32.partialorder %v1363, 0.0
    %vm2031 = vcmp.ge.f32.partialorder %v1764, 0.0
    %vm2032 = vcmp.ge.f32.partialorder %v1366, 0.0
    %vm2033 = vcmp.ge.f32.partialorder %v1767, 0.0
    %vm2034 = vcmp.ge.f32.partialorder %v1369, 0.0
    %vm2035 = vcmp.ge.f32.partialorder %v1770, 0.0
    %vm2036 = vcmp.ge.f32.partialorder %v1372, 0.0
    %vm2037 = vcmp.ge.f32.partialorder %v1773, 0.0
    %vm2038 = vcmp.ge.f32.partialorder %v1375, 0.0
    %vm2039 = vcmp.ge.f32.partialorder %v1776, 0.0
    %vm2040 = vcmp.ge.f32.partialorder %v1378, 0.0
    %vm2041 = vcmp.ge.f32.partialorder %v1779, 0.0
    %vm2042 = vcmp.ge.f32.partialorder %v1381, 0.0
    %vm2043 = vcmp.ge.f32.partialorder %v1782, 0.0
    %vm2044 = vcmp.ge.f32.partialorder %v1384, 0.0
    %vm2045 = vcmp.ge.f32.partialorder %v1785, 0.0
    %vm2046 = vcmp.ge.f32.partialorder %v1387, 0.0
    %vm2047 = vcmp.ge.f32.partialorder %v1788, 0.0
    %vm2048 = vcmp.ge.f32.partialorder %v1390, 0.0
    %vm2049 = vcmp.ge.f32.partialorder %v1791, 0.0
    %vm2050 = vcmp.ge.f32.partialorder %v1393, 0.0
    %vm2051 = vcmp.ge.f32.partialorder %v1794, 0.0
    %v2052 = vmul.f32 %v1012, 0.01
    %v2053 = vmul.f32 %v1413, 0.01
    %v2054 = vmul.f32 %v1015, 0.01
    %v2055 = vmul.f32 %v1416, 0.01
    %v2056 = vmul.f32 %v1018, 0.01
    %v2057 = vmul.f32 %v1419, 0.01
    %v2058 = vmul.f32 %v1021, 0.01
    %v2059 = vmul.f32 %v1422, 0.01
    %v2060 = vmul.f32 %v1024, 0.01
    %v2061 = vmul.f32 %v1425, 0.01
    %v2062 = vmul.f32 %v1027, 0.01
    %v2063 = vmul.f32 %v1428, 0.01
    %v2064 = vmul.f32 %v1030, 0.01
    %v2065 = vmul.f32 %v1431, 0.01
    %v2066 = vmul.f32 %v1033, 0.01
    %v2067 = vmul.f32 %v1434, 0.01
    %v2068 = vmul.f32 %v1036, 0.01
    %v2069 = vmul.f32 %v1437, 0.01
    %v2070 = vmul.f32 %v1039, 0.01
    %v2071 = vmul.f32 %v1440, 0.01
    %v2072 = vmul.f32 %v1042, 0.01
    %v2073 = vmul.f32 %v1443, 0.01
    %v2074 = vmul.f32 %v1045, 0.01
    %v2075 = vmul.f32 %v1446, 0.01
    %v2076 = vmul.f32 %v1048, 0.01
    %v2077 = vmul.f32 %v1449, 0.01
    %v2078 = vmul.f32 %v1051, 0.01
    %v2079 = vmul.f32 %v1452, 0.01
    %v2080 = vmul.f32 %v1054, 0.01
    %v2081 = vmul.f32 %v1455, 0.01
    %v2082 = vmul.f32 %v1057, 0.01
    %v2083 = vmul.f32 %v1458, 0.01
    %v2084 = vmul.f32 %v1060, 0.01
    %v2085 = vmul.f32 %v1461, 0.01
    %v2086 = vmul.f32 %v1063, 0.01
    %v2087 = vmul.f32 %v1464, 0.01
    %v2088 = vmul.f32 %v1066, 0.01
    %v2089 = vmul.f32 %v1467, 0.01
    %v2090 = vmul.f32 %v1069, 0.01
    %v2091 = vmul.f32 %v1470, 0.01
    %v2092 = vmul.f32 %v1072, 0.01
    %v2093 = vmul.f32 %v1473, 0.01
    %v2094 = vmul.f32 %v1075, 0.01
    %v2095 = vmul.f32 %v1476, 0.01
    %v2096 = vmul.f32 %v1078, 0.01
    %v2097 = vmul.f32 %v1479, 0.01
    %v2098 = vmul.f32 %v1081, 0.01
    %v2099 = vmul.f32 %v1482, 0.01
    %v2100 = vmul.f32 %v1084, 0.01
    %v2101 = vmul.f32 %v1485, 0.01
    %v2102 = vmul.f32 %v1087, 0.01
    %v2103 = vmul.f32 %v1488, 0.01
    %v2104 = vmul.f32 %v1090, 0.01
    %v2105 = vmul.f32 %v1491, 0.01
    %v2106 = vmul.f32 %v1093, 0.01
    %v2107 = vmul.f32 %v1494, 0.01
    %v2108 = vmul.f32 %v1096, 0.01
    %v2109 = vmul.f32 %v1497, 0.01
    %v2110 = vmul.f32 %v1099, 0.01
    %v2111 = vmul.f32 %v1500, 0.01
    %v2112 = vmul.f32 %v1102, 0.01
    %v2113 = vmul.f32 %v1503, 0.01
    %v2114 = vmul.f32 %v1105, 0.01
    %v2115 = vmul.f32 %v1506, 0.01
    %v2116 = vmul.f32 %v1108, 0.01
    %v2117 = vmul.f32 %v1509, 0.01
    %v2118 = vmul.f32 %v1111, 0.01
    %v2119 = vmul.f32 %v1512, 0.01
    %v2120 = vmul.f32 %v1114, 0.01
    %v2121 = vmul.f32 %v1515, 0.01
    %v2122 = vmul.f32 %v1117, 0.01
    %v2123 = vmul.f32 %v1518, 0.01
    %v2124 = vmul.f32 %v1120, 0.01
    %v2125 = vmul.f32 %v1521, 0.01
    %v2126 = vmul.f32 %v1123, 0.01
    %v2127 = vmul.f32 %v1524, 0.01
    %v2128 = vmul.f32 %v1126, 0.01
    %v2129 = vmul.f32 %v1527, 0.01
    %v2130 = vmul.f32 %v1129, 0.01
    %v2131 = vmul.f32 %v1530, 0.01
    %v2132 = vmul.f32 %v1132, 0.01
    %v2133 = vmul.f32 %v1533, 0.01
    %v2134 = vmul.f32 %v1135, 0.01
    %v2135 = vmul.f32 %v1536, 0.01
    %v2136 = vmul.f32 %v1138, 0.01
    %v2137 = vmul.f32 %v1539, 0.01
    %v2138 = vmul.f32 %v1141, 0.01
    %v2139 = vmul.f32 %v1542, 0.01
    %v2140 = vmul.f32 %v1144, 0.01
    %v2141 = vmul.f32 %v1545, 0.01
    %v2142 = vmul.f32 %v1147, 0.01
    %v2143 = vmul.f32 %v1548, 0.01
    %v2144 = vmul.f32 %v1150, 0.01
    %v2145 = vmul.f32 %v1551, 0.01
    %v2146 = vmul.f32 %v1153, 0.01
    %v2147 = vmul.f32 %v1554, 0.01
    %v2148 = vmul.f32 %v1156, 0.01
    %v2149 = vmul.f32 %v1557, 0.01
    %v2150 = vmul.f32 %v1159, 0.01
    %v2151 = vmul.f32 %v1560, 0.01
    %v2152 = vmul.f32 %v1162, 0.01
    %v2153 = vmul.f32 %v1563, 0.01
    %v2154 = vmul.f32 %v1165, 0.01
    %v2155 = vmul.f32 %v1566, 0.01
    %v2156 = vmul.f32 %v1168, 0.01
    %v2157 = vmul.f32 %v1569, 0.01
    %v2158 = vmul.f32 %v1171, 0.01
    %v2159 = vmul.f32 %v1572, 0.01
    %v2160 = vmul.f32 %v1174, 0.01
    %v2161 = vmul.f32 %v1575, 0.01
    %v2162 = vmul.f32 %v1177, 0.01
    %v2163 = vmul.f32 %v1578, 0.01
    %v2164 = vmul.f32 %v1180, 0.01
    %v2165 = vmul.f32 %v1581, 0.01
    %v2166 = vmul.f32 %v1183, 0.01
    %v2167 = vmul.f32 %v1584, 0.01
    %v2168 = vmul.f32 %v1186, 0.01
    %v2169 = vmul.f32 %v1587, 0.01
    %v2170 = vmul.f32 %v1189, 0.01
    %v2171 = vmul.f32 %v1590, 0.01
    %v2172 = vmul.f32 %v1192, 0.01
    %v2173 = vmul.f32 %v1593, 0.01
    %v2174 = vmul.f32 %v1195, 0.01
    %v2175 = vmul.f32 %v1596, 0.01
    %v2176 = vmul.f32 %v1198, 0.01
    %v2177 = vmul.f32 %v1599, 0.01
    %v2178 = vmul.f32 %v1201, 0.01
    %v2179 = vmul.f32 %v1602, 0.01
    %v2180 = vmul.f32 %v1204, 0.01
    %v2181 = vmul.f32 %v1605, 0.01
    %v2182 = vmul.f32 %v1207, 0.01
    %v2183 = vmul.f32 %v1608, 0.01
    %v2184 = vmul.f32 %v1210, 0.01
    %v2185 = vmul.f32 %v1611, 0.01
    %v2186 = vmul.f32 %v1213, 0.01
    %v2187 = vmul.f32 %v1614, 0.01
    %v2188 = vmul.f32 %v1216, 0.01
    %v2189 = vmul.f32 %v1617, 0.01
    %v2190 = vmul.f32 %v1219, 0.01
    %v2191 = vmul.f32 %v1620, 0.01
    %v2192 = vmul.f32 %v1222, 0.01
    %v2193 = vmul.f32 %v1623, 0.01
    %v2194 = vmul.f32 %v1225, 0.01
    %v2195 = vmul.f32 %v1626, 0.01
    %v2196 = vmul.f32 %v1228, 0.01
    %v2197 = vmul.f32 %v1629, 0.01
    %v2198 = vmul.f32 %v1231, 0.01
    %v2199 = vmul.f32 %v1632, 0.01
    %v2200 = vmul.f32 %v1234, 0.01
    %v2201 = vmul.f32 %v1635, 0.01
    %v2202 = vmul.f32 %v1237, 0.01
    %v2203 = vmul.f32 %v1638, 0.01
    %v2204 = vmul.f32 %v1240, 0.01
    %v2205 = vmul.f32 %v1641, 0.01
    %v2206 = vmul.f32 %v1243, 0.01
    %v2207 = vmul.f32 %v1644, 0.01
    %v2208 = vmul.f32 %v1246, 0.01
    %v2209 = vmul.f32 %v1647, 0.01
    %v2210 = vmul.f32 %v1249, 0.01
    %v2211 = vmul.f32 %v1650, 0.01
    %v2212 = vmul.f32 %v1252, 0.01
    %v2213 = vmul.f32 %v1653, 0.01
    %v2214 = vmul.f32 %v1255, 0.01
    %v2215 = vmul.f32 %v1656, 0.01
    %v2216 = vmul.f32 %v1258, 0.01
    %v2217 = vmul.f32 %v1659, 0.01
    %v2218 = vmul.f32 %v1261, 0.01
    %v2219 = vmul.f32 %v1662, 0.01
    %v2220 = vmul.f32 %v1264, 0.01
    %v2221 = vmul.f32 %v1665, 0.01
    %v2222 = vmul.f32 %v1267, 0.01
    %v2223 = vmul.f32 %v1668, 0.01
    %v2224 = vmul.f32 %v1270, 0.01
    %v2225 = vmul.f32 %v1671, 0.01
    %v2226 = vmul.f32 %v1273, 0.01
    %v2227 = vmul.f32 %v1674, 0.01
    %v2228 = vmul.f32 %v1276, 0.01
    %v2229 = vmul.f32 %v1677, 0.01
    %v2230 = vmul.f32 %v1279, 0.01
    %v2231 = vmul.f32 %v1680, 0.01
    %v2232 = vmul.f32 %v1282, 0.01
    %v2233 = vmul.f32 %v1683, 0.01
    %v2234 = vmul.f32 %v1285, 0.01
    %v2235 = vmul.f32 %v1686, 0.01
    %v2236 = vmul.f32 %v1288, 0.01
    %v2237 = vmul.f32 %v1689, 0.01
    %v2238 = vmul.f32 %v1291, 0.01
    %v2239 = vmul.f32 %v1692, 0.01
    %v2240 = vmul.f32 %v1294, 0.01
    %v2241 = vmul.f32 %v1695, 0.01
    %v2242 = vmul.f32 %v1297, 0.01
    %v2243 = vmul.f32 %v1698, 0.01
    %v2244 = vmul.f32 %v1300, 0.01
    %v2245 = vmul.f32 %v1701, 0.01
    %v2246 = vmul.f32 %v1303, 0.01
    %v2247 = vmul.f32 %v1704, 0.01
    %v2248 = vmul.f32 %v1306, 0.01
    %v2249 = vmul.f32 %v1707, 0.01
    %v2250 = vmul.f32 %v1309, 0.01
    %v2251 = vmul.f32 %v1710, 0.01
    %v2252 = vmul.f32 %v1312, 0.01
    %v2253 = vmul.f32 %v1713, 0.01
    %v2254 = vmul.f32 %v1315, 0.01
    %v2255 = vmul.f32 %v1716, 0.01
    %v2256 = vmul.f32 %v1318, 0.01
    %v2257 = vmul.f32 %v1719, 0.01
    %v2258 = vmul.f32 %v1321, 0.01
    %v2259 = vmul.f32 %v1722, 0.01
    %v2260 = vmul.f32 %v1324, 0.01
    %v2261 = vmul.f32 %v1725, 0.01
    %v2262 = vmul.f32 %v1327, 0.01
    %v2263 = vmul.f32 %v1728, 0.01
    %v2264 = vmul.f32 %v1330, 0.01
    %v2265 = vmul.f32 %v1731, 0.01
    %v2266 = vmul.f32 %v1333, 0.01
    %v2267 = vmul.f32 %v1734, 0.01
    %v2268 = vmul.f32 %v1336, 0.01
    %v2269 = vmul.f32 %v1737, 0.01
    %v2270 = vmul.f32 %v1339, 0.01
    %v2271 = vmul.f32 %v1740, 0.01
    %v2272 = vmul.f32 %v1342, 0.01
    %v2273 = vmul.f32 %v1743, 0.01
    %v2274 = vmul.f32 %v1345, 0.01
    %v2275 = vmul.f32 %v1746, 0.01
    %v2276 = vmul.f32 %v1348, 0.01
    %v2277 = vmul.f32 %v1749, 0.01
    %v2278 = vmul.f32 %v1351, 0.01
    %v2279 = vmul.f32 %v1752, 0.01
    %v2280 = vmul.f32 %v1354, 0.01
    %v2281 = vmul.f32 %v1755, 0.01
    %v2282 = vmul.f32 %v1357, 0.01
    %v2283 = vmul.f32 %v1758, 0.01
    %v2284 = vmul.f32 %v1360, 0.01
    %v2285 = vmul.f32 %v1761, 0.01
    %v2286 = vmul.f32 %v1363, 0.01
    %v2287 = vmul.f32 %v1764, 0.01
    %v2288 = vmul.f32 %v1366, 0.01
    %v2289 = vmul.f32 %v1767, 0.01
    %v2290 = vmul.f32 %v1369, 0.01
    %v2291 = vmul.f32 %v1770, 0.01
    %v2292 = vmul.f32 %v1372, 0.01
    %v2293 = vmul.f32 %v1773, 0.01
    %v2294 = vmul.f32 %v1375, 0.01
    %v2295 = vmul.f32 %v1776, 0.01
    %v2296 = vmul.f32 %v1378, 0.01
    %v2297 = vmul.f32 %v1779, 0.01
    %v2298 = vmul.f32 %v1381, 0.01
    %v2299 = vmul.f32 %v1782, 0.01
    %v2300 = vmul.f32 %v1384, 0.01
    %v2301 = vmul.f32 %v1785, 0.01
    %v2302 = vmul.f32 %v1387, 0.01
    %v2303 = vmul.f32 %v1788, 0.01
    %v2304 = vmul.f32 %v1390, 0.01
    %v2305 = vmul.f32 %v1791, 0.01
    %v2306 = vmul.f32 %v1393, 0.01
    %v2307 = vmul.f32 %v1794, 0.01
    %v2308 = vsel %vm1796, %v1012, %v2052
    %v2309 = vsel %vm1797, %v1413, %v2053
    %v2310 = vsel %vm1798, %v1015, %v2054
    %v2311 = vsel %vm1799, %v1416, %v2055
    %v2312 = vsel %vm1800, %v1018, %v2056
    %v2313 = vsel %vm1801, %v1419, %v2057
    %v2314 = vsel %vm1802, %v1021, %v2058
    %v2315 = vsel %vm1803, %v1422, %v2059
    %v2316 = vsel %vm1804, %v1024, %v2060
    %v2317 = vsel %vm1805, %v1425, %v2061
    %v2318 = vsel %vm1806, %v1027, %v2062
    %v2319 = vsel %vm1807, %v1428, %v2063
    %v2320 = vsel %vm1808, %v1030, %v2064
    %v2321 = vsel %vm1809, %v1431, %v2065
    %v2322 = vsel %vm1810, %v1033, %v2066
    %v2323 = vsel %vm1811, %v1434, %v2067
    %v2324 = vsel %vm1812, %v1036, %v2068
    %v2325 = vsel %vm1813, %v1437, %v2069
    %v2326 = vsel %vm1814, %v1039, %v2070
    %v2327 = vsel %vm1815, %v1440, %v2071
    %v2328 = vsel %vm1816, %v1042, %v2072
    %v2329 = vsel %vm1817, %v1443, %v2073
    %v2330 = vsel %vm1818, %v1045, %v2074
    %v2331 = vsel %vm1819, %v1446, %v2075
    %v2332 = vsel %vm1820, %v1048, %v2076
    %v2333 = vsel %vm1821, %v1449, %v2077
    %v2334 = vsel %vm1822, %v1051, %v2078
    %v2335 = vsel %vm1823, %v1452, %v2079
    %v2336 = vsel %vm1824, %v1054, %v2080
    %v2337 = vsel %vm1825, %v1455, %v2081
    %v2338 = vsel %vm1826, %v1057, %v2082
    %v2339 = vsel %vm1827, %v1458, %v2083
    %v2340 = vsel %vm1828, %v1060, %v2084
    %v2341 = vsel %vm1829, %v1461, %v2085
    %v2342 = vsel %vm1830, %v1063, %v2086
    %v2343 = vsel %vm1831, %v1464, %v2087
    %v2344 = vsel %vm1832, %v1066, %v2088
    %v2345 = vsel %vm1833, %v1467, %v2089
    %v2346 = vsel %vm1834, %v1069, %v2090
    %v2347 = vsel %vm1835, %v1470, %v2091
    %v2348 = vsel %vm1836, %v1072, %v2092
    %v2349 = vsel %vm1837, %v1473, %v2093
    %v2350 = vsel %vm1838, %v1075, %v2094
    %v2351 = vsel %vm1839, %v1476, %v2095
    %v2352 = vsel %vm1840, %v1078, %v2096
    %v2353 = vsel %vm1841, %v1479, %v2097
    %v2354 = vsel %vm1842, %v1081, %v2098
    %v2355 = vsel %vm1843, %v1482, %v2099
    %v2356 = vsel %vm1844, %v1084, %v2100
    %v2357 = vsel %vm1845, %v1485, %v2101
    %v2358 = vsel %vm1846, %v1087, %v2102
    %v2359 = vsel %vm1847, %v1488, %v2103
    %v2360 = vsel %vm1848, %v1090, %v2104
    %v2361 = vsel %vm1849, %v1491, %v2105
    %v2362 = vsel %vm1850, %v1093, %v2106
    %v2363 = vsel %vm1851, %v1494, %v2107
    %v2364 = vsel %vm1852, %v1096, %v2108
    %v2365 = vsel %vm1853, %v1497, %v2109
    %v2366 = vsel %vm1854, %v1099, %v2110
    %v2367 = vsel %vm1855, %v1500, %v2111
    %v2368 = vsel %vm1856, %v1102, %v2112
    %v2369 = vsel %vm1857, %v1503, %v2113
    %v2370 = vsel %vm1858, %v1105, %v2114
    %v2371 = vsel %vm1859, %v1506, %v2115
    %v2372 = vsel %vm1860, %v1108, %v2116
    %v2373 = vsel %vm1861, %v1509, %v2117
    %v2374 = vsel %vm1862, %v1111, %v2118
    %v2375 = vsel %vm1863, %v1512, %v2119
    %v2376 = vsel %vm1864, %v1114, %v2120
    %v2377 = vsel %vm1865, %v1515, %v2121
    %v2378 = vsel %vm1866, %v1117, %v2122
    %v2379 = vsel %vm1867, %v1518, %v2123
    %v2380 = vsel %vm1868, %v1120, %v2124
    %v2381 = vsel %vm1869, %v1521, %v2125
    %v2382 = vsel %vm1870, %v1123, %v2126
    %v2383 = vsel %vm1871, %v1524, %v2127
    %v2384 = vsel %vm1872, %v1126, %v2128
    %v2385 = vsel %vm1873, %v1527, %v2129
    %v2386 = vsel %vm1874, %v1129, %v2130
    %v2387 = vsel %vm1875, %v1530, %v2131
    %v2388 = vsel %vm1876, %v1132, %v2132
    %v2389 = vsel %vm1877, %v1533, %v2133
    %v2390 = vsel %vm1878, %v1135, %v2134
    %v2391 = vsel %vm1879, %v1536, %v2135
    %v2392 = vsel %vm1880, %v1138, %v2136
    %v2393 = vsel %vm1881, %v1539, %v2137
    %v2394 = vsel %vm1882, %v1141, %v2138
    %v2395 = vsel %vm1883, %v1542, %v2139
    %v2396 = vsel %vm1884, %v1144, %v2140
    %v2397 = vsel %vm1885, %v1545, %v2141
    %v2398 = vsel %vm1886, %v1147, %v2142
    %v2399 = vsel %vm1887, %v1548, %v2143
    %v2400 = vsel %vm1888, %v1150, %v2144
    %v2401 = vsel %vm1889, %v1551, %v2145
    %v2402 = vsel %vm1890, %v1153, %v2146
    %v2403 = vsel %vm1891, %v1554, %v2147
    %v2404 = vsel %vm1892, %v1156, %v2148
    %v2405 = vsel %vm1893, %v1557, %v2149
    %v2406 = vsel %vm1894, %v1159, %v2150
    %v2407 = vsel %vm1895, %v1560, %v2151
    %v2408 = vsel %vm1896, %v1162, %v2152
    %v2409 = vsel %vm1897, %v1563, %v2153
    %v2410 = vsel %vm1898, %v1165, %v2154
    %v2411 = vsel %vm1899, %v1566, %v2155
    %v2412 = vsel %vm1900, %v1168, %v2156
    %v2413 = vsel %vm1901, %v1569, %v2157
    %v2414 = vsel %vm1902, %v1171, %v2158
    %v2415 = vsel %vm1903, %v1572, %v2159
    %v2416 = vsel %vm1904, %v1174, %v2160
    %v2417 = vsel %vm1905, %v1575, %v2161
    %v2418 = vsel %vm1906, %v1177, %v2162
    %v2419 = vsel %vm1907, %v1578, %v2163
    %v2420 = vsel %vm1908, %v1180, %v2164
    %v2421 = vsel %vm1909, %v1581, %v2165
    %v2422 = vsel %vm1910, %v1183, %v2166
    %v2423 = vsel %vm1911, %v1584, %v2167
    %v2424 = vsel %vm1912, %v1186, %v2168
    %v2425 = vsel %vm1913, %v1587, %v2169
    %v2426 = vsel %vm1914, %v1189, %v2170
    %v2427 = vsel %vm1915, %v1590, %v2171
    %v2428 = vsel %vm1916, %v1192, %v2172
    %v2429 = vsel %vm1917, %v1593, %v2173
    %v2430 = vsel %vm1918, %v1195, %v2174
    %v2431 = vsel %vm1919, %v1596, %v2175
    %v2432 = vsel %vm1920, %v1198, %v2176
    %v2433 = vsel %vm1921, %v1599, %v2177
    %v2434 = vsel %vm1922, %v1201, %v2178
    %v2435 = vsel %vm1923, %v1602, %v2179
    %v2436 = vsel %vm1924, %v1204, %v2180
    %v2437 = vsel %vm1925, %v1605, %v2181
    %v2438 = vsel %vm1926, %v1207, %v2182
    %v2439 = vsel %vm1927, %v1608, %v2183
    %v2440 = vsel %vm1928, %v1210, %v2184
    %v2441 = vsel %vm1929, %v1611, %v2185
    %v2442 = vsel %vm1930, %v1213, %v2186
    %v2443 = vsel %vm1931, %v1614, %v2187
    %v2444 = vsel %vm1932, %v1216, %v2188
    %v2445 = vsel %vm1933, %v1617, %v2189
    %v2446 = vsel %vm1934, %v1219, %v2190
    %v2447 = vsel %vm1935, %v1620, %v2191
    %v2448 = vsel %vm1936, %v1222, %v2192
    %v2449 = vsel %vm1937, %v1623, %v2193
    %v2450 = vsel %vm1938, %v1225, %v2194
    %v2451 = vsel %vm1939, %v1626, %v2195
    %v2452 = vsel %vm1940, %v1228, %v2196
    %v2453 = vsel %vm1941, %v1629, %v2197
    %v2454 = vsel %vm1942, %v1231, %v2198
    %v2455 = vsel %vm1943, %v1632, %v2199
    %v2456 = vsel %vm1944, %v1234, %v2200
    %v2457 = vsel %vm1945, %v1635, %v2201
    %v2458 = vsel %vm1946, %v1237, %v2202
    %v2459 = vsel %vm1947, %v1638, %v2203
    %v2460 = vsel %vm1948, %v1240, %v2204
    %v2461 = vsel %vm1949, %v1641, %v2205
    %v2462 = vsel %vm1950, %v1243, %v2206
    %v2463 = vsel %vm1951, %v1644, %v2207
    %v2464 = vsel %vm1952, %v1246, %v2208
    %v2465 = vsel %vm1953, %v1647, %v2209
    %v2466 = vsel %vm1954, %v1249, %v2210
    %v2467 = vsel %vm1955, %v1650, %v2211
    %v2468 = vsel %vm1956, %v1252, %v2212
    %v2469 = vsel %vm1957, %v1653, %v2213
    %v2470 = vsel %vm1958, %v1255, %v2214
    %v2471 = vsel %vm1959, %v1656, %v2215
    %v2472 = vsel %vm1960, %v1258, %v2216
    %v2473 = vsel %vm1961, %v1659, %v2217
    %v2474 = vsel %vm1962, %v1261, %v2218
    %v2475 = vsel %vm1963, %v1662, %v2219
    %v2476 = vsel %vm1964, %v1264, %v2220
    %v2477 = vsel %vm1965, %v1665, %v2221
    %v2478 = vsel %vm1966, %v1267, %v2222
    %v2479 = vsel %vm1967, %v1668, %v2223
    %v2480 = vsel %vm1968, %v1270, %v2224
    %v2481 = vsel %vm1969, %v1671, %v2225
    %v2482 = vsel %vm1970, %v1273, %v2226
    %v2483 = vsel %vm1971, %v1674, %v2227
    %v2484 = vsel %vm1972, %v1276, %v2228
    %v2485 = vsel %vm1973, %v1677, %v2229
    %v2486 = vsel %vm1974, %v1279, %v2230
    %v2487 = vsel %vm1975, %v1680, %v2231
    %v2488 = vsel %vm1976, %v1282, %v2232
    %v2489 = vsel %vm1977, %v1683, %v2233
    %v2490 = vsel %vm1978, %v1285, %v2234
    %v2491 = vsel %vm1979, %v1686, %v2235
    %v2492 = vsel %vm1980, %v1288, %v2236
    %v2493 = vsel %vm1981, %v1689, %v2237
    %v2494 = vsel %vm1982, %v1291, %v2238
    %v2495 = vsel %vm1983, %v1692, %v2239
    %v2496 = vsel %vm1984, %v1294, %v2240
    %v2497 = vsel %vm1985, %v1695, %v2241
    %v2498 = vsel %vm1986, %v1297, %v2242
    %v2499 = vsel %vm1987, %v1698, %v2243
    %v2500 = vsel %vm1988, %v1300, %v2244
    %v2501 = vsel %vm1989, %v1701, %v2245
    %v2502 = vsel %vm1990, %v1303, %v2246
    %v2503 = vsel %vm1991, %v1704, %v2247
    %v2504 = vsel %vm1992, %v1306, %v2248
    %v2505 = vsel %vm1993, %v1707, %v2249
    %v2506 = vsel %vm1994, %v1309, %v2250
    %v2507 = vsel %vm1995, %v1710, %v2251
    %v2508 = vsel %vm1996, %v1312, %v2252
    %v2509 = vsel %vm1997, %v1713, %v2253
    %v2510 = vsel %vm1998, %v1315, %v2254
    %v2511 = vsel %vm1999, %v1716, %v2255
    %v2512 = vsel %vm2000, %v1318, %v2256
    %v2513 = vsel %vm2001, %v1719, %v2257
    %v2514 = vsel %vm2002, %v1321, %v2258
    %v2515 = vsel %vm2003, %v1722, %v2259
    %v2516 = vsel %vm2004, %v1324, %v2260
    %v2517 = vsel %vm2005, %v1725, %v2261
    %v2518 = vsel %vm2006, %v1327, %v2262
    %v2519 = vsel %vm2007, %v1728, %v2263
    %v2520 = vsel %vm2008, %v1330, %v2264
    %v2521 = vsel %vm2009, %v1731, %v2265
    %v2522 = vsel %vm2010, %v1333, %v2266
    %v2523 = vsel %vm2011, %v1734, %v2267
    %v2524 = vsel %vm2012, %v1336, %v2268
    %v2525 = vsel %vm2013, %v1737, %v2269
    %v2526 = vsel %vm2014, %v1339, %v2270
    %v2527 = vsel %vm2015, %v1740, %v2271
    %v2528 = vsel %vm2016, %v1342, %v2272
    %v2529 = vsel %vm2017, %v1743, %v2273
    %v2530 = vsel %vm2018, %v1345, %v2274
    %v2531 = vsel %vm2019, %v1746, %v2275
    %v2532 = vsel %vm2020, %v1348, %v2276
    %v2533 = vsel %vm2021, %v1749, %v2277
    %v2534 = vsel %vm2022, %v1351, %v2278
    %v2535 = vsel %vm2023, %v1752, %v2279
    %v2536 = vsel %vm2024, %v1354, %v2280
    %v2537 = vsel %vm2025, %v1755, %v2281
    %v2538 = vsel %vm2026, %v1357, %v2282
    %v2539 = vsel %vm2027, %v1758, %v2283
    %v2540 = vsel %vm2028, %v1360, %v2284
    %v2541 = vsel %vm2029, %v1761, %v2285
    %v2542 = vsel %vm2030, %v1363, %v2286
    %v2543 = vsel %vm2031, %v1764, %v2287
    %v2544 = vsel %vm2032, %v1366, %v2288
    %v2545 = vsel %vm2033, %v1767, %v2289
    %v2546 = vsel %vm2034, %v1369, %v2290
    %v2547 = vsel %vm2035, %v1770, %v2291
    %v2548 = vsel %vm2036, %v1372, %v2292
    %v2549 = vsel %vm2037, %v1773, %v2293
    %v2550 = vsel %vm2038, %v1375, %v2294
    %v2551 = vsel %vm2039, %v1776, %v2295
    %v2552 = vsel %vm2040, %v1378, %v2296
    %v2553 = vsel %vm2041, %v1779, %v2297
    %v2554 = vsel %vm2042, %v1381, %v2298
    %v2555 = vsel %vm2043, %v1782, %v2299
    %v2556 = vsel %vm2044, %v1384, %v2300
    %v2557 = vsel %vm2045, %v1785, %v2301
    %v2558 = vsel %vm2046, %v1387, %v2302
    %v2559 = vsel %vm2047, %v1788, %v2303
    %v2560 = vsel %vm2048, %v1390, %v2304
    %v2561 = vsel %vm2049, %v1791, %v2305
    %v2562 = vsel %vm2050, %v1393, %v2306
    %v2563 = vsel %vm2051, %v1794, %v2307
    %v2564 = vld [vmem:[%s3] sm:$0xff]
    %v2565 = vld [vmem:[%s3 + $0x8] sm:$0xff]
    %v2566 = vld [vmem:[%s3 + $0x10] sm:$0xff]
    %v2567 = vld [vmem:[%s3 + $0x18] sm:$0xff]
    %v2568 = vld [vmem:[%s3 + $0x20] sm:$0xff]
    %v2569 = vld [vmem:[%s3 + $0x28] sm:$0xff]
    %v2570 = vld [vmem:[%s3 + $0x30] sm:$0xff]
    %v2571 = vld [vmem:[%s3 + $0x38] sm:$0xff]
    %v2572 = vld [vmem:[%s3 + $0x40] sm:$0xff]
    %v2573 = vld [vmem:[%s3 + $0x48] sm:$0xff]
    %v2574 = vld [vmem:[%s3 + $0x50] sm:$0xff]
    %v2575 = vld [vmem:[%s3 + $0x58] sm:$0xff]
    %v2576 = vld [vmem:[%s3 + $0x60] sm:$0xff]
    %v2577 = vld [vmem:[%s3 + $0x68] sm:$0xff]
    %v2578 = vld [vmem:[%s3 + $0x70] sm:$0xff]
    %v2579 = vld [vmem:[%s3 + $0x78] sm:$0xff]
    %v2580 = vld [vmem:[%s3 + $0x80] sm:$0xff]
    %v2581 = vld [vmem:[%s3 + $0x88] sm:$0xff]
    %v2582 = vld [vmem:[%s3 + $0x90] sm:$0xff]
    %v2583 = vld [vmem:[%s3 + $0x98] sm:$0xff]
    %v2584 = vld [vmem:[%s3 + $0xa0] sm:$0xff]
    %v2585 = vld [vmem:[%s3 + $0xa8] sm:$0xff]
    %v2586 = vld [vmem:[%s3 + $0xb0] sm:$0xff]
    %v2587 = vld [vmem:[%s3 + $0xb8] sm:$0xff]
    %v2588 = vld [vmem:[%s3 + $0xc0] sm:$0xff]
    %v2589 = vld [vmem:[%s3 + $0xc8] sm:$0xff]
    %v2590 = vld [vmem:[%s3 + $0xd0] sm:$0xff]
    %v2591 = vld [vmem:[%s3 + $0xd8] sm:$0xff]
    %v2592 = vld [vmem:[%s3 + $0xe0] sm:$0xff]
    %v2593 = vld [vmem:[%s3 + $0xe8] sm:$0xff]
    %v2594 = vld [vmem:[%s3 + $0xf0] sm:$0xff]
    %v2595 = vld [vmem:[%s3 + $0xf8] sm:$0xff]
    %2596 = vmatpush.msra.mxu0 %v2579
    %2597 = vmatpush.msra.mxu0 %v2578
    %2598 = vmatpush.msra.mxu0 %v2577
    %2599 = vmatpush.msra.mxu0 %v2576
    %2600 = vmatpush.msra.mxu0 %v2575
    %2601 = vmatpush.msra.mxu0 %v2574
    %2602 = vmatpush.msra.mxu0 %v2573
    %2603 = vmatpush.msra.mxu0 %v2572
    %2604 = vmatpush.msra.mxu0 %v2571
    %2605 = vmatpush.msra.mxu0 %v2570
    %2606 = vmatpush.msra.mxu0 %v2569
    %2607 = vmatpush.msra.mxu0 %v2568
    %2608 = vmatpush.msra.mxu0 %v2567
    %2609 = vmatpush.msra.mxu0 %v2566
    %2610 = vmatpush.msra.mxu0 %v2565
    %2611 = vmatpush.msra.mxu0 %v2564
    %2612 = vmatmul.f32.gmra.mxu0 %v2308
    %v2613 = vpop.f32.mrf.mxu0
    %v2614 = vadd.f32 0.0, %v2613
    %2615 = vmatmul.f32.gmra.mxu0 %v2310
    %v2616 = vpop.f32.mrf.mxu0
    %v2617 = vadd.f32 0.0, %v2616
    %2618 = vmatmul.f32.gmra.mxu0 %v2312
    %v2619 = vpop.f32.mrf.mxu0
    %v2620 = vadd.f32 0.0, %v2619
    %2621 = vmatmul.f32.gmra.mxu0 %v2314
    %v2622 = vpop.f32.mrf.mxu0
    %v2623 = vadd.f32 0.0, %v2622
    %2624 = vmatmul.f32.gmra.mxu0 %v2316
    %v2625 = vpop.f32.mrf.mxu0
    %v2626 = vadd.f32 0.0, %v2625
    %2627 = vmatmul.f32.gmra.mxu0 %v2318
    %v2628 = vpop.f32.mrf.mxu0
    %v2629 = vadd.f32 0.0, %v2628
    %2630 = vmatmul.f32.gmra.mxu0 %v2320
    %v2631 = vpop.f32.mrf.mxu0
    %v2632 = vadd.f32 0.0, %v2631
    %2633 = vmatmul.f32.gmra.mxu0 %v2322
    %v2634 = vpop.f32.mrf.mxu0
    %v2635 = vadd.f32 0.0, %v2634
    %2636 = vmatmul.f32.gmra.mxu0 %v2324
    %v2637 = vpop.f32.mrf.mxu0
    %v2638 = vadd.f32 0.0, %v2637
    %2639 = vmatmul.f32.gmra.mxu0 %v2326
    %v2640 = vpop.f32.mrf.mxu0
    %v2641 = vadd.f32 0.0, %v2640
    %2642 = vmatmul.f32.gmra.mxu0 %v2328
    %v2643 = vpop.f32.mrf.mxu0
    %v2644 = vadd.f32 0.0, %v2643
    %2645 = vmatmul.f32.gmra.mxu0 %v2330
    %v2646 = vpop.f32.mrf.mxu0
    %v2647 = vadd.f32 0.0, %v2646
    %2648 = vmatmul.f32.gmra.mxu0 %v2332
    %v2649 = vpop.f32.mrf.mxu0
    %v2650 = vadd.f32 0.0, %v2649
    %2651 = vmatmul.f32.gmra.mxu0 %v2334
    %v2652 = vpop.f32.mrf.mxu0
    %v2653 = vadd.f32 0.0, %v2652
    %2654 = vmatmul.f32.gmra.mxu0 %v2336
    %v2655 = vpop.f32.mrf.mxu0
    %v2656 = vadd.f32 0.0, %v2655
    %2657 = vmatmul.f32.gmra.mxu0 %v2338
    %v2658 = vpop.f32.mrf.mxu0
    %v2659 = vadd.f32 0.0, %v2658
    %2660 = vmatmul.f32.gmra.mxu0 %v2340
    %v2661 = vpop.f32.mrf.mxu0
    %v2662 = vadd.f32 0.0, %v2661
    %2663 = vmatmul.f32.gmra.mxu0 %v2342
    %v2664 = vpop.f32.mrf.mxu0
    %v2665 = vadd.f32 0.0, %v2664
    %2666 = vmatmul.f32.gmra.mxu0 %v2344
    %v2667 = vpop.f32.mrf.mxu0
    %v2668 = vadd.f32 0.0, %v2667
    %2669 = vmatmul.f32.gmra.mxu0 %v2346
    %v2670 = vpop.f32.mrf.mxu0
    %v2671 = vadd.f32 0.0, %v2670
    %2672 = vmatmul.f32.gmra.mxu0 %v2348
    %v2673 = vpop.f32.mrf.mxu0
    %v2674 = vadd.f32 0.0, %v2673
    %2675 = vmatmul.f32.gmra.mxu0 %v2350
    %v2676 = vpop.f32.mrf.mxu0
    %v2677 = vadd.f32 0.0, %v2676
    %2678 = vmatmul.f32.gmra.mxu0 %v2352
    %v2679 = vpop.f32.mrf.mxu0
    %v2680 = vadd.f32 0.0, %v2679
    %2681 = vmatmul.f32.gmra.mxu0 %v2354
    %v2682 = vpop.f32.mrf.mxu0
    %v2683 = vadd.f32 0.0, %v2682
    %2684 = vmatmul.f32.gmra.mxu0 %v2356
    %v2685 = vpop.f32.mrf.mxu0
    %v2686 = vadd.f32 0.0, %v2685
    %2687 = vmatmul.f32.gmra.mxu0 %v2358
    %v2688 = vpop.f32.mrf.mxu0
    %v2689 = vadd.f32 0.0, %v2688
    %2690 = vmatmul.f32.gmra.mxu0 %v2360
    %v2691 = vpop.f32.mrf.mxu0
    %v2692 = vadd.f32 0.0, %v2691
    %2693 = vmatmul.f32.gmra.mxu0 %v2362
    %v2694 = vpop.f32.mrf.mxu0
    %v2695 = vadd.f32 0.0, %v2694
    %2696 = vmatmul.f32.gmra.mxu0 %v2364
    %v2697 = vpop.f32.mrf.mxu0
    %v2698 = vadd.f32 0.0, %v2697
    %2699 = vmatmul.f32.gmra.mxu0 %v2366
    %v2700 = vpop.f32.mrf.mxu0
    %v2701 = vadd.f32 0.0, %v2700
    %2702 = vmatmul.f32.gmra.mxu0 %v2368
    %v2703 = vpop.f32.mrf.mxu0
    %v2704 = vadd.f32 0.0, %v2703
    %2705 = vmatmul.f32.gmra.mxu0 %v2370
    %v2706 = vpop.f32.mrf.mxu0
    %v2707 = vadd.f32 0.0, %v2706
    %2708 = vmatmul.f32.gmra.mxu0 %v2372
    %v2709 = vpop.f32.mrf.mxu0
    %v2710 = vadd.f32 0.0, %v2709
    %2711 = vmatmul.f32.gmra.mxu0 %v2374
    %v2712 = vpop.f32.mrf.mxu0
    %v2713 = vadd.f32 0.0, %v2712
    %2714 = vmatmul.f32.gmra.mxu0 %v2376
    %v2715 = vpop.f32.mrf.mxu0
    %v2716 = vadd.f32 0.0, %v2715
    %2717 = vmatmul.f32.gmra.mxu0 %v2378
    %v2718 = vpop.f32.mrf.mxu0
    %v2719 = vadd.f32 0.0, %v2718
    %2720 = vmatmul.f32.gmra.mxu0 %v2380
    %v2721 = vpop.f32.mrf.mxu0
    %v2722 = vadd.f32 0.0, %v2721
    %2723 = vmatmul.f32.gmra.mxu0 %v2382
    %v2724 = vpop.f32.mrf.mxu0
    %v2725 = vadd.f32 0.0, %v2724
    %2726 = vmatmul.f32.gmra.mxu0 %v2384
    %v2727 = vpop.f32.mrf.mxu0
    %v2728 = vadd.f32 0.0, %v2727
    %2729 = vmatmul.f32.gmra.mxu0 %v2386
    %v2730 = vpop.f32.mrf.mxu0
    %v2731 = vadd.f32 0.0, %v2730
    %2732 = vmatmul.f32.gmra.mxu0 %v2388
    %v2733 = vpop.f32.mrf.mxu0
    %v2734 = vadd.f32 0.0, %v2733
    %2735 = vmatmul.f32.gmra.mxu0 %v2390
    %v2736 = vpop.f32.mrf.mxu0
    %v2737 = vadd.f32 0.0, %v2736
    %2738 = vmatmul.f32.gmra.mxu0 %v2392
    %v2739 = vpop.f32.mrf.mxu0
    %v2740 = vadd.f32 0.0, %v2739
    %2741 = vmatmul.f32.gmra.mxu0 %v2394
    %v2742 = vpop.f32.mrf.mxu0
    %v2743 = vadd.f32 0.0, %v2742
    %2744 = vmatmul.f32.gmra.mxu0 %v2396
    %v2745 = vpop.f32.mrf.mxu0
    %v2746 = vadd.f32 0.0, %v2745
    %2747 = vmatmul.f32.gmra.mxu0 %v2398
    %v2748 = vpop.f32.mrf.mxu0
    %v2749 = vadd.f32 0.0, %v2748
    %2750 = vmatmul.f32.gmra.mxu0 %v2400
    %v2751 = vpop.f32.mrf.mxu0
    %v2752 = vadd.f32 0.0, %v2751
    %2753 = vmatmul.f32.gmra.mxu0 %v2402
    %v2754 = vpop.f32.mrf.mxu0
    %v2755 = vadd.f32 0.0, %v2754
    %2756 = vmatmul.f32.gmra.mxu0 %v2404
    %v2757 = vpop.f32.mrf.mxu0
    %v2758 = vadd.f32 0.0, %v2757
    %2759 = vmatmul.f32.gmra.mxu0 %v2406
    %v2760 = vpop.f32.mrf.mxu0
    %v2761 = vadd.f32 0.0, %v2760
    %2762 = vmatmul.f32.gmra.mxu0 %v2408
    %v2763 = vpop.f32.mrf.mxu0
    %v2764 = vadd.f32 0.0, %v2763
    %2765 = vmatmul.f32.gmra.mxu0 %v2410
    %v2766 = vpop.f32.mrf.mxu0
    %v2767 = vadd.f32 0.0, %v2766
    %2768 = vmatmul.f32.gmra.mxu0 %v2412
    %v2769 = vpop.f32.mrf.mxu0
    %v2770 = vadd.f32 0.0, %v2769
    %2771 = vmatmul.f32.gmra.mxu0 %v2414
    %v2772 = vpop.f32.mrf.mxu0
    %v2773 = vadd.f32 0.0, %v2772
    %2774 = vmatmul.f32.gmra.mxu0 %v2416
    %v2775 = vpop.f32.mrf.mxu0
    %v2776 = vadd.f32 0.0, %v2775
    %2777 = vmatmul.f32.gmra.mxu0 %v2418
    %v2778 = vpop.f32.mrf.mxu0
    %v2779 = vadd.f32 0.0, %v2778
    %2780 = vmatmul.f32.gmra.mxu0 %v2420
    %v2781 = vpop.f32.mrf.mxu0
    %v2782 = vadd.f32 0.0, %v2781
    %2783 = vmatmul.f32.gmra.mxu0 %v2422
    %v2784 = vpop.f32.mrf.mxu0
    %v2785 = vadd.f32 0.0, %v2784
    %2786 = vmatmul.f32.gmra.mxu0 %v2424
    %v2787 = vpop.f32.mrf.mxu0
    %v2788 = vadd.f32 0.0, %v2787
    %2789 = vmatmul.f32.gmra.mxu0 %v2426
    %v2790 = vpop.f32.mrf.mxu0
    %v2791 = vadd.f32 0.0, %v2790
    %2792 = vmatmul.f32.gmra.mxu0 %v2428
    %v2793 = vpop.f32.mrf.mxu0
    %v2794 = vadd.f32 0.0, %v2793
    %2795 = vmatmul.f32.gmra.mxu0 %v2430
    %v2796 = vpop.f32.mrf.mxu0
    %v2797 = vadd.f32 0.0, %v2796
    %2798 = vmatmul.f32.gmra.mxu0 %v2432
    %v2799 = vpop.f32.mrf.mxu0
    %v2800 = vadd.f32 0.0, %v2799
    %2801 = vmatmul.f32.gmra.mxu0 %v2434
    %v2802 = vpop.f32.mrf.mxu0
    %v2803 = vadd.f32 0.0, %v2802
    %2804 = vmatmul.f32.gmra.mxu0 %v2436
    %v2805 = vpop.f32.mrf.mxu0
    %v2806 = vadd.f32 0.0, %v2805
    %2807 = vmatmul.f32.gmra.mxu0 %v2438
    %v2808 = vpop.f32.mrf.mxu0
    %v2809 = vadd.f32 0.0, %v2808
    %2810 = vmatmul.f32.gmra.mxu0 %v2440
    %v2811 = vpop.f32.mrf.mxu0
    %v2812 = vadd.f32 0.0, %v2811
    %2813 = vmatmul.f32.gmra.mxu0 %v2442
    %v2814 = vpop.f32.mrf.mxu0
    %v2815 = vadd.f32 0.0, %v2814
    %2816 = vmatmul.f32.gmra.mxu0 %v2444
    %v2817 = vpop.f32.mrf.mxu0
    %v2818 = vadd.f32 0.0, %v2817
    %2819 = vmatmul.f32.gmra.mxu0 %v2446
    %v2820 = vpop.f32.mrf.mxu0
    %v2821 = vadd.f32 0.0, %v2820
    %2822 = vmatmul.f32.gmra.mxu0 %v2448
    %v2823 = vpop.f32.mrf.mxu0
    %v2824 = vadd.f32 0.0, %v2823
    %2825 = vmatmul.f32.gmra.mxu0 %v2450
    %v2826 = vpop.f32.mrf.mxu0
    %v2827 = vadd.f32 0.0, %v2826
    %2828 = vmatmul.f32.gmra.mxu0 %v2452
    %v2829 = vpop.f32.mrf.mxu0
    %v2830 = vadd.f32 0.0, %v2829
    %2831 = vmatmul.f32.gmra.mxu0 %v2454
    %v2832 = vpop.f32.mrf.mxu0
    %v2833 = vadd.f32 0.0, %v2832
    %2834 = vmatmul.f32.gmra.mxu0 %v2456
    %v2835 = vpop.f32.mrf.mxu0
    %v2836 = vadd.f32 0.0, %v2835
    %2837 = vmatmul.f32.gmra.mxu0 %v2458
    %v2838 = vpop.f32.mrf.mxu0
    %v2839 = vadd.f32 0.0, %v2838
    %2840 = vmatmul.f32.gmra.mxu0 %v2460
    %v2841 = vpop.f32.mrf.mxu0
    %v2842 = vadd.f32 0.0, %v2841
    %2843 = vmatmul.f32.gmra.mxu0 %v2462
    %v2844 = vpop.f32.mrf.mxu0
    %v2845 = vadd.f32 0.0, %v2844
    %2846 = vmatmul.f32.gmra.mxu0 %v2464
    %v2847 = vpop.f32.mrf.mxu0
    %v2848 = vadd.f32 0.0, %v2847
    %2849 = vmatmul.f32.gmra.mxu0 %v2466
    %v2850 = vpop.f32.mrf.mxu0
    %v2851 = vadd.f32 0.0, %v2850
    %2852 = vmatmul.f32.gmra.mxu0 %v2468
    %v2853 = vpop.f32.mrf.mxu0
    %v2854 = vadd.f32 0.0, %v2853
    %2855 = vmatmul.f32.gmra.mxu0 %v2470
    %v2856 = vpop.f32.mrf.mxu0
    %v2857 = vadd.f32 0.0, %v2856
    %2858 = vmatmul.f32.gmra.mxu0 %v2472
    %v2859 = vpop.f32.mrf.mxu0
    %v2860 = vadd.f32 0.0, %v2859
    %2861 = vmatmul.f32.gmra.mxu0 %v2474
    %v2862 = vpop.f32.mrf.mxu0
    %v2863 = vadd.f32 0.0, %v2862
    %2864 = vmatmul.f32.gmra.mxu0 %v2476
    %v2865 = vpop.f32.mrf.mxu0
    %v2866 = vadd.f32 0.0, %v2865
    %2867 = vmatmul.f32.gmra.mxu0 %v2478
    %v2868 = vpop.f32.mrf.mxu0
    %v2869 = vadd.f32 0.0, %v2868
    %2870 = vmatmul.f32.gmra.mxu0 %v2480
    %v2871 = vpop.f32.mrf.mxu0
    %v2872 = vadd.f32 0.0, %v2871
    %2873 = vmatmul.f32.gmra.mxu0 %v2482
    %v2874 = vpop.f32.mrf.mxu0
    %v2875 = vadd.f32 0.0, %v2874
    %2876 = vmatmul.f32.gmra.mxu0 %v2484
    %v2877 = vpop.f32.mrf.mxu0
    %v2878 = vadd.f32 0.0, %v2877
    %2879 = vmatmul.f32.gmra.mxu0 %v2486
    %v2880 = vpop.f32.mrf.mxu0
    %v2881 = vadd.f32 0.0, %v2880
    %2882 = vmatmul.f32.gmra.mxu0 %v2488
    %v2883 = vpop.f32.mrf.mxu0
    %v2884 = vadd.f32 0.0, %v2883
    %2885 = vmatmul.f32.gmra.mxu0 %v2490
    %v2886 = vpop.f32.mrf.mxu0
    %v2887 = vadd.f32 0.0, %v2886
    %2888 = vmatmul.f32.gmra.mxu0 %v2492
    %v2889 = vpop.f32.mrf.mxu0
    %v2890 = vadd.f32 0.0, %v2889
    %2891 = vmatmul.f32.gmra.mxu0 %v2494
    %v2892 = vpop.f32.mrf.mxu0
    %v2893 = vadd.f32 0.0, %v2892
    %2894 = vmatmul.f32.gmra.mxu0 %v2496
    %v2895 = vpop.f32.mrf.mxu0
    %v2896 = vadd.f32 0.0, %v2895
    %2897 = vmatmul.f32.gmra.mxu0 %v2498
    %v2898 = vpop.f32.mrf.mxu0
    %v2899 = vadd.f32 0.0, %v2898
    %2900 = vmatmul.f32.gmra.mxu0 %v2500
    %v2901 = vpop.f32.mrf.mxu0
    %v2902 = vadd.f32 0.0, %v2901
    %2903 = vmatmul.f32.gmra.mxu0 %v2502
    %v2904 = vpop.f32.mrf.mxu0
    %v2905 = vadd.f32 0.0, %v2904
    %2906 = vmatmul.f32.gmra.mxu0 %v2504
    %v2907 = vpop.f32.mrf.mxu0
    %v2908 = vadd.f32 0.0, %v2907
    %2909 = vmatmul.f32.gmra.mxu0 %v2506
    %v2910 = vpop.f32.mrf.mxu0
    %v2911 = vadd.f32 0.0, %v2910
    %2912 = vmatmul.f32.gmra.mxu0 %v2508
    %v2913 = vpop.f32.mrf.mxu0
    %v2914 = vadd.f32 0.0, %v2913
    %2915 = vmatmul.f32.gmra.mxu0 %v2510
    %v2916 = vpop.f32.mrf.mxu0
    %v2917 = vadd.f32 0.0, %v2916
    %2918 = vmatmul.f32.gmra.mxu0 %v2512
    %v2919 = vpop.f32.mrf.mxu0
    %v2920 = vadd.f32 0.0, %v2919
    %2921 = vmatmul.f32.gmra.mxu0 %v2514
    %v2922 = vpop.f32.mrf.mxu0
    %v2923 = vadd.f32 0.0, %v2922
    %2924 = vmatmul.f32.gmra.mxu0 %v2516
    %v2925 = vpop.f32.mrf.mxu0
    %v2926 = vadd.f32 0.0, %v2925
    %2927 = vmatmul.f32.gmra.mxu0 %v2518
    %v2928 = vpop.f32.mrf.mxu0
    %v2929 = vadd.f32 0.0, %v2928
    %2930 = vmatmul.f32.gmra.mxu0 %v2520
    %v2931 = vpop.f32.mrf.mxu0
    %v2932 = vadd.f32 0.0, %v2931
    %2933 = vmatmul.f32.gmra.mxu0 %v2522
    %v2934 = vpop.f32.mrf.mxu0
    %v2935 = vadd.f32 0.0, %v2934
    %2936 = vmatmul.f32.gmra.mxu0 %v2524
    %v2937 = vpop.f32.mrf.mxu0
    %v2938 = vadd.f32 0.0, %v2937
    %2939 = vmatmul.f32.gmra.mxu0 %v2526
    %v2940 = vpop.f32.mrf.mxu0
    %v2941 = vadd.f32 0.0, %v2940
    %2942 = vmatmul.f32.gmra.mxu0 %v2528
    %v2943 = vpop.f32.mrf.mxu0
    %v2944 = vadd.f32 0.0, %v2943
    %2945 = vmatmul.f32.gmra.mxu0 %v2530
    %v2946 = vpop.f32.mrf.mxu0
    %v2947 = vadd.f32 0.0, %v2946
    %2948 = vmatmul.f32.gmra.mxu0 %v2532
    %v2949 = vpop.f32.mrf.mxu0
    %v2950 = vadd.f32 0.0, %v2949
    %2951 = vmatmul.f32.gmra.mxu0 %v2534
    %v2952 = vpop.f32.mrf.mxu0
    %v2953 = vadd.f32 0.0, %v2952
    %2954 = vmatmul.f32.gmra.mxu0 %v2536
    %v2955 = vpop.f32.mrf.mxu0
    %v2956 = vadd.f32 0.0, %v2955
    %2957 = vmatmul.f32.gmra.mxu0 %v2538
    %v2958 = vpop.f32.mrf.mxu0
    %v2959 = vadd.f32 0.0, %v2958
    %2960 = vmatmul.f32.gmra.mxu0 %v2540
    %v2961 = vpop.f32.mrf.mxu0
    %v2962 = vadd.f32 0.0, %v2961
    %2963 = vmatmul.f32.gmra.mxu0 %v2542
    %v2964 = vpop.f32.mrf.mxu0
    %v2965 = vadd.f32 0.0, %v2964
    %2966 = vmatmul.f32.gmra.mxu0 %v2544
    %v2967 = vpop.f32.mrf.mxu0
    %v2968 = vadd.f32 0.0, %v2967
    %2969 = vmatmul.f32.gmra.mxu0 %v2546
    %v2970 = vpop.f32.mrf.mxu0
    %v2971 = vadd.f32 0.0, %v2970
    %2972 = vmatmul.f32.gmra.mxu0 %v2548
    %v2973 = vpop.f32.mrf.mxu0
    %v2974 = vadd.f32 0.0, %v2973
    %2975 = vmatmul.f32.gmra.mxu0 %v2550
    %v2976 = vpop.f32.mrf.mxu0
    %v2977 = vadd.f32 0.0, %v2976
    %2978 = vmatmul.f32.gmra.mxu0 %v2552
    %v2979 = vpop.f32.mrf.mxu0
    %v2980 = vadd.f32 0.0, %v2979
    %2981 = vmatmul.f32.gmra.mxu0 %v2554
    %v2982 = vpop.f32.mrf.mxu0
    %v2983 = vadd.f32 0.0, %v2982
    %2984 = vmatmul.f32.gmra.mxu0 %v2556
    %v2985 = vpop.f32.mrf.mxu0
    %v2986 = vadd.f32 0.0, %v2985
    %2987 = vmatmul.f32.gmra.mxu0 %v2558
    %v2988 = vpop.f32.mrf.mxu0
    %v2989 = vadd.f32 0.0, %v2988
    %2990 = vmatmul.f32.gmra.mxu0 %v2560
    %v2991 = vpop.f32.mrf.mxu0
    %v2992 = vadd.f32 0.0, %v2991
    %2993 = vmatmul.f32.gmra.mxu0 %v2562
    %v2994 = vpop.f32.mrf.mxu0
    %v2995 = vadd.f32 0.0, %v2994
    %2996 = vdwg.mxu0
    %2997 = vmatpush.msra.mxu0 %v2595
    %2998 = vmatpush.msra.mxu0 %v2594
    %2999 = vmatpush.msra.mxu0 %v2593
    %3000 = vmatpush.msra.mxu0 %v2592
    %3001 = vmatpush.msra.mxu0 %v2591
    %3002 = vmatpush.msra.mxu0 %v2590
    %3003 = vmatpush.msra.mxu0 %v2589
    %3004 = vmatpush.msra.mxu0 %v2588
    %3005 = vmatpush.msra.mxu0 %v2587
    %3006 = vmatpush.msra.mxu0 %v2586
    %3007 = vmatpush.msra.mxu0 %v2585
    %3008 = vmatpush.msra.mxu0 %v2584
    %3009 = vmatpush.msra.mxu0 %v2583
    %3010 = vmatpush.msra.mxu0 %v2582
    %3011 = vmatpush.msra.mxu0 %v2581
    %3012 = vmatpush.msra.mxu0 %v2580
    %3013 = vmatmul.f32.gmra.mxu0 %v2309
    %v3014 = vpop.f32.mrf.mxu0
    %v3015 = vadd.f32 %v2614, %v3014
    %3016 = vmatmul.f32.gmra.mxu0 %v2311
    %v3017 = vpop.f32.mrf.mxu0
    %v3018 = vadd.f32 %v2617, %v3017
    %3019 = vmatmul.f32.gmra.mxu0 %v2313
    %v3020 = vpop.f32.mrf.mxu0
    %v3021 = vadd.f32 %v2620, %v3020
    %3022 = vmatmul.f32.gmra.mxu0 %v2315
    %v3023 = vpop.f32.mrf.mxu0
    %v3024 = vadd.f32 %v2623, %v3023
    %3025 = vmatmul.f32.gmra.mxu0 %v2317
    %v3026 = vpop.f32.mrf.mxu0
    %v3027 = vadd.f32 %v2626, %v3026
    %3028 = vmatmul.f32.gmra.mxu0 %v2319
    %v3029 = vpop.f32.mrf.mxu0
    %v3030 = vadd.f32 %v2629, %v3029
    %3031 = vmatmul.f32.gmra.mxu0 %v2321
    %v3032 = vpop.f32.mrf.mxu0
    %v3033 = vadd.f32 %v2632, %v3032
    %3034 = vmatmul.f32.gmra.mxu0 %v2323
    %v3035 = vpop.f32.mrf.mxu0
    %v3036 = vadd.f32 %v2635, %v3035
    %3037 = vmatmul.f32.gmra.mxu0 %v2325
    %v3038 = vpop.f32.mrf.mxu0
    %v3039 = vadd.f32 %v2638, %v3038
    %3040 = vmatmul.f32.gmra.mxu0 %v2327
    %v3041 = vpop.f32.mrf.mxu0
    %v3042 = vadd.f32 %v2641, %v3041
    %3043 = vmatmul.f32.gmra.mxu0 %v2329
    %v3044 = vpop.f32.mrf.mxu0
    %v3045 = vadd.f32 %v2644, %v3044
    %3046 = vmatmul.f32.gmra.mxu0 %v2331
    %v3047 = vpop.f32.mrf.mxu0
    %v3048 = vadd.f32 %v2647, %v3047
    %3049 = vmatmul.f32.gmra.mxu0 %v2333
    %v3050 = vpop.f32.mrf.mxu0
    %v3051 = vadd.f32 %v2650, %v3050
    %3052 = vmatmul.f32.gmra.mxu0 %v2335
    %v3053 = vpop.f32.mrf.mxu0
    %v3054 = vadd.f32 %v2653, %v3053
    %3055 = vmatmul.f32.gmra.mxu0 %v2337
    %v3056 = vpop.f32.mrf.mxu0
    %v3057 = vadd.f32 %v2656, %v3056
    %3058 = vmatmul.f32.gmra.mxu0 %v2339
    %v3059 = vpop.f32.mrf.mxu0
    %v3060 = vadd.f32 %v2659, %v3059
    %3061 = vmatmul.f32.gmra.mxu0 %v2341
    %v3062 = vpop.f32.mrf.mxu0
    %v3063 = vadd.f32 %v2662, %v3062
    %3064 = vmatmul.f32.gmra.mxu0 %v2343
    %v3065 = vpop.f32.mrf.mxu0
    %v3066 = vadd.f32 %v2665, %v3065
    %3067 = vmatmul.f32.gmra.mxu0 %v2345
    %v3068 = vpop.f32.mrf.mxu0
    %v3069 = vadd.f32 %v2668, %v3068
    %3070 = vmatmul.f32.gmra.mxu0 %v2347
    %v3071 = vpop.f32.mrf.mxu0
    %v3072 = vadd.f32 %v2671, %v3071
    %3073 = vmatmul.f32.gmra.mxu0 %v2349
    %v3074 = vpop.f32.mrf.mxu0
    %v3075 = vadd.f32 %v2674, %v3074
    %3076 = vmatmul.f32.gmra.mxu0 %v2351
    %v3077 = vpop.f32.mrf.mxu0
    %v3078 = vadd.f32 %v2677, %v3077
    %3079 = vmatmul.f32.gmra.mxu0 %v2353
    %v3080 = vpop.f32.mrf.mxu0
    %v3081 = vadd.f32 %v2680, %v3080
    %3082 = vmatmul.f32.gmra.mxu0 %v2355
    %v3083 = vpop.f32.mrf.mxu0
    %v3084 = vadd.f32 %v2683, %v3083
    %3085 = vmatmul.f32.gmra.mxu0 %v2357
    %v3086 = vpop.f32.mrf.mxu0
    %v3087 = vadd.f32 %v2686, %v3086
    %3088 = vmatmul.f32.gmra.mxu0 %v2359
    %v3089 = vpop.f32.mrf.mxu0
    %v3090 = vadd.f32 %v2689, %v3089
    %3091 = vmatmul.f32.gmra.mxu0 %v2361
    %v3092 = vpop.f32.mrf.mxu0
    %v3093 = vadd.f32 %v2692, %v3092
    %3094 = vmatmul.f32.gmra.mxu0 %v2363
    %v3095 = vpop.f32.mrf.mxu0
    %v3096 = vadd.f32 %v2695, %v3095
    %3097 = vmatmul.f32.gmra.mxu0 %v2365
    %v3098 = vpop.f32.mrf.mxu0
    %v3099 = vadd.f32 %v2698, %v3098
    %3100 = vmatmul.f32.gmra.mxu0 %v2367
    %v3101 = vpop.f32.mrf.mxu0
    %v3102 = vadd.f32 %v2701, %v3101
    %3103 = vmatmul.f32.gmra.mxu0 %v2369
    %v3104 = vpop.f32.mrf.mxu0
    %v3105 = vadd.f32 %v2704, %v3104
    %3106 = vmatmul.f32.gmra.mxu0 %v2371
    %v3107 = vpop.f32.mrf.mxu0
    %v3108 = vadd.f32 %v2707, %v3107
    %3109 = vmatmul.f32.gmra.mxu0 %v2373
    %v3110 = vpop.f32.mrf.mxu0
    %v3111 = vadd.f32 %v2710, %v3110
    %3112 = vmatmul.f32.gmra.mxu0 %v2375
    %v3113 = vpop.f32.mrf.mxu0
    %v3114 = vadd.f32 %v2713, %v3113
    %3115 = vmatmul.f32.gmra.mxu0 %v2377
    %v3116 = vpop.f32.mrf.mxu0
    %v3117 = vadd.f32 %v2716, %v3116
    %3118 = vmatmul.f32.gmra.mxu0 %v2379
    %v3119 = vpop.f32.mrf.mxu0
    %v3120 = vadd.f32 %v2719, %v3119
    %3121 = vmatmul.f32.gmra.mxu0 %v2381
    %v3122 = vpop.f32.mrf.mxu0
    %v3123 = vadd.f32 %v2722, %v3122
    %3124 = vmatmul.f32.gmra.mxu0 %v2383
    %v3125 = vpop.f32.mrf.mxu0
    %v3126 = vadd.f32 %v2725, %v3125
    %3127 = vmatmul.f32.gmra.mxu0 %v2385
    %v3128 = vpop.f32.mrf.mxu0
    %v3129 = vadd.f32 %v2728, %v3128
    %3130 = vmatmul.f32.gmra.mxu0 %v2387
    %v3131 = vpop.f32.mrf.mxu0
    %v3132 = vadd.f32 %v2731, %v3131
    %3133 = vmatmul.f32.gmra.mxu0 %v2389
    %v3134 = vpop.f32.mrf.mxu0
    %v3135 = vadd.f32 %v2734, %v3134
    %3136 = vmatmul.f32.gmra.mxu0 %v2391
    %v3137 = vpop.f32.mrf.mxu0
    %v3138 = vadd.f32 %v2737, %v3137
    %3139 = vmatmul.f32.gmra.mxu0 %v2393
    %v3140 = vpop.f32.mrf.mxu0
    %v3141 = vadd.f32 %v2740, %v3140
    %3142 = vmatmul.f32.gmra.mxu0 %v2395
    %v3143 = vpop.f32.mrf.mxu0
    %v3144 = vadd.f32 %v2743, %v3143
    %3145 = vmatmul.f32.gmra.mxu0 %v2397
    %v3146 = vpop.f32.mrf.mxu0
    %v3147 = vadd.f32 %v2746, %v3146
    %3148 = vmatmul.f32.gmra.mxu0 %v2399
    %v3149 = vpop.f32.mrf.mxu0
    %v3150 = vadd.f32 %v2749, %v3149
    %3151 = vmatmul.f32.gmra.mxu0 %v2401
    %v3152 = vpop.f32.mrf.mxu0
    %v3153 = vadd.f32 %v2752, %v3152
    %3154 = vmatmul.f32.gmra.mxu0 %v2403
    %v3155 = vpop.f32.mrf.mxu0
    %v3156 = vadd.f32 %v2755, %v3155
    %3157 = vmatmul.f32.gmra.mxu0 %v2405
    %v3158 = vpop.f32.mrf.mxu0
    %v3159 = vadd.f32 %v2758, %v3158
    %3160 = vmatmul.f32.gmra.mxu0 %v2407
    %v3161 = vpop.f32.mrf.mxu0
    %v3162 = vadd.f32 %v2761, %v3161
    %3163 = vmatmul.f32.gmra.mxu0 %v2409
    %v3164 = vpop.f32.mrf.mxu0
    %v3165 = vadd.f32 %v2764, %v3164
    %3166 = vmatmul.f32.gmra.mxu0 %v2411
    %v3167 = vpop.f32.mrf.mxu0
    %v3168 = vadd.f32 %v2767, %v3167
    %3169 = vmatmul.f32.gmra.mxu0 %v2413
    %v3170 = vpop.f32.mrf.mxu0
    %v3171 = vadd.f32 %v2770, %v3170
    %3172 = vmatmul.f32.gmra.mxu0 %v2415
    %v3173 = vpop.f32.mrf.mxu0
    %v3174 = vadd.f32 %v2773, %v3173
    %3175 = vmatmul.f32.gmra.mxu0 %v2417
    %v3176 = vpop.f32.mrf.mxu0
    %v3177 = vadd.f32 %v2776, %v3176
    %3178 = vmatmul.f32.gmra.mxu0 %v2419
    %v3179 = vpop.f32.mrf.mxu0
    %v3180 = vadd.f32 %v2779, %v3179
    %3181 = vmatmul.f32.gmra.mxu0 %v2421
    %v3182 = vpop.f32.mrf.mxu0
    %v3183 = vadd.f32 %v2782, %v3182
    %3184 = vmatmul.f32.gmra.mxu0 %v2423
    %v3185 = vpop.f32.mrf.mxu0
    %v3186 = vadd.f32 %v2785, %v3185
    %3187 = vmatmul.f32.gmra.mxu0 %v2425
    %v3188 = vpop.f32.mrf.mxu0
    %v3189 = vadd.f32 %v2788, %v3188
    %3190 = vmatmul.f32.gmra.mxu0 %v2427
    %v3191 = vpop.f32.mrf.mxu0
    %v3192 = vadd.f32 %v2791, %v3191
    %3193 = vmatmul.f32.gmra.mxu0 %v2429
    %v3194 = vpop.f32.mrf.mxu0
    %v3195 = vadd.f32 %v2794, %v3194
    %3196 = vmatmul.f32.gmra.mxu0 %v2431
    %v3197 = vpop.f32.mrf.mxu0
    %v3198 = vadd.f32 %v2797, %v3197
    %3199 = vmatmul.f32.gmra.mxu0 %v2433
    %v3200 = vpop.f32.mrf.mxu0
    %v3201 = vadd.f32 %v2800, %v3200
    %3202 = vmatmul.f32.gmra.mxu0 %v2435
    %v3203 = vpop.f32.mrf.mxu0
    %v3204 = vadd.f32 %v2803, %v3203
    %3205 = vmatmul.f32.gmra.mxu0 %v2437
    %v3206 = vpop.f32.mrf.mxu0
    %v3207 = vadd.f32 %v2806, %v3206
    %3208 = vmatmul.f32.gmra.mxu0 %v2439
    %v3209 = vpop.f32.mrf.mxu0
    %v3210 = vadd.f32 %v2809, %v3209
    %3211 = vmatmul.f32.gmra.mxu0 %v2441
    %v3212 = vpop.f32.mrf.mxu0
    %v3213 = vadd.f32 %v2812, %v3212
    %3214 = vmatmul.f32.gmra.mxu0 %v2443
    %v3215 = vpop.f32.mrf.mxu0
    %v3216 = vadd.f32 %v2815, %v3215
    %3217 = vmatmul.f32.gmra.mxu0 %v2445
    %v3218 = vpop.f32.mrf.mxu0
    %v3219 = vadd.f32 %v2818, %v3218
    %3220 = vmatmul.f32.gmra.mxu0 %v2447
    %v3221 = vpop.f32.mrf.mxu0
    %v3222 = vadd.f32 %v2821, %v3221
    %3223 = vmatmul.f32.gmra.mxu0 %v2449
    %v3224 = vpop.f32.mrf.mxu0
    %v3225 = vadd.f32 %v2824, %v3224
    %3226 = vmatmul.f32.gmra.mxu0 %v2451
    %v3227 = vpop.f32.mrf.mxu0
    %v3228 = vadd.f32 %v2827, %v3227
    %3229 = vmatmul.f32.gmra.mxu0 %v2453
    %v3230 = vpop.f32.mrf.mxu0
    %v3231 = vadd.f32 %v2830, %v3230
    %3232 = vmatmul.f32.gmra.mxu0 %v2455
    %v3233 = vpop.f32.mrf.mxu0
    %v3234 = vadd.f32 %v2833, %v3233
    %3235 = vmatmul.f32.gmra.mxu0 %v2457
    %v3236 = vpop.f32.mrf.mxu0
    %v3237 = vadd.f32 %v2836, %v3236
    %3238 = vmatmul.f32.gmra.mxu0 %v2459
    %v3239 = vpop.f32.mrf.mxu0
    %v3240 = vadd.f32 %v2839, %v3239
    %3241 = vmatmul.f32.gmra.mxu0 %v2461
    %v3242 = vpop.f32.mrf.mxu0
    %v3243 = vadd.f32 %v2842, %v3242
    %3244 = vmatmul.f32.gmra.mxu0 %v2463
    %v3245 = vpop.f32.mrf.mxu0
    %v3246 = vadd.f32 %v2845, %v3245
    %3247 = vmatmul.f32.gmra.mxu0 %v2465
    %v3248 = vpop.f32.mrf.mxu0
    %v3249 = vadd.f32 %v2848, %v3248
    %3250 = vmatmul.f32.gmra.mxu0 %v2467
    %v3251 = vpop.f32.mrf.mxu0
    %v3252 = vadd.f32 %v2851, %v3251
    %3253 = vmatmul.f32.gmra.mxu0 %v2469
    %v3254 = vpop.f32.mrf.mxu0
    %v3255 = vadd.f32 %v2854, %v3254
    %3256 = vmatmul.f32.gmra.mxu0 %v2471
    %v3257 = vpop.f32.mrf.mxu0
    %v3258 = vadd.f32 %v2857, %v3257
    %3259 = vmatmul.f32.gmra.mxu0 %v2473
    %v3260 = vpop.f32.mrf.mxu0
    %v3261 = vadd.f32 %v2860, %v3260
    %3262 = vmatmul.f32.gmra.mxu0 %v2475
    %v3263 = vpop.f32.mrf.mxu0
    %v3264 = vadd.f32 %v2863, %v3263
    %3265 = vmatmul.f32.gmra.mxu0 %v2477
    %v3266 = vpop.f32.mrf.mxu0
    %v3267 = vadd.f32 %v2866, %v3266
    %3268 = vmatmul.f32.gmra.mxu0 %v2479
    %v3269 = vpop.f32.mrf.mxu0
    %v3270 = vadd.f32 %v2869, %v3269
    %3271 = vmatmul.f32.gmra.mxu0 %v2481
    %v3272 = vpop.f32.mrf.mxu0
    %v3273 = vadd.f32 %v2872, %v3272
    %3274 = vmatmul.f32.gmra.mxu0 %v2483
    %v3275 = vpop.f32.mrf.mxu0
    %v3276 = vadd.f32 %v2875, %v3275
    %3277 = vmatmul.f32.gmra.mxu0 %v2485
    %v3278 = vpop.f32.mrf.mxu0
    %v3279 = vadd.f32 %v2878, %v3278
    %3280 = vmatmul.f32.gmra.mxu0 %v2487
    %v3281 = vpop.f32.mrf.mxu0
    %v3282 = vadd.f32 %v2881, %v3281
    %3283 = vmatmul.f32.gmra.mxu0 %v2489
    %v3284 = vpop.f32.mrf.mxu0
    %v3285 = vadd.f32 %v2884, %v3284
    %3286 = vmatmul.f32.gmra.mxu0 %v2491
    %v3287 = vpop.f32.mrf.mxu0
    %v3288 = vadd.f32 %v2887, %v3287
    %3289 = vmatmul.f32.gmra.mxu0 %v2493
    %v3290 = vpop.f32.mrf.mxu0
    %v3291 = vadd.f32 %v2890, %v3290
    %3292 = vmatmul.f32.gmra.mxu0 %v2495
    %v3293 = vpop.f32.mrf.mxu0
    %v3294 = vadd.f32 %v2893, %v3293
    %3295 = vmatmul.f32.gmra.mxu0 %v2497
    %v3296 = vpop.f32.mrf.mxu0
    %v3297 = vadd.f32 %v2896, %v3296
    %3298 = vmatmul.f32.gmra.mxu0 %v2499
    %v3299 = vpop.f32.mrf.mxu0
    %v3300 = vadd.f32 %v2899, %v3299
    %3301 = vmatmul.f32.gmra.mxu0 %v2501
    %v3302 = vpop.f32.mrf.mxu0
    %v3303 = vadd.f32 %v2902, %v3302
    %3304 = vmatmul.f32.gmra.mxu0 %v2503
    %v3305 = vpop.f32.mrf.mxu0
    %v3306 = vadd.f32 %v2905, %v3305
    %3307 = vmatmul.f32.gmra.mxu0 %v2505
    %v3308 = vpop.f32.mrf.mxu0
    %v3309 = vadd.f32 %v2908, %v3308
    %3310 = vmatmul.f32.gmra.mxu0 %v2507
    %v3311 = vpop.f32.mrf.mxu0
    %v3312 = vadd.f32 %v2911, %v3311
    %3313 = vmatmul.f32.gmra.mxu0 %v2509
    %v3314 = vpop.f32.mrf.mxu0
    %v3315 = vadd.f32 %v2914, %v3314
    %3316 = vmatmul.f32.gmra.mxu0 %v2511
    %v3317 = vpop.f32.mrf.mxu0
    %v3318 = vadd.f32 %v2917, %v3317
    %3319 = vmatmul.f32.gmra.mxu0 %v2513
    %v3320 = vpop.f32.mrf.mxu0
    %v3321 = vadd.f32 %v2920, %v3320
    %3322 = vmatmul.f32.gmra.mxu0 %v2515
    %v3323 = vpop.f32.mrf.mxu0
    %v3324 = vadd.f32 %v2923, %v3323
    %3325 = vmatmul.f32.gmra.mxu0 %v2517
    %v3326 = vpop.f32.mrf.mxu0
    %v3327 = vadd.f32 %v2926, %v3326
    %3328 = vmatmul.f32.gmra.mxu0 %v2519
    %v3329 = vpop.f32.mrf.mxu0
    %v3330 = vadd.f32 %v2929, %v3329
    %3331 = vmatmul.f32.gmra.mxu0 %v2521
    %v3332 = vpop.f32.mrf.mxu0
    %v3333 = vadd.f32 %v2932, %v3332
    %3334 = vmatmul.f32.gmra.mxu0 %v2523
    %v3335 = vpop.f32.mrf.mxu0
    %v3336 = vadd.f32 %v2935, %v3335
    %3337 = vmatmul.f32.gmra.mxu0 %v2525
    %v3338 = vpop.f32.mrf.mxu0
    %v3339 = vadd.f32 %v2938, %v3338
    %3340 = vmatmul.f32.gmra.mxu0 %v2527
    %v3341 = vpop.f32.mrf.mxu0
    %v3342 = vadd.f32 %v2941, %v3341
    %3343 = vmatmul.f32.gmra.mxu0 %v2529
    %v3344 = vpop.f32.mrf.mxu0
    %v3345 = vadd.f32 %v2944, %v3344
    %3346 = vmatmul.f32.gmra.mxu0 %v2531
    %v3347 = vpop.f32.mrf.mxu0
    %v3348 = vadd.f32 %v2947, %v3347
    %3349 = vmatmul.f32.gmra.mxu0 %v2533
    %v3350 = vpop.f32.mrf.mxu0
    %v3351 = vadd.f32 %v2950, %v3350
    %3352 = vmatmul.f32.gmra.mxu0 %v2535
    %v3353 = vpop.f32.mrf.mxu0
    %v3354 = vadd.f32 %v2953, %v3353
    %3355 = vmatmul.f32.gmra.mxu0 %v2537
    %v3356 = vpop.f32.mrf.mxu0
    %v3357 = vadd.f32 %v2956, %v3356
    %3358 = vmatmul.f32.gmra.mxu0 %v2539
    %v3359 = vpop.f32.mrf.mxu0
    %v3360 = vadd.f32 %v2959, %v3359
    %3361 = vmatmul.f32.gmra.mxu0 %v2541
    %v3362 = vpop.f32.mrf.mxu0
    %v3363 = vadd.f32 %v2962, %v3362
    %3364 = vmatmul.f32.gmra.mxu0 %v2543
    %v3365 = vpop.f32.mrf.mxu0
    %v3366 = vadd.f32 %v2965, %v3365
    %3367 = vmatmul.f32.gmra.mxu0 %v2545
    %v3368 = vpop.f32.mrf.mxu0
    %v3369 = vadd.f32 %v2968, %v3368
    %3370 = vmatmul.f32.gmra.mxu0 %v2547
    %v3371 = vpop.f32.mrf.mxu0
    %v3372 = vadd.f32 %v2971, %v3371
    %3373 = vmatmul.f32.gmra.mxu0 %v2549
    %v3374 = vpop.f32.mrf.mxu0
    %v3375 = vadd.f32 %v2974, %v3374
    %3376 = vmatmul.f32.gmra.mxu0 %v2551
    %v3377 = vpop.f32.mrf.mxu0
    %v3378 = vadd.f32 %v2977, %v3377
    %3379 = vmatmul.f32.gmra.mxu0 %v2553
    %v3380 = vpop.f32.mrf.mxu0
    %v3381 = vadd.f32 %v2980, %v3380
    %3382 = vmatmul.f32.gmra.mxu0 %v2555
    %v3383 = vpop.f32.mrf.mxu0
    %v3384 = vadd.f32 %v2983, %v3383
    %3385 = vmatmul.f32.gmra.mxu0 %v2557
    %v3386 = vpop.f32.mrf.mxu0
    %v3387 = vadd.f32 %v2986, %v3386
    %3388 = vmatmul.f32.gmra.mxu0 %v2559
    %v3389 = vpop.f32.mrf.mxu0
    %v3390 = vadd.f32 %v2989, %v3389
    %3391 = vmatmul.f32.gmra.mxu0 %v2561
    %v3392 = vpop.f32.mrf.mxu0
    %v3393 = vadd.f32 %v2992, %v3392
    %3394 = vmatmul.f32.gmra.mxu0 %v2563
    %v3395 = vpop.f32.mrf.mxu0
    %v3396 = vadd.f32 %v2995, %v3395
    %3397 = vdwg.mxu0
    %vm3398 = vcmp.ge.f32.partialorder %v3015, 0.0
    %vm3399 = vcmp.ge.f32.partialorder %v3018, 0.0
    %vm3400 = vcmp.ge.f32.partialorder %v3021, 0.0
    %vm3401 = vcmp.ge.f32.partialorder %v3024, 0.0
    %vm3402 = vcmp.ge.f32.partialorder %v3027, 0.0
    %vm3403 = vcmp.ge.f32.partialorder %v3030, 0.0
    %vm3404 = vcmp.ge.f32.partialorder %v3033, 0.0
    %vm3405 = vcmp.ge.f32.partialorder %v3036, 0.0
    %vm3406 = vcmp.ge.f32.partialorder %v3039, 0.0
    %vm3407 = vcmp.ge.f32.partialorder %v3042, 0.0
    %vm3408 = vcmp.ge.f32.partialorder %v3045, 0.0
    %vm3409 = vcmp.ge.f32.partialorder %v3048, 0.0
    %vm3410 = vcmp.ge.f32.partialorder %v3051, 0.0
    %vm3411 = vcmp.ge.f32.partialorder %v3054, 0.0
    %vm3412 = vcmp.ge.f32.partialorder %v3057, 0.0
    %vm3413 = vcmp.ge.f32.partialorder %v3060, 0.0
    %vm3414 = vcmp.ge.f32.partialorder %v3063, 0.0
    %vm3415 = vcmp.ge.f32.partialorder %v3066, 0.0
    %vm3416 = vcmp.ge.f32.partialorder %v3069, 0.0
    %vm3417 = vcmp.ge.f32.partialorder %v3072, 0.0
    %vm3418 = vcmp.ge.f32.partialorder %v3075, 0.0
    %vm3419 = vcmp.ge.f32.partialorder %v3078, 0.0
    %vm3420 = vcmp.ge.f32.partialorder %v3081, 0.0
    %vm3421 = vcmp.ge.f32.partialorder %v3084, 0.0
    %vm3422 = vcmp.ge.f32.partialorder %v3087, 0.0
    %vm3423 = vcmp.ge.f32.partialorder %v3090, 0.0
    %vm3424 = vcmp.ge.f32.partialorder %v3093, 0.0
    %vm3425 = vcmp.ge.f32.partialorder %v3096, 0.0
    %vm3426 = vcmp.ge.f32.partialorder %v3099, 0.0
    %vm3427 = vcmp.ge.f32.partialorder %v3102, 0.0
    %vm3428 = vcmp.ge.f32.partialorder %v3105, 0.0
    %vm3429 = vcmp.ge.f32.partialorder %v3108, 0.0
    %vm3430 = vcmp.ge.f32.partialorder %v3111, 0.0
    %vm3431 = vcmp.ge.f32.partialorder %v3114, 0.0
    %vm3432 = vcmp.ge.f32.partialorder %v3117, 0.0
    %vm3433 = vcmp.ge.f32.partialorder %v3120, 0.0
    %vm3434 = vcmp.ge.f32.partialorder %v3123, 0.0
    %vm3435 = vcmp.ge.f32.partialorder %v3126, 0.0
    %vm3436 = vcmp.ge.f32.partialorder %v3129, 0.0
    %vm3437 = vcmp.ge.f32.partialorder %v3132, 0.0
    %vm3438 = vcmp.ge.f32.partialorder %v3135, 0.0
    %vm3439 = vcmp.ge.f32.partialorder %v3138, 0.0
    %vm3440 = vcmp.ge.f32.partialorder %v3141, 0.0
    %vm3441 = vcmp.ge.f32.partialorder %v3144, 0.0
    %vm3442 = vcmp.ge.f32.partialorder %v3147, 0.0
    %vm3443 = vcmp.ge.f32.partialorder %v3150, 0.0
    %vm3444 = vcmp.ge.f32.partialorder %v3153, 0.0
    %vm3445 = vcmp.ge.f32.partialorder %v3156, 0.0
    %vm3446 = vcmp.ge.f32.partialorder %v3159, 0.0
    %vm3447 = vcmp.ge.f32.partialorder %v3162, 0.0
    %vm3448 = vcmp.ge.f32.partialorder %v3165, 0.0
    %vm3449 = vcmp.ge.f32.partialorder %v3168, 0.0
    %vm3450 = vcmp.ge.f32.partialorder %v3171, 0.0
    %vm3451 = vcmp.ge.f32.partialorder %v3174, 0.0
    %vm3452 = vcmp.ge.f32.partialorder %v3177, 0.0
    %vm3453 = vcmp.ge.f32.partialorder %v3180, 0.0
    %vm3454 = vcmp.ge.f32.partialorder %v3183, 0.0
    %vm3455 = vcmp.ge.f32.partialorder %v3186, 0.0
    %vm3456 = vcmp.ge.f32.partialorder %v3189, 0.0
    %vm3457 = vcmp.ge.f32.partialorder %v3192, 0.0
    %vm3458 = vcmp.ge.f32.partialorder %v3195, 0.0
    %vm3459 = vcmp.ge.f32.partialorder %v3198, 0.0
    %vm3460 = vcmp.ge.f32.partialorder %v3201, 0.0
    %vm3461 = vcmp.ge.f32.partialorder %v3204, 0.0
    %vm3462 = vcmp.ge.f32.partialorder %v3207, 0.0
    %vm3463 = vcmp.ge.f32.partialorder %v3210, 0.0
    %vm3464 = vcmp.ge.f32.partialorder %v3213, 0.0
    %vm3465 = vcmp.ge.f32.partialorder %v3216, 0.0
    %vm3466 = vcmp.ge.f32.partialorder %v3219, 0.0
    %vm3467 = vcmp.ge.f32.partialorder %v3222, 0.0
    %vm3468 = vcmp.ge.f32.partialorder %v3225, 0.0
    %vm3469 = vcmp.ge.f32.partialorder %v3228, 0.0
    %vm3470 = vcmp.ge.f32.partialorder %v3231, 0.0
    %vm3471 = vcmp.ge.f32.partialorder %v3234, 0.0
    %vm3472 = vcmp.ge.f32.partialorder %v3237, 0.0
    %vm3473 = vcmp.ge.f32.partialorder %v3240, 0.0
    %vm3474 = vcmp.ge.f32.partialorder %v3243, 0.0
    %vm3475 = vcmp.ge.f32.partialorder %v3246, 0.0
    %vm3476 = vcmp.ge.f32.partialorder %v3249, 0.0
    %vm3477 = vcmp.ge.f32.partialorder %v3252, 0.0
    %vm3478 = vcmp.ge.f32.partialorder %v3255, 0.0
    %vm3479 = vcmp.ge.f32.partialorder %v3258, 0.0
    %vm3480 = vcmp.ge.f32.partialorder %v3261, 0.0
    %vm3481 = vcmp.ge.f32.partialorder %v3264, 0.0
    %vm3482 = vcmp.ge.f32.partialorder %v3267, 0.0
    %vm3483 = vcmp.ge.f32.partialorder %v3270, 0.0
    %vm3484 = vcmp.ge.f32.partialorder %v3273, 0.0
    %vm3485 = vcmp.ge.f32.partialorder %v3276, 0.0
    %vm3486 = vcmp.ge.f32.partialorder %v3279, 0.0
    %vm3487 = vcmp.ge.f32.partialorder %v3282, 0.0
    %vm3488 = vcmp.ge.f32.partialorder %v3285, 0.0
    %vm3489 = vcmp.ge.f32.partialorder %v3288, 0.0
    %vm3490 = vcmp.ge.f32.partialorder %v3291, 0.0
    %vm3491 = vcmp.ge.f32.partialorder %v3294, 0.0
    %vm3492 = vcmp.ge.f32.partialorder %v3297, 0.0
    %vm3493 = vcmp.ge.f32.partialorder %v3300, 0.0
    %vm3494 = vcmp.ge.f32.partialorder %v3303, 0.0
    %vm3495 = vcmp.ge.f32.partialorder %v3306, 0.0
    %vm3496 = vcmp.ge.f32.partialorder %v3309, 0.0
    %vm3497 = vcmp.ge.f32.partialorder %v3312, 0.0
    %vm3498 = vcmp.ge.f32.partialorder %v3315, 0.0
    %vm3499 = vcmp.ge.f32.partialorder %v3318, 0.0
    %vm3500 = vcmp.ge.f32.partialorder %v3321, 0.0
    %vm3501 = vcmp.ge.f32.partialorder %v3324, 0.0
    %vm3502 = vcmp.ge.f32.partialorder %v3327, 0.0
    %vm3503 = vcmp.ge.f32.partialorder %v3330, 0.0
    %vm3504 = vcmp.ge.f32.partialorder %v3333, 0.0
    %vm3505 = vcmp.ge.f32.partialorder %v3336, 0.0
    %vm3506 = vcmp.ge.f32.partialorder %v3339, 0.0
    %vm3507 = vcmp.ge.f32.partialorder %v3342, 0.0
    %vm3508 = vcmp.ge.f32.partialorder %v3345, 0.0
    %vm3509 = vcmp.ge.f32.partialorder %v3348, 0.0
    %vm3510 = vcmp.ge.f32.partialorder %v3351, 0.0
    %vm3511 = vcmp.ge.f32.partialorder %v3354, 0.0
    %vm3512 = vcmp.ge.f32.partialorder %v3357, 0.0
    %vm3513 = vcmp.ge.f32.partialorder %v3360, 0.0
    %vm3514 = vcmp.ge.f32.partialorder %v3363, 0.0
    %vm3515 = vcmp.ge.f32.partialorder %v3366, 0.0
    %vm3516 = vcmp.ge.f32.partialorder %v3369, 0.0
    %vm3517 = vcmp.ge.f32.partialorder %v3372, 0.0
    %vm3518 = vcmp.ge.f32.partialorder %v3375, 0.0
    %vm3519 = vcmp.ge.f32.partialorder %v3378, 0.0
    %vm3520 = vcmp.ge.f32.partialorder %v3381, 0.0
    %vm3521 = vcmp.ge.f32.partialorder %v3384, 0.0
    %vm3522 = vcmp.ge.f32.partialorder %v3387, 0.0
    %vm3523 = vcmp.ge.f32.partialorder %v3390, 0.0
    %vm3524 = vcmp.ge.f32.partialorder %v3393, 0.0
    %vm3525 = vcmp.ge.f32.partialorder %v3396, 0.0
    %v3526 = vmul.f32 %v3015, 0.01
    %v3527 = vmul.f32 %v3018, 0.01
    %v3528 = vmul.f32 %v3021, 0.01
    %v3529 = vmul.f32 %v3024, 0.01
    %v3530 = vmul.f32 %v3027, 0.01
    %v3531 = vmul.f32 %v3030, 0.01
    %v3532 = vmul.f32 %v3033, 0.01
    %v3533 = vmul.f32 %v3036, 0.01
    %v3534 = vmul.f32 %v3039, 0.01
    %v3535 = vmul.f32 %v3042, 0.01
    %v3536 = vmul.f32 %v3045, 0.01
    %v3537 = vmul.f32 %v3048, 0.01
    %v3538 = vmul.f32 %v3051, 0.01
    %v3539 = vmul.f32 %v3054, 0.01
    %v3540 = vmul.f32 %v3057, 0.01
    %v3541 = vmul.f32 %v3060, 0.01
    %v3542 = vmul.f32 %v3063, 0.01
    %v3543 = vmul.f32 %v3066, 0.01
    %v3544 = vmul.f32 %v3069, 0.01
    %v3545 = vmul.f32 %v3072, 0.01
    %v3546 = vmul.f32 %v3075, 0.01
    %v3547 = vmul.f32 %v3078, 0.01
    %v3548 = vmul.f32 %v3081, 0.01
    %v3549 = vmul.f32 %v3084, 0.01
    %v3550 = vmul.f32 %v3087, 0.01
    %v3551 = vmul.f32 %v3090, 0.01
    %v3552 = vmul.f32 %v3093, 0.01
    %v3553 = vmul.f32 %v3096, 0.01
    %v3554 = vmul.f32 %v3099, 0.01
    %v3555 = vmul.f32 %v3102, 0.01
    %v3556 = vmul.f32 %v3105, 0.01
    %v3557 = vmul.f32 %v3108, 0.01
    %v3558 = vmul.f32 %v3111, 0.01
    %v3559 = vmul.f32 %v3114, 0.01
    %v3560 = vmul.f32 %v3117, 0.01
    %v3561 = vmul.f32 %v3120, 0.01
    %v3562 = vmul.f32 %v3123, 0.01
    %v3563 = vmul.f32 %v3126, 0.01
    %v3564 = vmul.f32 %v3129, 0.01
    %v3565 = vmul.f32 %v3132, 0.01
    %v3566 = vmul.f32 %v3135, 0.01
    %v3567 = vmul.f32 %v3138, 0.01
    %v3568 = vmul.f32 %v3141, 0.01
    %v3569 = vmul.f32 %v3144, 0.01
    %v3570 = vmul.f32 %v3147, 0.01
    %v3571 = vmul.f32 %v3150, 0.01
    %v3572 = vmul.f32 %v3153, 0.01
    %v3573 = vmul.f32 %v3156, 0.01
    %v3574 = vmul.f32 %v3159, 0.01
    %v3575 = vmul.f32 %v3162, 0.01
    %v3576 = vmul.f32 %v3165, 0.01
    %v3577 = vmul.f32 %v3168, 0.01
    %v3578 = vmul.f32 %v3171, 0.01
    %v3579 = vmul.f32 %v3174, 0.01
    %v3580 = vmul.f32 %v3177, 0.01
    %v3581 = vmul.f32 %v3180, 0.01
    %v3582 = vmul.f32 %v3183, 0.01
    %v3583 = vmul.f32 %v3186, 0.01
    %v3584 = vmul.f32 %v3189, 0.01
    %v3585 = vmul.f32 %v3192, 0.01
    %v3586 = vmul.f32 %v3195, 0.01
    %v3587 = vmul.f32 %v3198, 0.01
    %v3588 = vmul.f32 %v3201, 0.01
    %v3589 = vmul.f32 %v3204, 0.01
    %v3590 = vmul.f32 %v3207, 0.01
    %v3591 = vmul.f32 %v3210, 0.01
    %v3592 = vmul.f32 %v3213, 0.01
    %v3593 = vmul.f32 %v3216, 0.01
    %v3594 = vmul.f32 %v3219, 0.01
    %v3595 = vmul.f32 %v3222, 0.01
    %v3596 = vmul.f32 %v3225, 0.01
    %v3597 = vmul.f32 %v3228, 0.01
    %v3598 = vmul.f32 %v3231, 0.01
    %v3599 = vmul.f32 %v3234, 0.01
    %v3600 = vmul.f32 %v3237, 0.01
    %v3601 = vmul.f32 %v3240, 0.01
    %v3602 = vmul.f32 %v3243, 0.01
    %v3603 = vmul.f32 %v3246, 0.01
    %v3604 = vmul.f32 %v3249, 0.01
    %v3605 = vmul.f32 %v3252, 0.01
    %v3606 = vmul.f32 %v3255, 0.01
    %v3607 = vmul.f32 %v3258, 0.01
    %v3608 = vmul.f32 %v3261, 0.01
    %v3609 = vmul.f32 %v3264, 0.01
    %v3610 = vmul.f32 %v3267, 0.01
    %v3611 = vmul.f32 %v3270, 0.01
    %v3612 = vmul.f32 %v3273, 0.01
    %v3613 = vmul.f32 %v3276, 0.01
    %v3614 = vmul.f32 %v3279, 0.01
    %v3615 = vmul.f32 %v3282, 0.01
    %v3616 = vmul.f32 %v3285, 0.01
    %v3617 = vmul.f32 %v3288, 0.01
    %v3618 = vmul.f32 %v3291, 0.01
    %v3619 = vmul.f32 %v3294, 0.01
    %v3620 = vmul.f32 %v3297, 0.01
    %v3621 = vmul.f32 %v3300, 0.01
    %v3622 = vmul.f32 %v3303, 0.01
    %v3623 = vmul.f32 %v3306, 0.01
    %v3624 = vmul.f32 %v3309, 0.01
    %v3625 = vmul.f32 %v3312, 0.01
    %v3626 = vmul.f32 %v3315, 0.01
    %v3627 = vmul.f32 %v3318, 0.01
    %v3628 = vmul.f32 %v3321, 0.01
    %v3629 = vmul.f32 %v3324, 0.01
    %v3630 = vmul.f32 %v3327, 0.01
    %v3631 = vmul.f32 %v3330, 0.01
    %v3632 = vmul.f32 %v3333, 0.01
    %v3633 = vmul.f32 %v3336, 0.01
    %v3634 = vmul.f32 %v3339, 0.01
    %v3635 = vmul.f32 %v3342, 0.01
    %v3636 = vmul.f32 %v3345, 0.01
    %v3637 = vmul.f32 %v3348, 0.01
    %v3638 = vmul.f32 %v3351, 0.01
    %v3639 = vmul.f32 %v3354, 0.01
    %v3640 = vmul.f32 %v3357, 0.01
    %v3641 = vmul.f32 %v3360, 0.01
    %v3642 = vmul.f32 %v3363, 0.01
    %v3643 = vmul.f32 %v3366, 0.01
    %v3644 = vmul.f32 %v3369, 0.01
    %v3645 = vmul.f32 %v3372, 0.01
    %v3646 = vmul.f32 %v3375, 0.01
    %v3647 = vmul.f32 %v3378, 0.01
    %v3648 = vmul.f32 %v3381, 0.01
    %v3649 = vmul.f32 %v3384, 0.01
    %v3650 = vmul.f32 %v3387, 0.01
    %v3651 = vmul.f32 %v3390, 0.01
    %v3652 = vmul.f32 %v3393, 0.01
    %v3653 = vmul.f32 %v3396, 0.01
    %v3654 = vsel %vm3398, %v3015, %v3526
    %v3655 = vsel %vm3399, %v3018, %v3527
    %v3656 = vsel %vm3400, %v3021, %v3528
    %v3657 = vsel %vm3401, %v3024, %v3529
    %v3658 = vsel %vm3402, %v3027, %v3530
    %v3659 = vsel %vm3403, %v3030, %v3531
    %v3660 = vsel %vm3404, %v3033, %v3532
    %v3661 = vsel %vm3405, %v3036, %v3533
    %v3662 = vsel %vm3406, %v3039, %v3534
    %v3663 = vsel %vm3407, %v3042, %v3535
    %v3664 = vsel %vm3408, %v3045, %v3536
    %v3665 = vsel %vm3409, %v3048, %v3537
    %v3666 = vsel %vm3410, %v3051, %v3538
    %v3667 = vsel %vm3411, %v3054, %v3539
    %v3668 = vsel %vm3412, %v3057, %v3540
    %v3669 = vsel %vm3413, %v3060, %v3541
    %v3670 = vsel %vm3414, %v3063, %v3542
    %v3671 = vsel %vm3415, %v3066, %v3543
    %v3672 = vsel %vm3416, %v3069, %v3544
    %v3673 = vsel %vm3417, %v3072, %v3545
    %v3674 = vsel %vm3418, %v3075, %v3546
    %v3675 = vsel %vm3419, %v3078, %v3547
    %v3676 = vsel %vm3420, %v3081, %v3548
    %v3677 = vsel %vm3421, %v3084, %v3549
    %v3678 = vsel %vm3422, %v3087, %v3550
    %v3679 = vsel %vm3423, %v3090, %v3551
    %v3680 = vsel %vm3424, %v3093, %v3552
    %v3681 = vsel %vm3425, %v3096, %v3553
    %v3682 = vsel %vm3426, %v3099, %v3554
    %v3683 = vsel %vm3427, %v3102, %v3555
    %v3684 = vsel %vm3428, %v3105, %v3556
    %v3685 = vsel %vm3429, %v3108, %v3557
    %v3686 = vsel %vm3430, %v3111, %v3558
    %v3687 = vsel %vm3431, %v3114, %v3559
    %v3688 = vsel %vm3432, %v3117, %v3560
    %v3689 = vsel %vm3433, %v3120, %v3561
    %v3690 = vsel %vm3434, %v3123, %v3562
    %v3691 = vsel %vm3435, %v3126, %v3563
    %v3692 = vsel %vm3436, %v3129, %v3564
    %v3693 = vsel %vm3437, %v3132, %v3565
    %v3694 = vsel %vm3438, %v3135, %v3566
    %v3695 = vsel %vm3439, %v3138, %v3567
    %v3696 = vsel %vm3440, %v3141, %v3568
    %v3697 = vsel %vm3441, %v3144, %v3569
    %v3698 = vsel %vm3442, %v3147, %v3570
    %v3699 = vsel %vm3443, %v3150, %v3571
    %v3700 = vsel %vm3444, %v3153, %v3572
    %v3701 = vsel %vm3445, %v3156, %v3573
    %v3702 = vsel %vm3446, %v3159, %v3574
    %v3703 = vsel %vm3447, %v3162, %v3575
    %v3704 = vsel %vm3448, %v3165, %v3576
    %v3705 = vsel %vm3449, %v3168, %v3577
    %v3706 = vsel %vm3450, %v3171, %v3578
    %v3707 = vsel %vm3451, %v3174, %v3579
    %v3708 = vsel %vm3452, %v3177, %v3580
    %v3709 = vsel %vm3453, %v3180, %v3581
    %v3710 = vsel %vm3454, %v3183, %v3582
    %v3711 = vsel %vm3455, %v3186, %v3583
    %v3712 = vsel %vm3456, %v3189, %v3584
    %v3713 = vsel %vm3457, %v3192, %v3585
    %v3714 = vsel %vm3458, %v3195, %v3586
    %v3715 = vsel %vm3459, %v3198, %v3587
    %v3716 = vsel %vm3460, %v3201, %v3588
    %v3717 = vsel %vm3461, %v3204, %v3589
    %v3718 = vsel %vm3462, %v3207, %v3590
    %v3719 = vsel %vm3463, %v3210, %v3591
    %v3720 = vsel %vm3464, %v3213, %v3592
    %v3721 = vsel %vm3465, %v3216, %v3593
    %v3722 = vsel %vm3466, %v3219, %v3594
    %v3723 = vsel %vm3467, %v3222, %v3595
    %v3724 = vsel %vm3468, %v3225, %v3596
    %v3725 = vsel %vm3469, %v3228, %v3597
    %v3726 = vsel %vm3470, %v3231, %v3598
    %v3727 = vsel %vm3471, %v3234, %v3599
    %v3728 = vsel %vm3472, %v3237, %v3600
    %v3729 = vsel %vm3473, %v3240, %v3601
    %v3730 = vsel %vm3474, %v3243, %v3602
    %v3731 = vsel %vm3475, %v3246, %v3603
    %v3732 = vsel %vm3476, %v3249, %v3604
    %v3733 = vsel %vm3477, %v3252, %v3605
    %v3734 = vsel %vm3478, %v3255, %v3606
    %v3735 = vsel %vm3479, %v3258, %v3607
    %v3736 = vsel %vm3480, %v3261, %v3608
    %v3737 = vsel %vm3481, %v3264, %v3609
    %v3738 = vsel %vm3482, %v3267, %v3610
    %v3739 = vsel %vm3483, %v3270, %v3611
    %v3740 = vsel %vm3484, %v3273, %v3612
    %v3741 = vsel %vm3485, %v3276, %v3613
    %v3742 = vsel %vm3486, %v3279, %v3614
    %v3743 = vsel %vm3487, %v3282, %v3615
    %v3744 = vsel %vm3488, %v3285, %v3616
    %v3745 = vsel %vm3489, %v3288, %v3617
    %v3746 = vsel %vm3490, %v3291, %v3618
    %v3747 = vsel %vm3491, %v3294, %v3619
    %v3748 = vsel %vm3492, %v3297, %v3620
    %v3749 = vsel %vm3493, %v3300, %v3621
    %v3750 = vsel %vm3494, %v3303, %v3622
    %v3751 = vsel %vm3495, %v3306, %v3623
    %v3752 = vsel %vm3496, %v3309, %v3624
    %v3753 = vsel %vm3497, %v3312, %v3625
    %v3754 = vsel %vm3498, %v3315, %v3626
    %v3755 = vsel %vm3499, %v3318, %v3627
    %v3756 = vsel %vm3500, %v3321, %v3628
    %v3757 = vsel %vm3501, %v3324, %v3629
    %v3758 = vsel %vm3502, %v3327, %v3630
    %v3759 = vsel %vm3503, %v3330, %v3631
    %v3760 = vsel %vm3504, %v3333, %v3632
    %v3761 = vsel %vm3505, %v3336, %v3633
    %v3762 = vsel %vm3506, %v3339, %v3634
    %v3763 = vsel %vm3507, %v3342, %v3635
    %v3764 = vsel %vm3508, %v3345, %v3636
    %v3765 = vsel %vm3509, %v3348, %v3637
    %v3766 = vsel %vm3510, %v3351, %v3638
    %v3767 = vsel %vm3511, %v3354, %v3639
    %v3768 = vsel %vm3512, %v3357, %v3640
    %v3769 = vsel %vm3513, %v3360, %v3641
    %v3770 = vsel %vm3514, %v3363, %v3642
    %v3771 = vsel %vm3515, %v3366, %v3643
    %v3772 = vsel %vm3516, %v3369, %v3644
    %v3773 = vsel %vm3517, %v3372, %v3645
    %v3774 = vsel %vm3518, %v3375, %v3646
    %v3775 = vsel %vm3519, %v3378, %v3647
    %v3776 = vsel %vm3520, %v3381, %v3648
    %v3777 = vsel %vm3521, %v3384, %v3649
    %v3778 = vsel %vm3522, %v3387, %v3650
    %v3779 = vsel %vm3523, %v3390, %v3651
    %v3780 = vsel %vm3524, %v3393, %v3652
    %v3781 = vsel %vm3525, %v3396, %v3653
    %vm3782 = vcmask 523264
    %3783 = vst.msk [vmem:[%s4] sm:$0xff] %vm3782, %v3654
    %3784 = vst.msk [vmem:[%s4 + $0x8] sm:$0xff] %vm3782, %v3655
    %3785 = vst.msk [vmem:[%s4 + $0x10] sm:$0xff] %vm3782, %v3656
    %3786 = vst.msk [vmem:[%s4 + $0x18] sm:$0xff] %vm3782, %v3657
    %3787 = vst.msk [vmem:[%s4 + $0x20] sm:$0xff] %vm3782, %v3658
    %3788 = vst.msk [vmem:[%s4 + $0x28] sm:$0xff] %vm3782, %v3659
    %3789 = vst.msk [vmem:[%s4 + $0x30] sm:$0xff] %vm3782, %v3660
    %3790 = vst.msk [vmem:[%s4 + $0x38] sm:$0xff] %vm3782, %v3661
    %3791 = vst.msk [vmem:[%s4 + $0x40] sm:$0xff] %vm3782, %v3662
    %3792 = vst.msk [vmem:[%s4 + $0x48] sm:$0xff] %vm3782, %v3663
    %3793 = vst.msk [vmem:[%s4 + $0x50] sm:$0xff] %vm3782, %v3664
    %3794 = vst.msk [vmem:[%s4 + $0x58] sm:$0xff] %vm3782, %v3665
    %3795 = vst.msk [vmem:[%s4 + $0x60] sm:$0xff] %vm3782, %v3666
    %3796 = vst.msk [vmem:[%s4 + $0x68] sm:$0xff] %vm3782, %v3667
    %3797 = vst.msk [vmem:[%s4 + $0x70] sm:$0xff] %vm3782, %v3668
    %3798 = vst.msk [vmem:[%s4 + $0x78] sm:$0xff] %vm3782, %v3669
    %3799 = vst.msk [vmem:[%s4 + $0x80] sm:$0xff] %vm3782, %v3670
    %3800 = vst.msk [vmem:[%s4 + $0x88] sm:$0xff] %vm3782, %v3671
    %3801 = vst.msk [vmem:[%s4 + $0x90] sm:$0xff] %vm3782, %v3672
    %3802 = vst.msk [vmem:[%s4 + $0x98] sm:$0xff] %vm3782, %v3673
    %3803 = vst.msk [vmem:[%s4 + $0xa0] sm:$0xff] %vm3782, %v3674
    %3804 = vst.msk [vmem:[%s4 + $0xa8] sm:$0xff] %vm3782, %v3675
    %3805 = vst.msk [vmem:[%s4 + $0xb0] sm:$0xff] %vm3782, %v3676
    %3806 = vst.msk [vmem:[%s4 + $0xb8] sm:$0xff] %vm3782, %v3677
    %3807 = vst.msk [vmem:[%s4 + $0xc0] sm:$0xff] %vm3782, %v3678
    %3808 = vst.msk [vmem:[%s4 + $0xc8] sm:$0xff] %vm3782, %v3679
    %3809 = vst.msk [vmem:[%s4 + $0xd0] sm:$0xff] %vm3782, %v3680
    %3810 = vst.msk [vmem:[%s4 + $0xd8] sm:$0xff] %vm3782, %v3681
    %3811 = vst.msk [vmem:[%s4 + $0xe0] sm:$0xff] %vm3782, %v3682
    %3812 = vst.msk [vmem:[%s4 + $0xe8] sm:$0xff] %vm3782, %v3683
    %3813 = vst.msk [vmem:[%s4 + $0xf0] sm:$0xff] %vm3782, %v3684
    %3814 = vst.msk [vmem:[%s4 + $0xf8] sm:$0xff] %vm3782, %v3685
    %3815 = vst.msk [vmem:[%s4 + $0x100] sm:$0xff] %vm3782, %v3686
    %3816 = vst.msk [vmem:[%s4 + $0x108] sm:$0xff] %vm3782, %v3687
    %3817 = vst.msk [vmem:[%s4 + $0x110] sm:$0xff] %vm3782, %v3688
    %3818 = vst.msk [vmem:[%s4 + $0x118] sm:$0xff] %vm3782, %v3689
    %3819 = vst.msk [vmem:[%s4 + $0x120] sm:$0xff] %vm3782, %v3690
    %3820 = vst.msk [vmem:[%s4 + $0x128] sm:$0xff] %vm3782, %v3691
    %3821 = vst.msk [vmem:[%s4 + $0x130] sm:$0xff] %vm3782, %v3692
    %3822 = vst.msk [vmem:[%s4 + $0x138] sm:$0xff] %vm3782, %v3693
    %3823 = vst.msk [vmem:[%s4 + $0x140] sm:$0xff] %vm3782, %v3694
    %3824 = vst.msk [vmem:[%s4 + $0x148] sm:$0xff] %vm3782, %v3695
    %3825 = vst.msk [vmem:[%s4 + $0x150] sm:$0xff] %vm3782, %v3696
    %3826 = vst.msk [vmem:[%s4 + $0x158] sm:$0xff] %vm3782, %v3697
    %3827 = vst.msk [vmem:[%s4 + $0x160] sm:$0xff] %vm3782, %v3698
    %3828 = vst.msk [vmem:[%s4 + $0x168] sm:$0xff] %vm3782, %v3699
    %3829 = vst.msk [vmem:[%s4 + $0x170] sm:$0xff] %vm3782, %v3700
    %3830 = vst.msk [vmem:[%s4 + $0x178] sm:$0xff] %vm3782, %v3701
    %3831 = vst.msk [vmem:[%s4 + $0x180] sm:$0xff] %vm3782, %v3702
    %3832 = vst.msk [vmem:[%s4 + $0x188] sm:$0xff] %vm3782, %v3703
    %3833 = vst.msk [vmem:[%s4 + $0x190] sm:$0xff] %vm3782, %v3704
    %3834 = vst.msk [vmem:[%s4 + $0x198] sm:$0xff] %vm3782, %v3705
    %3835 = vst.msk [vmem:[%s4 + $0x1a0] sm:$0xff] %vm3782, %v3706
    %3836 = vst.msk [vmem:[%s4 + $0x1a8] sm:$0xff] %vm3782, %v3707
    %3837 = vst.msk [vmem:[%s4 + $0x1b0] sm:$0xff] %vm3782, %v3708
    %3838 = vst.msk [vmem:[%s4 + $0x1b8] sm:$0xff] %vm3782, %v3709
    %3839 = vst.msk [vmem:[%s4 + $0x1c0] sm:$0xff] %vm3782, %v3710
    %3840 = vst.msk [vmem:[%s4 + $0x1c8] sm:$0xff] %vm3782, %v3711
    %3841 = vst.msk [vmem:[%s4 + $0x1d0] sm:$0xff] %vm3782, %v3712
    %3842 = vst.msk [vmem:[%s4 + $0x1d8] sm:$0xff] %vm3782, %v3713
    %3843 = vst.msk [vmem:[%s4 + $0x1e0] sm:$0xff] %vm3782, %v3714
    %3844 = vst.msk [vmem:[%s4 + $0x1e8] sm:$0xff] %vm3782, %v3715
    %3845 = vst.msk [vmem:[%s4 + $0x1f0] sm:$0xff] %vm3782, %v3716
    %3846 = vst.msk [vmem:[%s4 + $0x1f8] sm:$0xff] %vm3782, %v3717
    %3847 = vst.msk [vmem:[%s4 + $0x200] sm:$0xff] %vm3782, %v3718
    %3848 = vst.msk [vmem:[%s4 + $0x208] sm:$0xff] %vm3782, %v3719
    %3849 = vst.msk [vmem:[%s4 + $0x210] sm:$0xff] %vm3782, %v3720
    %3850 = vst.msk [vmem:[%s4 + $0x218] sm:$0xff] %vm3782, %v3721
    %3851 = vst.msk [vmem:[%s4 + $0x220] sm:$0xff] %vm3782, %v3722
    %3852 = vst.msk [vmem:[%s4 + $0x228] sm:$0xff] %vm3782, %v3723
    %3853 = vst.msk [vmem:[%s4 + $0x230] sm:$0xff] %vm3782, %v3724
    %3854 = vst.msk [vmem:[%s4 + $0x238] sm:$0xff] %vm3782, %v3725
    %3855 = vst.msk [vmem:[%s4 + $0x240] sm:$0xff] %vm3782, %v3726
    %3856 = vst.msk [vmem:[%s4 + $0x248] sm:$0xff] %vm3782, %v3727
    %3857 = vst.msk [vmem:[%s4 + $0x250] sm:$0xff] %vm3782, %v3728
    %3858 = vst.msk [vmem:[%s4 + $0x258] sm:$0xff] %vm3782, %v3729
    %3859 = vst.msk [vmem:[%s4 + $0x260] sm:$0xff] %vm3782, %v3730
    %3860 = vst.msk [vmem:[%s4 + $0x268] sm:$0xff] %vm3782, %v3731
    %3861 = vst.msk [vmem:[%s4 + $0x270] sm:$0xff] %vm3782, %v3732
    %3862 = vst.msk [vmem:[%s4 + $0x278] sm:$0xff] %vm3782, %v3733
    %3863 = vst.msk [vmem:[%s4 + $0x280] sm:$0xff] %vm3782, %v3734
    %3864 = vst.msk [vmem:[%s4 + $0x288] sm:$0xff] %vm3782, %v3735
    %3865 = vst.msk [vmem:[%s4 + $0x290] sm:$0xff] %vm3782, %v3736
    %3866 = vst.msk [vmem:[%s4 + $0x298] sm:$0xff] %vm3782, %v3737
    %3867 = vst.msk [vmem:[%s4 + $0x2a0] sm:$0xff] %vm3782, %v3738
    %3868 = vst.msk [vmem:[%s4 + $0x2a8] sm:$0xff] %vm3782, %v3739
    %3869 = vst.msk [vmem:[%s4 + $0x2b0] sm:$0xff] %vm3782, %v3740
    %3870 = vst.msk [vmem:[%s4 + $0x2b8] sm:$0xff] %vm3782, %v3741
    %3871 = vst.msk [vmem:[%s4 + $0x2c0] sm:$0xff] %vm3782, %v3742
    %3872 = vst.msk [vmem:[%s4 + $0x2c8] sm:$0xff] %vm3782, %v3743
    %3873 = vst.msk [vmem:[%s4 + $0x2d0] sm:$0xff] %vm3782, %v3744
    %3874 = vst.msk [vmem:[%s4 + $0x2d8] sm:$0xff] %vm3782, %v3745
    %3875 = vst.msk [vmem:[%s4 + $0x2e0] sm:$0xff] %vm3782, %v3746
    %3876 = vst.msk [vmem:[%s4 + $0x2e8] sm:$0xff] %vm3782, %v3747
    %3877 = vst.msk [vmem:[%s4 + $0x2f0] sm:$0xff] %vm3782, %v3748
    %3878 = vst.msk [vmem:[%s4 + $0x2f8] sm:$0xff] %vm3782, %v3749
    %3879 = vst.msk [vmem:[%s4 + $0x300] sm:$0xff] %vm3782, %v3750
    %3880 = vst.msk [vmem:[%s4 + $0x308] sm:$0xff] %vm3782, %v3751
    %3881 = vst.msk [vmem:[%s4 + $0x310] sm:$0xff] %vm3782, %v3752
    %3882 = vst.msk [vmem:[%s4 + $0x318] sm:$0xff] %vm3782, %v3753
    %3883 = vst.msk [vmem:[%s4 + $0x320] sm:$0xff] %vm3782, %v3754
    %3884 = vst.msk [vmem:[%s4 + $0x328] sm:$0xff] %vm3782, %v3755
    %3885 = vst.msk [vmem:[%s4 + $0x330] sm:$0xff] %vm3782, %v3756
    %3886 = vst.msk [vmem:[%s4 + $0x338] sm:$0xff] %vm3782, %v3757
    %3887 = vst.msk [vmem:[%s4 + $0x340] sm:$0xff] %vm3782, %v3758
    %3888 = vst.msk [vmem:[%s4 + $0x348] sm:$0xff] %vm3782, %v3759
    %3889 = vst.msk [vmem:[%s4 + $0x350] sm:$0xff] %vm3782, %v3760
    %3890 = vst.msk [vmem:[%s4 + $0x358] sm:$0xff] %vm3782, %v3761
    %3891 = vst.msk [vmem:[%s4 + $0x360] sm:$0xff] %vm3782, %v3762
    %3892 = vst.msk [vmem:[%s4 + $0x368] sm:$0xff] %vm3782, %v3763
    %3893 = vst.msk [vmem:[%s4 + $0x370] sm:$0xff] %vm3782, %v3764
    %3894 = vst.msk [vmem:[%s4 + $0x378] sm:$0xff] %vm3782, %v3765
    %3895 = vst.msk [vmem:[%s4 + $0x380] sm:$0xff] %vm3782, %v3766
    %3896 = vst.msk [vmem:[%s4 + $0x388] sm:$0xff] %vm3782, %v3767
    %3897 = vst.msk [vmem:[%s4 + $0x390] sm:$0xff] %vm3782, %v3768
    %3898 = vst.msk [vmem:[%s4 + $0x398] sm:$0xff] %vm3782, %v3769
    %3899 = vst.msk [vmem:[%s4 + $0x3a0] sm:$0xff] %vm3782, %v3770
    %3900 = vst.msk [vmem:[%s4 + $0x3a8] sm:$0xff] %vm3782, %v3771
    %3901 = vst.msk [vmem:[%s4 + $0x3b0] sm:$0xff] %vm3782, %v3772
    %3902 = vst.msk [vmem:[%s4 + $0x3b8] sm:$0xff] %vm3782, %v3773
    %3903 = vst.msk [vmem:[%s4 + $0x3c0] sm:$0xff] %vm3782, %v3774
    %3904 = vst.msk [vmem:[%s4 + $0x3c8] sm:$0xff] %vm3782, %v3775
    %3905 = vst.msk [vmem:[%s4 + $0x3d0] sm:$0xff] %vm3782, %v3776
    %3906 = vst.msk [vmem:[%s4 + $0x3d8] sm:$0xff] %vm3782, %v3777
    %3907 = vst.msk [vmem:[%s4 + $0x3e0] sm:$0xff] %vm3782, %v3778
    %3908 = vst.msk [vmem:[%s4 + $0x3e8] sm:$0xff] %vm3782, %v3779
    %3909 = vst.msk [vmem:[%s4 + $0x3f0] sm:$0xff] %vm3782, %v3780
    %3910 = vst.msk [vmem:[%s4 + $0x3f8] sm:$0xff] %vm3782, %v3781
    // Predicated region
    $region22: #{tpu_custom_call.1} parent=1 // pred_check
      _
    $region23: #{tpu_custom_call.1} parent=1 // pred_check_branch
      %3912 = sbr.rel (0) target = $region25
    $region24: #{tpu_custom_call.1} parent=1 // pred_region
      _
    $region25: #{tpu_custom_call.1} parent=1 // pred_fallthru
      _
    // Predicated region
    $region26: #{tpu_custom_call.1} parent=1 // pred_check
      _
    $region27: #{tpu_custom_call.1} parent=1 // pred_check_branch
      %3914 = sbr.rel (0) target = $region29
    $region28: #{tpu_custom_call.1} parent=1 // pred_region
      _
    $region29: #{tpu_custom_call.1} parent=1 // pred_fallthru
      _
    %3915 = vsyncpa [#allocation3], 1

</llo_original>
